<compile_context>
chip_gen: v7x
topology: tpu7x:2x2x1
jax: 0.10.0
libtpu: 0.0.40
codegen_flags: <defaults>
</compile_context>

<pallas_src>
import jax
import jax.numpy as jnp
from jax.experimental import pallas as pl
from jax.experimental.pallas import tpu as pltpu


# --------------------------------- kernel ---------------------------------- #
def upsample_conv_kernel(x_ref, w_ref, b_ref, out_ref, cs_ref):
    """One batch image: nearest x2 upsample + 3x3 conv via sub-pixel decomposition.

    x_ref   : (1, H, W, C)     bf16 input image (NHWC)
    w_ref   : (4, 2, 2C, C)    bf16 folded weights [s=dy*2+dx, ry, rx*C+cin, cout]
    b_ref   : (1, C)           f32 conv bias
    out_ref : (1, 4, H*W, C)   f32, four output sub-grids (phase s=dy*2+dx), HW flat
    cs_ref  : (2, H+2, W, 2C)  f32 scratch; plane p holds the two column shifts
                               phase dx=p needs, channel-concatenated:
                                 cs[p, r, j, 0:C ] = xpad[r, j + p    ]
                                 cs[p, r, j, C:2C] = xpad[r, j + p + 1]
                               (xpad = x zero-padded by 1 row/col on every side)
    """
    _, H, W, C = x_ref.shape
    C2 = 2 * C
    HW = H * W

    # Zero only the halo (top/bottom rows plus the single out-of-range column of
    # each shifted half).  Done every grid step (cheap) instead of a
    # program_id==0 init so the kernel stays correct when the "parallel" batch
    # axis is sharded across TensorCores.
    zrow = jnp.zeros((1, W, C2), jnp.float32)
    zcol = jnp.zeros((H, 1, C), jnp.float32)
    for p in range(2):
        cs_ref[p, 0:1, :, :] = zrow
        cs_ref[p, H + 1:H + 2, :, :] = zrow
    cs_ref[0, 1:H + 1, 0:1, 0:C] = zcol             # left-shift half, column 0
    cs_ref[1, 1:H + 1, W - 1:W, C:C2] = zcol        # right-shift half, column W-1

    # Interior: centre copy + the two column shifts, built once per image.
    # (bf16 -> f32 cast keeps all scratch stores on the proven 32-bit path.)
    x32 = x_ref[0].astype(jnp.float32)              # (H, W, C)
    cs_ref[0, 1:H + 1, :, C:C2] = x32               # phase dx=0, rx=1 tap (centre)
    cs_ref[1, 1:H + 1, :, 0:C] = x32                # phase dx=1, rx=0 tap (centre)
    # NOTE(perf): at large W build these two with pltpu.roll + mask so the stores
    # stay full-width; the masked offset store is negligible at W=16.
    cs_ref[0, 1:H + 1, 1:W, 0:C] = x32[:, 0:W - 1, :]     # left shift  (col j-1)
    cs_ref[1, 1:H + 1, 0:W - 1, C:C2] = x32[:, 1:W, :]    # right shift (col j+1)

    bias = b_ref[...]                               # (1, C) f32, broadcasts over HW

    # Four output sub-pixel phases; each is 2 MXU matmuls with K = 2C.
    for dy in range(2):
        for dx in range(2):
            s = dy * 2 + dx
            win0 = cs_ref[dx, dy:dy + H, :, :].reshape(HW, C2)
            acc = jnp.dot(win0.astype(jnp.bfloat16), w_ref[s, 0],
                          preferred_element_type=jnp.float32)
            win1 = cs_ref[dx, dy + 1:dy + 1 + H, :, :].reshape(HW, C2)
            acc = acc + jnp.dot(win1.astype(jnp.bfloat16), w_ref[s, 1],
                                preferred_element_type=jnp.float32)
            out_ref[0, s] = (acc + bias).astype(out_ref.dtype)


# --------------------------------- wrapper --------------------------------- #
def upsample_forward(x_nchw, weight, bias):
    """PyTorch Upsample.forward: nearest x2 upsample then Conv2d(C, C, 3, padding=1).

    x_nchw : (B, C, H, W), weight : (C, C, 3, 3) OIHW, bias : (C,)
    returns (B, C, 2H, 2W) float32
    """
    B, C, H, W = x_nchw.shape
    # Lane/sublane-dense preconditions: C fills whole 128-lane tiles and W fills
    # whole sublane tiles (16 for bf16 input, 8 for the f32 scratch), so the
    # in-kernel (H, W, K) -> (H*W, K) flattens are free views, not relayouts.
    assert C % 128 == 0 and W % 16 == 0 and H >= 1, (C, H, W)

    x_nhwc = jnp.transpose(x_nchw, (0, 2, 3, 1)).astype(jnp.bfloat16)

    # Fold the 3x3 kernel into four 2x2 "effective" kernels, one per output
    # sub-pixel phase (dy, dx).  R[d, r, k] = 1 iff original tap k contributes to
    # folded tap r for phase d (nearest-upsample duplication makes weights add).
    R = jnp.array([[[1., 0., 0.], [0., 1., 1.]],
                   [[1., 1., 0.], [0., 0., 1.]]], jnp.float32)        # (2, 2, 3)
    w_eff = jnp.einsum('ayk,bxl,ockl->abyxco', R, R,
                       weight.astype(jnp.float32))   # (dy, dx, ry, rx, Cin, Cout)
    # Merge (dy, dx) -> phase s and (rx, Cin) -> K so each phase is 2 matmuls
    # with K = 2C (fills the 256x256 MXU on v6e/v7x).
    w_cat = w_eff.reshape(4, 2, 2 * C, C).astype(jnp.bfloat16)
    bias2 = bias.reshape(1, C).astype(jnp.float32)

    grid_spec = pltpu.PrefetchScalarGridSpec(
        num_scalar_prefetch=0,
        grid=(B,),
        in_specs=[
            pl.BlockSpec((1, H, W, C), lambda i: (i, 0, 0, 0)),       # x (bf16)
            pl.BlockSpec((4, 2, 2 * C, C), lambda i: (0, 0, 0, 0)),   # folded w (bf16)
            pl.BlockSpec((1, C), lambda i: (0, 0)),                   # bias (f32)
        ],
        out_specs=pl.BlockSpec((1, 4, H * W, C), lambda i: (i, 0, 0, 0)),
        scratch_shapes=[pltpu.VMEM((2, H + 2, W, 2 * C), jnp.float32)],
    )

    # Explicit VMEM budget: double-buffered pipeline blocks + scratch + headroom,
    # so the same code compiles under v5e's 16 MiB default scoped VMEM.
    vmem_need = (2 * (H * W * C) * 2               # x block x2 buffers (bf16)
                 + 2 * (4 * 2 * 2 * C * C) * 2     # folded weights x2 buffers (bf16)
                 + 2 * C * 4                       # bias x2 buffers (f32)
                 + 2 * (4 * H * W * C) * 4         # out block x2 buffers (f32)
                 + (2 * (H + 2) * W * 2 * C) * 4)  # cs scratch (f32)
    vmem_limit = int(min(96 * 1024 * 1024, vmem_need + 16 * 1024 * 1024))

    out_sub = pl.pallas_call(
        upsample_conv_kernel,
        out_shape=jax.ShapeDtypeStruct((B, 4, H * W, C), jnp.float32),
        grid_spec=grid_spec,
        compiler_params=pltpu.CompilerParams(
            dimension_semantics=("parallel",),   # batch items independent (v7x 2 TCs)
            vmem_limit_bytes=vmem_limit),
    )(x_nhwc, w_cat, bias2)

    # Depth-to-space reassembly + NHWC->NCHW composed into ONE transpose
    # (a single HBM pass, which the module's NCHW output makes unavoidable).
    out6 = out_sub.reshape(B, 2, 2, H, W, C)                 # [b, dy, dx, i, j, c]
    return jnp.transpose(out6, (0, 5, 3, 1, 4, 2)).reshape(B, C, 2 * H, 2 * W)


# ------------------------------ JAX reference ------------------------------ #
def ref_forward(x, weight, bias):
    up = jnp.repeat(jnp.repeat(x, 2, axis=2), 2, axis=3)        # nearest x2
    out = jax.lax.conv_general_dilated(
        up, weight, (1, 1), "SAME",
        dimension_numbers=("NCHW", "OIHW", "NCHW"),
        precision=jax.lax.Precision.HIGHEST)
    return out + bias[None, :, None, None]


# ----------------------------------- main ----------------------------------- #
if __name__ == "__main__":
    B, C, H, W = 2, 128, 16, 16     # C=128 fills the lanes; W=16 fills bf16 sublanes

    key = jax.random.PRNGKey(0)
    kx, kw, kb = jax.random.split(key, 3)
    x = jax.random.normal(kx, (B, C, H, W), jnp.float32)
    weight = 0.05 * jax.random.normal(kw, (C, C, 3, 3), jnp.float32)
    bias = 0.05 * jax.random.normal(kb, (C,), jnp.float32)

    out = jax.block_until_ready(upsample_forward(x, weight, bias))
    assert out.shape == (B, C, 2 * H, 2 * W) and out.dtype == jnp.float32

    ref = jax.block_until_ready(ref_forward(x, weight, bias))
    max_err = float(jnp.max(jnp.abs(out - ref)))
    rel_err = float(jnp.linalg.norm(out - ref) / jnp.linalg.norm(ref))
    assert jnp.all(jnp.isfinite(out))
    # bf16 operands + f32 accumulation vs f32 reference: expected max|err| ~1e-2,
    # relative Frobenius error ~2e-3; a real tap/shift bug would be O(1).
    assert max_err < 7.5e-2 and rel_err < 1e-2, (max_err, rel_err)

    print("KERNEL_OK")
</pallas_src>

<mosaic_0001>
module attributes {stable_mosaic.version = 11 : i64} {
  func.func @upsample_conv_kernel(%arg0: i32, %arg1: memref<1x16x16x128xbf16, #tpu.memory_space<vmem>>, %arg2: memref<4x2x256x128xbf16, #tpu.memory_space<vmem>>, %arg3: memref<1x128xf32, #tpu.memory_space<vmem>>, %arg4: memref<1x4x256x128xf32, #tpu.memory_space<vmem>>, %arg5: memref<2x18x16x256xf32, #tpu.memory_space<vmem>>) attributes {dimension_semantics = [#tpu.dimension_semantics<parallel>], iteration_bounds = array<i64: 2>, scalar_prefetch = 0 : i64, scratch_operands = 1 : i64, tpu.core_type = #tpu.core_type<tc>, window_params = [{transform_indices = @transform_0, window_bounds = array<i64: 1, 16, 16, 128>}, {pipeline_mode = #tpu.pipeline_mode<synchronous>, transform_indices = @transform_1, window_bounds = array<i64: 4, 2, 256, 128>}, {pipeline_mode = #tpu.pipeline_mode<synchronous>, transform_indices = @transform_2, window_bounds = array<i64: 1, 128>}, {transform_indices = @transform_3, window_bounds = array<i64: 1, 4, 256, 128>}]} {
    %cst = arith.constant 0.000000e+00 : f32
    %0 = vector.broadcast %cst : f32 to vector<1x16x256xf32>
    %cst_0 = arith.constant 0.000000e+00 : f32
    %1 = vector.broadcast %cst_0 : f32 to vector<16x1x128xf32>
    %c0 = arith.constant 0 : index
    %c0_1 = arith.constant 0 : index
    %c0_2 = arith.constant 0 : index
    %c0_3 = arith.constant 0 : index
    %2 = vector.load %arg5[%c0, %c0_1, %c0_2, %c0_3] : memref<2x18x16x256xf32, #tpu.memory_space<vmem>>, vector<1x1x16x256xf32>
    %3 = vector.shape_cast %2 : vector<1x1x16x256xf32> to vector<1x16x256xf32>
    %4 = vector.shape_cast %0 : vector<1x16x256xf32> to vector<1x1x16x256xf32>
    tpu.vector_store %arg5[%c0, %c0_1, %c0_2, %c0_3], %4 {strides = array<i32>} : memref<2x18x16x256xf32, #tpu.memory_space<vmem>>, vector<1x1x16x256xf32>,
    %c0_4 = arith.constant 0 : index
    %c17 = arith.constant 17 : index
    %c0_5 = arith.constant 0 : index
    %c0_6 = arith.constant 0 : index
    %5 = vector.load %arg5[%c0_4, %c17, %c0_5, %c0_6] : memref<2x18x16x256xf32, #tpu.memory_space<vmem>>, vector<1x1x16x256xf32>
    %6 = vector.shape_cast %5 : vector<1x1x16x256xf32> to vector<1x16x256xf32>
    %7 = vector.shape_cast %0 : vector<1x16x256xf32> to vector<1x1x16x256xf32>
    tpu.vector_store %arg5[%c0_4, %c17, %c0_5, %c0_6], %7 {strides = array<i32>} : memref<2x18x16x256xf32, #tpu.memory_space<vmem>>, vector<1x1x16x256xf32>,
    %c1 = arith.constant 1 : index
    %c0_7 = arith.constant 0 : index
    %c0_8 = arith.constant 0 : index
    %c0_9 = arith.constant 0 : index
    %8 = vector.load %arg5[%c1, %c0_7, %c0_8, %c0_9] : memref<2x18x16x256xf32, #tpu.memory_space<vmem>>, vector<1x1x16x256xf32>
    %9 = vector.shape_cast %8 : vector<1x1x16x256xf32> to vector<1x16x256xf32>
    %10 = vector.shape_cast %0 : vector<1x16x256xf32> to vector<1x1x16x256xf32>
    tpu.vector_store %arg5[%c1, %c0_7, %c0_8, %c0_9], %10 {strides = array<i32>} : memref<2x18x16x256xf32, #tpu.memory_space<vmem>>, vector<1x1x16x256xf32>,
    %c1_10 = arith.constant 1 : index
    %c17_11 = arith.constant 17 : index
    %c0_12 = arith.constant 0 : index
    %c0_13 = arith.constant 0 : index
    %11 = vector.load %arg5[%c1_10, %c17_11, %c0_12, %c0_13] : memref<2x18x16x256xf32, #tpu.memory_space<vmem>>, vector<1x1x16x256xf32>
    %12 = vector.shape_cast %11 : vector<1x1x16x256xf32> to vector<1x16x256xf32>
    %13 = vector.shape_cast %0 : vector<1x16x256xf32> to vector<1x1x16x256xf32>
    tpu.vector_store %arg5[%c1_10, %c17_11, %c0_12, %c0_13], %13 {strides = array<i32>} : memref<2x18x16x256xf32, #tpu.memory_space<vmem>>, vector<1x1x16x256xf32>,
    %c0_14 = arith.constant 0 : index
    %c1_15 = arith.constant 1 : index
    %c0_16 = arith.constant 0 : index
    %c0_17 = arith.constant 0 : index
    %14 = vector.load %arg5[%c0_14, %c1_15, %c0_16, %c0_17] : memref<2x18x16x256xf32, #tpu.memory_space<vmem>>, vector<1x16x1x128xf32>
    %15 = vector.shape_cast %14 : vector<1x16x1x128xf32> to vector<16x1x128xf32>
    %16 = vector.shape_cast %1 : vector<16x1x128xf32> to vector<1x16x1x128xf32>
    tpu.vector_store %arg5[%c0_14, %c1_15, %c0_16, %c0_17], %16 {strides = array<i32>} : memref<2x18x16x256xf32, #tpu.memory_space<vmem>>, vector<1x16x1x128xf32>,
    %c1_18 = arith.constant 1 : index
    %c1_19 = arith.constant 1 : index
    %c15 = arith.constant 15 : index
    %c128 = arith.constant 128 : index
    %17 = vector.load %arg5[%c1_18, %c1_19, %c15, %c128] : memref<2x18x16x256xf32, #tpu.memory_space<vmem>>, vector<1x16x1x128xf32>
    %18 = vector.shape_cast %17 : vector<1x16x1x128xf32> to vector<16x1x128xf32>
    %19 = vector.shape_cast %1 : vector<16x1x128xf32> to vector<1x16x1x128xf32>
    tpu.vector_store %arg5[%c1_18, %c1_19, %c15, %c128], %19 {strides = array<i32>} : memref<2x18x16x256xf32, #tpu.memory_space<vmem>>, vector<1x16x1x128xf32>,
    %c0_20 = arith.constant 0 : index
    %c0_21 = arith.constant 0 : index
    %c0_22 = arith.constant 0 : index
    %c0_23 = arith.constant 0 : index
    %20 = vector.load %arg1[%c0_20, %c0_21, %c0_22, %c0_23] : memref<1x16x16x128xbf16, #tpu.memory_space<vmem>>, vector<1x16x16x128xbf16>
    %21 = vector.shape_cast %20 : vector<1x16x16x128xbf16> to vector<16x16x128xbf16>
    %22 = arith.extf %21 : vector<16x16x128xbf16> to vector<16x16x128xf32>
    %c0_24 = arith.constant 0 : index
    %c1_25 = arith.constant 1 : index
    %c0_26 = arith.constant 0 : index
    %c128_27 = arith.constant 128 : index
    %23 = vector.load %arg5[%c0_24, %c1_25, %c0_26, %c128_27] : memref<2x18x16x256xf32, #tpu.memory_space<vmem>>, vector<1x16x16x128xf32>
    %24 = vector.shape_cast %23 : vector<1x16x16x128xf32> to vector<16x16x128xf32>
    %25 = vector.shape_cast %22 : vector<16x16x128xf32> to vector<1x16x16x128xf32>
    tpu.vector_store %arg5[%c0_24, %c1_25, %c0_26, %c128_27], %25 {strides = array<i32>} : memref<2x18x16x256xf32, #tpu.memory_space<vmem>>, vector<1x16x16x128xf32>,
    %c1_28 = arith.constant 1 : index
    %c1_29 = arith.constant 1 : index
    %c0_30 = arith.constant 0 : index
    %c0_31 = arith.constant 0 : index
    %26 = vector.load %arg5[%c1_28, %c1_29, %c0_30, %c0_31] : memref<2x18x16x256xf32, #tpu.memory_space<vmem>>, vector<1x16x16x128xf32>
    %27 = vector.shape_cast %26 : vector<1x16x16x128xf32> to vector<16x16x128xf32>
    %28 = vector.shape_cast %22 : vector<16x16x128xf32> to vector<1x16x16x128xf32>
    tpu.vector_store %arg5[%c1_28, %c1_29, %c0_30, %c0_31], %28 {strides = array<i32>} : memref<2x18x16x256xf32, #tpu.memory_space<vmem>>, vector<1x16x16x128xf32>,
    %29 = vector.extract_strided_slice %22 {offsets = [0, 0, 0], sizes = [16, 15, 128], strides = [1, 1, 1]} : vector<16x16x128xf32> to vector<16x15x128xf32>
    %c0_32 = arith.constant 0 : index
    %c1_33 = arith.constant 1 : index
    %c1_34 = arith.constant 1 : index
    %c0_35 = arith.constant 0 : index
    %30 = vector.load %arg5[%c0_32, %c1_33, %c1_34, %c0_35] : memref<2x18x16x256xf32, #tpu.memory_space<vmem>>, vector<1x16x15x128xf32>
    %31 = vector.shape_cast %30 : vector<1x16x15x128xf32> to vector<16x15x128xf32>
    %32 = vector.shape_cast %29 : vector<16x15x128xf32> to vector<1x16x15x128xf32>
    tpu.vector_store %arg5[%c0_32, %c1_33, %c1_34, %c0_35], %32 {strides = array<i32>} : memref<2x18x16x256xf32, #tpu.memory_space<vmem>>, vector<1x16x15x128xf32>,
    %33 = vector.extract_strided_slice %22 {offsets = [0, 1, 0], sizes = [16, 15, 128], strides = [1, 1, 1]} : vector<16x16x128xf32> to vector<16x15x128xf32>
    %c1_36 = arith.constant 1 : index
    %c1_37 = arith.constant 1 : index
    %c0_38 = arith.constant 0 : index
    %c128_39 = arith.constant 128 : index
    %34 = vector.load %arg5[%c1_36, %c1_37, %c0_38, %c128_39] : memref<2x18x16x256xf32, #tpu.memory_space<vmem>>, vector<1x16x15x128xf32>
    %35 = vector.shape_cast %34 : vector<1x16x15x128xf32> to vector<16x15x128xf32>
    %36 = vector.shape_cast %33 : vector<16x15x128xf32> to vector<1x16x15x128xf32>
    tpu.vector_store %arg5[%c1_36, %c1_37, %c0_38, %c128_39], %36 {strides = array<i32>} : memref<2x18x16x256xf32, #tpu.memory_space<vmem>>, vector<1x16x15x128xf32>,
    %c0_40 = arith.constant 0 : index
    %c0_41 = arith.constant 0 : index
    %37 = vector.load %arg3[%c0_40, %c0_41] : memref<1x128xf32, #tpu.memory_space<vmem>>, vector<1x128xf32>
    %c0_42 = arith.constant 0 : index
    %c0_43 = arith.constant 0 : index
    %c0_44 = arith.constant 0 : index
    %c0_45 = arith.constant 0 : index
    %38 = vector.load %arg5[%c0_42, %c0_43, %c0_44, %c0_45] : memref<2x18x16x256xf32, #tpu.memory_space<vmem>>, vector<1x16x16x256xf32>
    %39 = vector.shape_cast %38 : vector<1x16x16x256xf32> to vector<16x16x256xf32>
    %40 = vector.shape_cast %39 : vector<16x16x256xf32> to vector<256x256xf32>
    %41 = arith.truncf %40 : vector<256x256xf32> to vector<256x256xbf16>
    %c0_46 = arith.constant 0 : index
    %c0_47 = arith.constant 0 : index
    %c0_48 = arith.constant 0 : index
    %c0_49 = arith.constant 0 : index
    %42 = vector.load %arg2[%c0_46, %c0_47, %c0_48, %c0_49] : memref<4x2x256x128xbf16, #tpu.memory_space<vmem>>, vector<1x1x256x128xbf16>
    %43 = vector.shape_cast %42 : vector<1x1x256x128xbf16> to vector<256x128xbf16>
    %cst_50 = arith.constant dense<0.000000e+00> : vector<256x128xf32>
    %44 = tpu.matmul %41, %43, %cst_50 {dimension_numbers = #tpu.dot_dimension_numbers<[1], [0], [0], [1], [0, 0, 1, 1], [], []>} : vector<256x256xbf16>, vector<256x128xbf16>, vector<256x128xf32> -> vector<256x128xf32>
    %c0_51 = arith.constant 0 : index
    %c1_52 = arith.constant 1 : index
    %c0_53 = arith.constant 0 : index
    %c0_54 = arith.constant 0 : index
    %45 = vector.load %arg5[%c0_51, %c1_52, %c0_53, %c0_54] : memref<2x18x16x256xf32, #tpu.memory_space<vmem>>, vector<1x16x16x256xf32>
    %46 = vector.shape_cast %45 : vector<1x16x16x256xf32> to vector<16x16x256xf32>
    %47 = vector.shape_cast %46 : vector<16x16x256xf32> to vector<256x256xf32>
    %48 = arith.truncf %47 : vector<256x256xf32> to vector<256x256xbf16>
    %c0_55 = arith.constant 0 : index
    %c1_56 = arith.constant 1 : index
    %c0_57 = arith.constant 0 : index
    %c0_58 = arith.constant 0 : index
    %49 = vector.load %arg2[%c0_55, %c1_56, %c0_57, %c0_58] : memref<4x2x256x128xbf16, #tpu.memory_space<vmem>>, vector<1x1x256x128xbf16>
    %50 = vector.shape_cast %49 : vector<1x1x256x128xbf16> to vector<256x128xbf16>
    %cst_59 = arith.constant dense<0.000000e+00> : vector<256x128xf32>
    %51 = tpu.matmul %48, %50, %cst_59 {dimension_numbers = #tpu.dot_dimension_numbers<[1], [0], [0], [1], [0, 0, 1, 1], [], []>} : vector<256x256xbf16>, vector<256x128xbf16>, vector<256x128xf32> -> vector<256x128xf32>
    %52 = arith.addf %44, %51 : vector<256x128xf32>
    %53 = vector.broadcast %37 : vector<1x128xf32> to vector<256x128xf32>
    %54 = arith.addf %52, %53 : vector<256x128xf32>
    %c0_60 = arith.constant 0 : index
    %c0_61 = arith.constant 0 : index
    %c0_62 = arith.constant 0 : index
    %c0_63 = arith.constant 0 : index
    %55 = vector.load %arg4[%c0_60, %c0_61, %c0_62, %c0_63] : memref<1x4x256x128xf32, #tpu.memory_space<vmem>>, vector<1x1x256x128xf32>
    %56 = vector.shape_cast %55 : vector<1x1x256x128xf32> to vector<256x128xf32>
    %57 = vector.shape_cast %54 : vector<256x128xf32> to vector<1x1x256x128xf32>
    tpu.vector_store %arg4[%c0_60, %c0_61, %c0_62, %c0_63], %57 {strides = array<i32>} : memref<1x4x256x128xf32, #tpu.memory_space<vmem>>, vector<1x1x256x128xf32>,
    %c1_64 = arith.constant 1 : index
    %c0_65 = arith.constant 0 : index
    %c0_66 = arith.constant 0 : index
    %c0_67 = arith.constant 0 : index
    %58 = vector.load %arg5[%c1_64, %c0_65, %c0_66, %c0_67] : memref<2x18x16x256xf32, #tpu.memory_space<vmem>>, vector<1x16x16x256xf32>
    %59 = vector.shape_cast %58 : vector<1x16x16x256xf32> to vector<16x16x256xf32>
    %60 = vector.shape_cast %59 : vector<16x16x256xf32> to vector<256x256xf32>
    %61 = arith.truncf %60 : vector<256x256xf32> to vector<256x256xbf16>
    %c1_68 = arith.constant 1 : index
    %c0_69 = arith.constant 0 : index
    %c0_70 = arith.constant 0 : index
    %c0_71 = arith.constant 0 : index
    %62 = vector.load %arg2[%c1_68, %c0_69, %c0_70, %c0_71] : memref<4x2x256x128xbf16, #tpu.memory_space<vmem>>, vector<1x1x256x128xbf16>
    %63 = vector.shape_cast %62 : vector<1x1x256x128xbf16> to vector<256x128xbf16>
    %cst_72 = arith.constant dense<0.000000e+00> : vector<256x128xf32>
    %64 = tpu.matmul %61, %63, %cst_72 {dimension_numbers = #tpu.dot_dimension_numbers<[1], [0], [0], [1], [0, 0, 1, 1], [], []>} : vector<256x256xbf16>, vector<256x128xbf16>, vector<256x128xf32> -> vector<256x128xf32>
    %c1_73 = arith.constant 1 : index
    %c1_74 = arith.constant 1 : index
    %c0_75 = arith.constant 0 : index
    %c0_76 = arith.constant 0 : index
    %65 = vector.load %arg5[%c1_73, %c1_74, %c0_75, %c0_76] : memref<2x18x16x256xf32, #tpu.memory_space<vmem>>, vector<1x16x16x256xf32>
    %66 = vector.shape_cast %65 : vector<1x16x16x256xf32> to vector<16x16x256xf32>
    %67 = vector.shape_cast %66 : vector<16x16x256xf32> to vector<256x256xf32>
    %68 = arith.truncf %67 : vector<256x256xf32> to vector<256x256xbf16>
    %c1_77 = arith.constant 1 : index
    %c1_78 = arith.constant 1 : index
    %c0_79 = arith.constant 0 : index
    %c0_80 = arith.constant 0 : index
    %69 = vector.load %arg2[%c1_77, %c1_78, %c0_79, %c0_80] : memref<4x2x256x128xbf16, #tpu.memory_space<vmem>>, vector<1x1x256x128xbf16>
    %70 = vector.shape_cast %69 : vector<1x1x256x128xbf16> to vector<256x128xbf16>
    %cst_81 = arith.constant dense<0.000000e+00> : vector<256x128xf32>
    %71 = tpu.matmul %68, %70, %cst_81 {dimension_numbers = #tpu.dot_dimension_numbers<[1], [0], [0], [1], [0, 0, 1, 1], [], []>} : vector<256x256xbf16>, vector<256x128xbf16>, vector<256x128xf32> -> vector<256x128xf32>
    %72 = arith.addf %64, %71 : vector<256x128xf32>
    %73 = vector.broadcast %37 : vector<1x128xf32> to vector<256x128xf32>
    %74 = arith.addf %72, %73 : vector<256x128xf32>
    %c0_82 = arith.constant 0 : index
    %c1_83 = arith.constant 1 : index
    %c0_84 = arith.constant 0 : index
    %c0_85 = arith.constant 0 : index
    %75 = vector.load %arg4[%c0_82, %c1_83, %c0_84, %c0_85] : memref<1x4x256x128xf32, #tpu.memory_space<vmem>>, vector<1x1x256x128xf32>
    %76 = vector.shape_cast %75 : vector<1x1x256x128xf32> to vector<256x128xf32>
    %77 = vector.shape_cast %74 : vector<256x128xf32> to vector<1x1x256x128xf32>
    tpu.vector_store %arg4[%c0_82, %c1_83, %c0_84, %c0_85], %77 {strides = array<i32>} : memref<1x4x256x128xf32, #tpu.memory_space<vmem>>, vector<1x1x256x128xf32>,
    %c0_86 = arith.constant 0 : index
    %c1_87 = arith.constant 1 : index
    %c0_88 = arith.constant 0 : index
    %c0_89 = arith.constant 0 : index
    %78 = vector.load %arg5[%c0_86, %c1_87, %c0_88, %c0_89] : memref<2x18x16x256xf32, #tpu.memory_space<vmem>>, vector<1x16x16x256xf32>
    %79 = vector.shape_cast %78 : vector<1x16x16x256xf32> to vector<16x16x256xf32>
    %80 = vector.shape_cast %79 : vector<16x16x256xf32> to vector<256x256xf32>
    %81 = arith.truncf %80 : vector<256x256xf32> to vector<256x256xbf16>
    %c2 = arith.constant 2 : index
    %c0_90 = arith.constant 0 : index
    %c0_91 = arith.constant 0 : index
    %c0_92 = arith.constant 0 : index
    %82 = vector.load %arg2[%c2, %c0_90, %c0_91, %c0_92] : memref<4x2x256x128xbf16, #tpu.memory_space<vmem>>, vector<1x1x256x128xbf16>
    %83 = vector.shape_cast %82 : vector<1x1x256x128xbf16> to vector<256x128xbf16>
    %cst_93 = arith.constant dense<0.000000e+00> : vector<256x128xf32>
    %84 = tpu.matmul %81, %83, %cst_93 {dimension_numbers = #tpu.dot_dimension_numbers<[1], [0], [0], [1], [0, 0, 1, 1], [], []>} : vector<256x256xbf16>, vector<256x128xbf16>, vector<256x128xf32> -> vector<256x128xf32>
    %c0_94 = arith.constant 0 : index
    %c2_95 = arith.constant 2 : index
    %c0_96 = arith.constant 0 : index
    %c0_97 = arith.constant 0 : index
    %85 = vector.load %arg5[%c0_94, %c2_95, %c0_96, %c0_97] : memref<2x18x16x256xf32, #tpu.memory_space<vmem>>, vector<1x16x16x256xf32>
    %86 = vector.shape_cast %85 : vector<1x16x16x256xf32> to vector<16x16x256xf32>
    %87 = vector.shape_cast %86 : vector<16x16x256xf32> to vector<256x256xf32>
    %88 = arith.truncf %87 : vector<256x256xf32> to vector<256x256xbf16>
    %c2_98 = arith.constant 2 : index
    %c1_99 = arith.constant 1 : index
    %c0_100 = arith.constant 0 : index
    %c0_101 = arith.constant 0 : index
    %89 = vector.load %arg2[%c2_98, %c1_99, %c0_100, %c0_101] : memref<4x2x256x128xbf16, #tpu.memory_space<vmem>>, vector<1x1x256x128xbf16>
    %90 = vector.shape_cast %89 : vector<1x1x256x128xbf16> to vector<256x128xbf16>
    %cst_102 = arith.constant dense<0.000000e+00> : vector<256x128xf32>
    %91 = tpu.matmul %88, %90, %cst_102 {dimension_numbers = #tpu.dot_dimension_numbers<[1], [0], [0], [1], [0, 0, 1, 1], [], []>} : vector<256x256xbf16>, vector<256x128xbf16>, vector<256x128xf32> -> vector<256x128xf32>
    %92 = arith.addf %84, %91 : vector<256x128xf32>
    %93 = vector.broadcast %37 : vector<1x128xf32> to vector<256x128xf32>
    %94 = arith.addf %92, %93 : vector<256x128xf32>
    %c0_103 = arith.constant 0 : index
    %c2_104 = arith.constant 2 : index
    %c0_105 = arith.constant 0 : index
    %c0_106 = arith.constant 0 : index
    %95 = vector.load %arg4[%c0_103, %c2_104, %c0_105, %c0_106] : memref<1x4x256x128xf32, #tpu.memory_space<vmem>>, vector<1x1x256x128xf32>
    %96 = vector.shape_cast %95 : vector<1x1x256x128xf32> to vector<256x128xf32>
    %97 = vector.shape_cast %94 : vector<256x128xf32> to vector<1x1x256x128xf32>
    tpu.vector_store %arg4[%c0_103, %c2_104, %c0_105, %c0_106], %97 {strides = array<i32>} : memref<1x4x256x128xf32, #tpu.memory_space<vmem>>, vector<1x1x256x128xf32>,
    %c1_107 = arith.constant 1 : index
    %c1_108 = arith.constant 1 : index
    %c0_109 = arith.constant 0 : index
    %c0_110 = arith.constant 0 : index
    %98 = vector.load %arg5[%c1_107, %c1_108, %c0_109, %c0_110] : memref<2x18x16x256xf32, #tpu.memory_space<vmem>>, vector<1x16x16x256xf32>
    %99 = vector.shape_cast %98 : vector<1x16x16x256xf32> to vector<16x16x256xf32>
    %100 = vector.shape_cast %99 : vector<16x16x256xf32> to vector<256x256xf32>
    %101 = arith.truncf %100 : vector<256x256xf32> to vector<256x256xbf16>
    %c3 = arith.constant 3 : index
    %c0_111 = arith.constant 0 : index
    %c0_112 = arith.constant 0 : index
    %c0_113 = arith.constant 0 : index
    %102 = vector.load %arg2[%c3, %c0_111, %c0_112, %c0_113] : memref<4x2x256x128xbf16, #tpu.memory_space<vmem>>, vector<1x1x256x128xbf16>
    %103 = vector.shape_cast %102 : vector<1x1x256x128xbf16> to vector<256x128xbf16>
    %cst_114 = arith.constant dense<0.000000e+00> : vector<256x128xf32>
    %104 = tpu.matmul %101, %103, %cst_114 {dimension_numbers = #tpu.dot_dimension_numbers<[1], [0], [0], [1], [0, 0, 1, 1], [], []>} : vector<256x256xbf16>, vector<256x128xbf16>, vector<256x128xf32> -> vector<256x128xf32>
    %c1_115 = arith.constant 1 : index
    %c2_116 = arith.constant 2 : index
    %c0_117 = arith.constant 0 : index
    %c0_118 = arith.constant 0 : index
    %105 = vector.load %arg5[%c1_115, %c2_116, %c0_117, %c0_118] : memref<2x18x16x256xf32, #tpu.memory_space<vmem>>, vector<1x16x16x256xf32>
    %106 = vector.shape_cast %105 : vector<1x16x16x256xf32> to vector<16x16x256xf32>
    %107 = vector.shape_cast %106 : vector<16x16x256xf32> to vector<256x256xf32>
    %108 = arith.truncf %107 : vector<256x256xf32> to vector<256x256xbf16>
    %c3_119 = arith.constant 3 : index
    %c1_120 = arith.constant 1 : index
    %c0_121 = arith.constant 0 : index
    %c0_122 = arith.constant 0 : index
    %109 = vector.load %arg2[%c3_119, %c1_120, %c0_121, %c0_122] : memref<4x2x256x128xbf16, #tpu.memory_space<vmem>>, vector<1x1x256x128xbf16>
    %110 = vector.shape_cast %109 : vector<1x1x256x128xbf16> to vector<256x128xbf16>
    %cst_123 = arith.constant dense<0.000000e+00> : vector<256x128xf32>
    %111 = tpu.matmul %108, %110, %cst_123 {dimension_numbers = #tpu.dot_dimension_numbers<[1], [0], [0], [1], [0, 0, 1, 1], [], []>} : vector<256x256xbf16>, vector<256x128xbf16>, vector<256x128xf32> -> vector<256x128xf32>
    %112 = arith.addf %104, %111 : vector<256x128xf32>
    %113 = vector.broadcast %37 : vector<1x128xf32> to vector<256x128xf32>
    %114 = arith.addf %112, %113 : vector<256x128xf32>
    %c0_124 = arith.constant 0 : index
    %c3_125 = arith.constant 3 : index
    %c0_126 = arith.constant 0 : index
    %c0_127 = arith.constant 0 : index
    %115 = vector.load %arg4[%c0_124, %c3_125, %c0_126, %c0_127] : memref<1x4x256x128xf32, #tpu.memory_space<vmem>>, vector<1x1x256x128xf32>
    %116 = vector.shape_cast %115 : vector<1x1x256x128xf32> to vector<256x128xf32>
    %117 = vector.shape_cast %114 : vector<256x128xf32> to vector<1x1x256x128xf32>
    tpu.vector_store %arg4[%c0_124, %c3_125, %c0_126, %c0_127], %117 {strides = array<i32>} : memref<1x4x256x128xf32, #tpu.memory_space<vmem>>, vector<1x1x256x128xf32>,
    return
  }
  func.func @transform_0(%arg0: i32) -> (i32, i32, i32, i32) {
    %c0_i32 = arith.constant 0 : i32
    %c0_i32_0 = arith.constant 0 : i32
    %c0_i32_1 = arith.constant 0 : i32
    %c0_i32_2 = arith.constant 0 : i32
    return %arg0, %c0_i32, %c0_i32_0, %c0_i32_1 : i32, i32, i32, i32
  }
  func.func @transform_1(%arg0: i32) -> (i32, i32, i32, i32) {
    %c0_i32 = arith.constant 0 : i32
    %c0_i32_0 = arith.constant 0 : i32
    %c0_i32_1 = arith.constant 0 : i32
    %c0_i32_2 = arith.constant 0 : i32
    %c0_i32_3 = arith.constant 0 : i32
    return %c0_i32, %c0_i32_0, %c0_i32_1, %c0_i32_2 : i32, i32, i32, i32
  }
  func.func @transform_2(%arg0: i32) -> (i32, i32) {
    %c0_i32 = arith.constant 0 : i32
    %c0_i32_0 = arith.constant 0 : i32
    %c0_i32_1 = arith.constant 0 : i32
    return %c0_i32, %c0_i32_0 : i32, i32
  }
  func.func @transform_3(%arg0: i32) -> (i32, i32, i32, i32) {
    %c0_i32 = arith.constant 0 : i32
    %c0_i32_0 = arith.constant 0 : i32
    %c0_i32_1 = arith.constant 0 : i32
    %c0_i32_2 = arith.constant 0 : i32
    return %arg0, %c0_i32, %c0_i32_0, %c0_i32_1 : i32, i32, i32, i32
  }
}

</mosaic_0001>

<llo_original>
// kernel: tpu_custom_call.1
$region0: #{tpu_custom_call.1}
  #allocation0 [shape = 'u32[]', space=smem, size = 0x4, offset = 0x4, fixed_abs, tag = 'smem constant byte address 0x4 - core index']
  #allocation1 [shape = 'u32[144,128]{1,0:T(1,128)}', space=vmem, size = 0x12000, scoped, tag = 'internal scratch']
  #allocation2 [shape = 'f32[2,18,16,256]{3,2,1,0:T(8,128)}', space=vmem, size = 0x90000, scoped, tag = 'scratch operand']
  %s0 = inlined_call_operand.hbm [shape: bf16[2,16,16,128], index: 0, kind: input, shape index: {}]
  %s1 = inlined_call_operand.hbm [shape: bf16[4,2,256,128], index: 1, kind: input, shape index: {}]
  %s2 = inlined_call_operand.vmem [shape: f32[1,128], index: 2, kind: input, shape index: {}]
  %s3 = inlined_call_operand.hbm [shape: f32[2,4,256,128], index: 3, kind: output, shape index: {}]
  %s4 = sld [smem:[#allocation0]]
  $region53: #{tpu_custom_call.1} parent=0
    _
  %s6 = ssub.s32 1, %s4
  %s7 = scalar_select 0, %s6, %s4
  $region1: #{tpu_custom_call.1} parent=0
    #allocation3 [shape = 'u8[131072]{0}', space=vmem, size = 0x20000, scoped, tag = 'input window, operand 0']
    #allocation4 [shape = 's32[2]{0}', space=sflag, size = 0x8, scoped, tag = 'scoped memory for tpu_custom_call.1']
    #allocation5 [shape = 's32[2]{0}', space=sflag, size = 0x8, scoped, tag = 'scoped memory for tpu_custom_call.1']
    #allocation6 [shape = 'u8[524288]{0}', space=vmem, size = 0x80000, scoped, tag = 'input window, operand 1, single buffered']
    #allocation7 [shape = 's32[1]{0}', space=sflag, size = 0x4, scoped, tag = 'scoped memory for tpu_custom_call.1']
    #allocation8 [shape = 'u8[1048576]{0}', space=vmem, size = 0x100000, scoped, tag = 'output window, operand 0']
    %8 = vsyncpa [#allocation4], 0
    %s9 = scalar_lea.sflag [#allocation4], 1
    %10 = vsyncpa %s9, 0
    %11 = vsyncpa [#allocation7], 0
    %12 = vsyncpa [#allocation5], 0
    %s13 = scalar_lea.sflag [#allocation5], 1
    %14 = vsyncpa %s13, 0
    loop: start=0, step=1, limit=4
    $region2: #{tpu_custom_call.1} parent=1 // loop_pre_header
      _
    $region3: #{tpu_custom_call.1} parent=1 // loop_header
      %s16 = sphi 0, %s20
      %p17 = scmp.ge.s32.totalorder %s16, 4
      %s26 = sphi 0, %s28
      %s29 = sphi 0, %s26
      %s30 = sphi 0, %s29
      %s46 = sphi 0, %s30
      %s50 = sphi 0, %s50
      %s52 = sphi 0, %s50
      %s53 = sphi 0, %s52
      %s67 = sphi 0, %s53
      %s71 = sphi 0, %s71
      %s73 = sphi 0, %s71
      %s74 = sphi 0, %s73
      %s88 = sphi 0, %s74
      %s94 = sphi 0, %s96
      %s97 = sphi 0, %s94
      %s98 = sphi 0, %s97
      %s114 = sphi 0, %s98
    $region4: #{tpu_custom_call.1} parent=1 // loop_header_branch
      %19 = sbr.rel (%p17) target = $region8
    $region5: #{tpu_custom_call.1} parent=1 // loop_body
      %s21 = ssub.s32 %s16, 1
      %s22 = ssub.s32 %s16, 2
      %s23 = sadd.s32 %s16, 1
      %s24 = ssub.s32 %s16, %s23
      %p25 = scmp.eq.s32.totalorder %s24, 0
      %s27 = sadd.s32 %s26, 1
      %s28 = scalar_select %p25, %s26, %s27
      %p31 = pneg %p25
      %p32 = scmp.eq.s32.totalorder %s16, 1
      %p33 = por %p31, %p32
      %p34 = scmp.ne.s32.totalorder %s26, %s29
      %p35 = scmp.eq.s32.totalorder %s16, 0
      %p36 = por %p34, %p35
      %p37 = scmp.ne.s32.totalorder %s26, %s29
      %p38 = scmp.eq.s32.totalorder %s21, 1
      %p39 = por %p37, %p38
      %p40 = scmp.ne.s32.totalorder %s29, %s30
      %p41 = scmp.eq.s32.totalorder %s21, 0
      %p42 = por %p40, %p41
      %p43 = scmp.ne.s32.totalorder %s29, %s30
      %p44 = scmp.eq.s32.totalorder %s22, 1
      %p45 = por %p43, %p44
      %p47 = scmp.ne.s32.totalorder %s30, %s46
      %p48 = scmp.eq.s32.totalorder %s22, 0
      %p49 = por %p47, %p48
      %s51 = sadd.s32 %s50, 1
      %p54 = scmp.eq.s32.totalorder %s16, 1
      %p55 = scmp.ne.s32.totalorder %s50, %s52
      %p56 = scmp.eq.s32.totalorder %s16, 0
      %p57 = por %p55, %p56
      %p58 = scmp.ne.s32.totalorder %s50, %s52
      %p59 = scmp.eq.s32.totalorder %s21, 1
      %p60 = por %p58, %p59
      %p61 = scmp.ne.s32.totalorder %s52, %s53
      %p62 = scmp.eq.s32.totalorder %s21, 0
      %p63 = por %p61, %p62
      %p64 = scmp.ne.s32.totalorder %s52, %s53
      %p65 = scmp.eq.s32.totalorder %s22, 1
      %p66 = por %p64, %p65
      %p68 = scmp.ne.s32.totalorder %s53, %s67
      %p69 = scmp.eq.s32.totalorder %s22, 0
      %p70 = por %p68, %p69
      %s72 = sadd.s32 %s71, 1
      %p75 = scmp.eq.s32.totalorder %s16, 1
      %p76 = scmp.ne.s32.totalorder %s71, %s73
      %p77 = scmp.eq.s32.totalorder %s16, 0
      %p78 = por %p76, %p77
      %p79 = scmp.ne.s32.totalorder %s71, %s73
      %p80 = scmp.eq.s32.totalorder %s21, 1
      %p81 = por %p79, %p80
      %p82 = scmp.ne.s32.totalorder %s73, %s74
      %p83 = scmp.eq.s32.totalorder %s21, 0
      %p84 = por %p82, %p83
      %p85 = scmp.ne.s32.totalorder %s73, %s74
      %p86 = scmp.eq.s32.totalorder %s22, 1
      %p87 = por %p85, %p86
      %p89 = scmp.ne.s32.totalorder %s74, %s88
      %p90 = scmp.eq.s32.totalorder %s22, 0
      %p91 = por %p89, %p90
      %s92 = ssub.s32 %s16, %s23
      %p93 = scmp.eq.s32.totalorder %s92, 0
      %s95 = sadd.s32 %s94, 1
      %s96 = scalar_select %p93, %s94, %s95
      %p99 = pneg %p93
      %p100 = scmp.eq.s32.totalorder %s16, 1
      %p101 = por %p99, %p100
      %p102 = scmp.ne.s32.totalorder %s94, %s97
      %p103 = scmp.eq.s32.totalorder %s16, 0
      %p104 = por %p102, %p103
      %p105 = scmp.ne.s32.totalorder %s94, %s97
      %p106 = scmp.eq.s32.totalorder %s21, 1
      %p107 = por %p105, %p106
      %p108 = scmp.ne.s32.totalorder %s97, %s98
      %p109 = scmp.eq.s32.totalorder %s21, 0
      %p110 = por %p108, %p109
      %p111 = scmp.ne.s32.totalorder %s97, %s98
      %p112 = scmp.eq.s32.totalorder %s22, 1
      %p113 = por %p111, %p112
      %p115 = scmp.ne.s32.totalorder %s98, %s114
      %p116 = scmp.eq.s32.totalorder %s22, 0
      %p117 = por %p115, %p116
      %p118 = scmp.le.s32.totalorder 1, %s16
      %p119 = scmp.lt.s32.totalorder %s16, 3
      %p120 = pnand %p118, %p119
      %p121 = pneg %p120
      // Predicated region
      $region9: #{tpu_custom_call.1} parent=5 // pred_check
        _
      $region10: #{tpu_custom_call.1} parent=5 // pred_check_branch
        %123 = sbr.rel (%p120) target = $region12
      $region11: #{tpu_custom_call.1} parent=5 // pred_region
        %s124 = ssub.s32 %s16, 1
        // Predicated region
        $region13: #{tpu_custom_call.1} parent=11 // pred_check
          %p125 = pneg %p63
        $region14: #{tpu_custom_call.1} parent=11 // pred_check_branch
          %127 = sbr.rel (%p125) target = $region16
        $region15: #{tpu_custom_call.1} parent=11 // pred_region
          %s129 = ssub.s32 16384, 16384
          %130 = vsyncadd [#allocation7], %s129
          %s131 = sshll.u32 [#allocation6], 4
          %s132 = int_to_ptr.vmem [resolvable:$true] %s131
          %137 = dma.hbm_to_vmem [thread:$0]  %s1, 16384, %s132, [#allocation7], 64, 64, 4
        $region16: #{tpu_custom_call.1} parent=11 // pred_fallthru
          _
        // Predicated region
        $region17: #{tpu_custom_call.1} parent=11 // pred_check
          %p138 = pneg %p84
        $region18: #{tpu_custom_call.1} parent=11 // pred_check_branch
          %140 = sbr.rel (%p138) target = $region20
        $region19: #{tpu_custom_call.1} parent=11 // pred_region
          _
        $region20: #{tpu_custom_call.1} parent=11 // pred_fallthru
          _
      $region12: #{tpu_custom_call.1} parent=5 // pred_fallthru
        _
      %p141 = scmp.lt.s32.totalorder %s16, 2
      // Predicated region
      $region21: #{tpu_custom_call.1} parent=5 // pred_check
        %p142 = pneg %p141
      $region22: #{tpu_custom_call.1} parent=5 // pred_check_branch
        %144 = sbr.rel (%p142) target = $region24
      $region23: #{tpu_custom_call.1} parent=5 // pred_region
        // Predicated region
        $region25: #{tpu_custom_call.1} parent=23 // pred_check
          %p145 = pneg %p36
        $region26: #{tpu_custom_call.1} parent=23 // pred_check_branch
          %147 = sbr.rel (%p145) target = $region28
        $region27: #{tpu_custom_call.1} parent=23 // pred_region
          %s148 = sand.u32 %s26, 1
          %s149 = scalar_lea.sflag [#allocation4], %s148
          %s150 = sand.u32 %s26, 1
          %s151 = smul.addr %s150, 128
          %s152 = scalar_lea.vmem [#allocation3], %s151
          %s154 = ssub.s32 2048, 2048
          %155 = vsyncadd %s149, %s154
          %s156 = smul.addr %s16, 32
          %s157 = smul.addr %s156, 64
          %s158 = scalar_lea.hbm %s0, %s157
          %s159 = sshll.u32 %s152, 4
          %s160 = int_to_ptr.vmem [resolvable:$true] %s159
          %165 = dma.hbm_to_vmem [thread:$0]  %s158, 2048, %s160, %s149, 64, 64, 4
        $region28: #{tpu_custom_call.1} parent=23 // pred_fallthru
          _
      $region24: #{tpu_custom_call.1} parent=5 // pred_fallthru
        _
      %p166 = scmp.le.s32.totalorder 1, %s16
      %p167 = scmp.lt.s32.totalorder %s16, 3
      %p168 = pnand %p166, %p167
      %p169 = pneg %p168
      // Predicated region
      $region29: #{tpu_custom_call.1} parent=5 // pred_check
        _
      $region30: #{tpu_custom_call.1} parent=5 // pred_check_branch
        %171 = sbr.rel (%p168) target = $region32
      $region31: #{tpu_custom_call.1} parent=5 // pred_region
        %s172 = ssub.s32 %s16, 1
        %s173 = sand.u32 %s29, 1
        %s174 = scalar_lea.sflag [#allocation4], %s173
        %s175 = sand.u32 %s29, 1
        %s176 = smul.addr %s175, 128
        %s177 = scalar_lea.vmem [#allocation3], %s176
        // Predicated region
        $region33: #{tpu_custom_call.1} parent=31 // pred_check
          %p178 = pneg %p42
        $region34: #{tpu_custom_call.1} parent=31 // pred_check_branch
          %180 = sbr.rel (%p178) target = $region36
        $region35: #{tpu_custom_call.1} parent=31 // pred_region
          %181 = dma.done %s174, 2048
        $region36: #{tpu_custom_call.1} parent=31 // pred_fallthru
          _
        // Predicated region
        $region37: #{tpu_custom_call.1} parent=31 // pred_check
          %p182 = pneg %p63
        $region38: #{tpu_custom_call.1} parent=31 // pred_check_branch
          %184 = sbr.rel (%p182) target = $region40
        $region39: #{tpu_custom_call.1} parent=31 // pred_region
          %185 = dma.done [#allocation7], 16384
        $region40: #{tpu_custom_call.1} parent=31 // pred_fallthru
          _
        %s186 = sand.u32 %s29, 1
        %s187 = scalar_lea.sflag [#allocation4], %s186
        %s188 = sand.u32 %s29, 1
        %s189 = smul.addr %s188, 128
        %s190 = scalar_lea.vmem [#allocation3], %s189
        %p191 = pneg %p42
        %p192 = pneg %p39
        %p193 = pneg %p63
        %p194 = pneg %p60
        %p195 = pneg %p84
        %p196 = pneg %p81
        %p197 = pneg %p110
        %p198 = pneg %p107
        %s199 = sand.u32 %s97, 1
        %s200 = scalar_lea.sflag [#allocation5], %s199
        %s201 = sand.u32 %s97, 1
        %s202 = smul.addr %s201, 1024
        %s203 = scalar_lea.vmem [#allocation8], %s202
        %205 = vst [vmem:[#allocation2] sm:$0xff] 0.0
        %206 = vst [vmem:[#allocation2 + $0x8] sm:$0xff] 0.0
        %207 = vst [vmem:[#allocation2 + $0x10] sm:$0xff] 0.0
        %208 = vst [vmem:[#allocation2 + $0x18] sm:$0xff] 0.0
        %s209 = scalar_lea.vmem [#allocation2], 544
        %210 = vst [vmem:[%s209] sm:$0xff] 0.0
        %211 = vst [vmem:[%s209 + $0x8] sm:$0xff] 0.0
        %212 = vst [vmem:[%s209 + $0x10] sm:$0xff] 0.0
        %213 = vst [vmem:[%s209 + $0x18] sm:$0xff] 0.0
        %s214 = scalar_lea.vmem [#allocation2], 576
        %215 = vst [vmem:[%s214] sm:$0xff] 0.0
        %216 = vst [vmem:[%s214 + $0x8] sm:$0xff] 0.0
        %217 = vst [vmem:[%s214 + $0x10] sm:$0xff] 0.0
        %218 = vst [vmem:[%s214 + $0x18] sm:$0xff] 0.0
        %s219 = scalar_lea.vmem [#allocation2], 1120
        %220 = vst [vmem:[%s219] sm:$0xff] 0.0
        %221 = vst [vmem:[%s219 + $0x8] sm:$0xff] 0.0
        %222 = vst [vmem:[%s219 + $0x10] sm:$0xff] 0.0
        %223 = vst [vmem:[%s219 + $0x18] sm:$0xff] 0.0
        %s224 = scalar_lea.vmem [#allocation2], 32
        %225 = vst [vmem:[%s224] sm:$0x1] 0.0
        %226 = vst [vmem:[%s224 + $0x20] sm:$0x1] 0.0
        %227 = vst [vmem:[%s224 + $0x40] sm:$0x1] 0.0
        %228 = vst [vmem:[%s224 + $0x60] sm:$0x1] 0.0
        %229 = vst [vmem:[%s224 + $0x80] sm:$0x1] 0.0
        %230 = vst [vmem:[%s224 + $0xa0] sm:$0x1] 0.0
        %231 = vst [vmem:[%s224 + $0xc0] sm:$0x1] 0.0
        %232 = vst [vmem:[%s224 + $0xe0] sm:$0x1] 0.0
        %233 = vst [vmem:[%s224 + $0x100] sm:$0x1] 0.0
        %234 = vst [vmem:[%s224 + $0x120] sm:$0x1] 0.0
        %235 = vst [vmem:[%s224 + $0x140] sm:$0x1] 0.0
        %236 = vst [vmem:[%s224 + $0x160] sm:$0x1] 0.0
        %237 = vst [vmem:[%s224 + $0x180] sm:$0x1] 0.0
        %238 = vst [vmem:[%s224 + $0x1a0] sm:$0x1] 0.0
        %239 = vst [vmem:[%s224 + $0x1c0] sm:$0x1] 0.0
        %240 = vst [vmem:[%s224 + $0x1e0] sm:$0x1] 0.0
        %s241 = scalar_lea.vmem [#allocation2], 608
        %242 = vst [vmem:[%s241 + $0x1f] sm:$0x1] 0.0
        %243 = vst [vmem:[%s241 + $0x3f] sm:$0x1] 0.0
        %244 = vst [vmem:[%s241 + $0x5f] sm:$0x1] 0.0
        %245 = vst [vmem:[%s241 + $0x7f] sm:$0x1] 0.0
        %246 = vst [vmem:[%s241 + $0x9f] sm:$0x1] 0.0
        %247 = vst [vmem:[%s241 + $0xbf] sm:$0x1] 0.0
        %248 = vst [vmem:[%s241 + $0xdf] sm:$0x1] 0.0
        %249 = vst [vmem:[%s241 + $0xff] sm:$0x1] 0.0
        %250 = vst [vmem:[%s241 + $0x11f] sm:$0x1] 0.0
        %251 = vst [vmem:[%s241 + $0x13f] sm:$0x1] 0.0
        %252 = vst [vmem:[%s241 + $0x15f] sm:$0x1] 0.0
        %253 = vst [vmem:[%s241 + $0x17f] sm:$0x1] 0.0
        %254 = vst [vmem:[%s241 + $0x19f] sm:$0x1] 0.0
        %255 = vst [vmem:[%s241 + $0x1bf] sm:$0x1] 0.0
        %256 = vst [vmem:[%s241 + $0x1df] sm:$0x1] 0.0
        %257 = vst [vmem:[%s241 + $0x1ff] sm:$0x1] 0.0
        %v258 = vld [vmem:[%s177] sm:$0xf]
        %v259 = vld [vmem:[%s177 + $0x4] sm:$0xf]
        %v260 = vld [vmem:[%s177 + $0x8] sm:$0xf]
        %v261 = vld [vmem:[%s177 + $0xc] sm:$0xf]
        %v262 = vld [vmem:[%s177 + $0x10] sm:$0xf]
        %v263 = vld [vmem:[%s177 + $0x14] sm:$0xf]
        %v264 = vld [vmem:[%s177 + $0x18] sm:$0xf]
        %v265 = vld [vmem:[%s177 + $0x1c] sm:$0xf]
        %v266 = vld [vmem:[%s177 + $0x20] sm:$0xf]
        %v267 = vld [vmem:[%s177 + $0x24] sm:$0xf]
        %v268 = vld [vmem:[%s177 + $0x28] sm:$0xf]
        %v269 = vld [vmem:[%s177 + $0x2c] sm:$0xf]
        %v270 = vld [vmem:[%s177 + $0x30] sm:$0xf]
        %v271 = vld [vmem:[%s177 + $0x34] sm:$0xf]
        %v272 = vld [vmem:[%s177 + $0x38] sm:$0xf]
        %v273 = vld [vmem:[%s177 + $0x3c] sm:$0xf]
        %v274 = vld [vmem:[%s177 + $0x40] sm:$0xf]
        %v275 = vld [vmem:[%s177 + $0x44] sm:$0xf]
        %v276 = vld [vmem:[%s177 + $0x48] sm:$0xf]
        %v277 = vld [vmem:[%s177 + $0x4c] sm:$0xf]
        %v278 = vld [vmem:[%s177 + $0x50] sm:$0xf]
        %v279 = vld [vmem:[%s177 + $0x54] sm:$0xf]
        %v280 = vld [vmem:[%s177 + $0x58] sm:$0xf]
        %v281 = vld [vmem:[%s177 + $0x5c] sm:$0xf]
        %v282 = vld [vmem:[%s177 + $0x60] sm:$0xf]
        %v283 = vld [vmem:[%s177 + $0x64] sm:$0xf]
        %v284 = vld [vmem:[%s177 + $0x68] sm:$0xf]
        %v285 = vld [vmem:[%s177 + $0x6c] sm:$0xf]
        %v286 = vld [vmem:[%s177 + $0x70] sm:$0xf]
        %v287 = vld [vmem:[%s177 + $0x74] sm:$0xf]
        %v288 = vld [vmem:[%s177 + $0x78] sm:$0xf]
        %v289 = vld [vmem:[%s177 + $0x7c] sm:$0xf]
        %v290 = vunpack.c.l.bf16 %v258
        %v291 = vunpack.c.l.bf16 %v259
        %v292 = vunpack.c.l.bf16 %v260
        %v293 = vunpack.c.l.bf16 %v261
        %v294 = vunpack.c.l.bf16 %v262
        %v295 = vunpack.c.l.bf16 %v263
        %v296 = vunpack.c.l.bf16 %v264
        %v297 = vunpack.c.l.bf16 %v265
        %v298 = vunpack.c.l.bf16 %v266
        %v299 = vunpack.c.l.bf16 %v267
        %v300 = vunpack.c.l.bf16 %v268
        %v301 = vunpack.c.l.bf16 %v269
        %v302 = vunpack.c.l.bf16 %v270
        %v303 = vunpack.c.l.bf16 %v271
        %v304 = vunpack.c.l.bf16 %v272
        %v305 = vunpack.c.l.bf16 %v273
        %v306 = vunpack.c.l.bf16 %v274
        %v307 = vunpack.c.l.bf16 %v275
        %v308 = vunpack.c.l.bf16 %v276
        %v309 = vunpack.c.l.bf16 %v277
        %v310 = vunpack.c.l.bf16 %v278
        %v311 = vunpack.c.l.bf16 %v279
        %v312 = vunpack.c.l.bf16 %v280
        %v313 = vunpack.c.l.bf16 %v281
        %v314 = vunpack.c.l.bf16 %v282
        %v315 = vunpack.c.l.bf16 %v283
        %v316 = vunpack.c.l.bf16 %v284
        %v317 = vunpack.c.l.bf16 %v285
        %v318 = vunpack.c.l.bf16 %v286
        %v319 = vunpack.c.l.bf16 %v287
        %v320 = vunpack.c.l.bf16 %v288
        %v321 = vunpack.c.l.bf16 %v289
        %322 = vst [vmem:[%s224 + $0x8] sm:$0xff] %v290
        %323 = vst [vmem:[%s224 + $0x18] sm:$0xff] %v291
        %324 = vst [vmem:[%s224 + $0x28] sm:$0xff] %v292
        %325 = vst [vmem:[%s224 + $0x38] sm:$0xff] %v293
        %326 = vst [vmem:[%s224 + $0x48] sm:$0xff] %v294
        %327 = vst [vmem:[%s224 + $0x58] sm:$0xff] %v295
        %328 = vst [vmem:[%s224 + $0x68] sm:$0xff] %v296
        %329 = vst [vmem:[%s224 + $0x78] sm:$0xff] %v297
        %330 = vst [vmem:[%s224 + $0x88] sm:$0xff] %v298
        %331 = vst [vmem:[%s224 + $0x98] sm:$0xff] %v299
        %332 = vst [vmem:[%s224 + $0xa8] sm:$0xff] %v300
        %333 = vst [vmem:[%s224 + $0xb8] sm:$0xff] %v301
        %334 = vst [vmem:[%s224 + $0xc8] sm:$0xff] %v302
        %335 = vst [vmem:[%s224 + $0xd8] sm:$0xff] %v303
        %336 = vst [vmem:[%s224 + $0xe8] sm:$0xff] %v304
        %337 = vst [vmem:[%s224 + $0xf8] sm:$0xff] %v305
        %338 = vst [vmem:[%s224 + $0x108] sm:$0xff] %v306
        %339 = vst [vmem:[%s224 + $0x118] sm:$0xff] %v307
        %340 = vst [vmem:[%s224 + $0x128] sm:$0xff] %v308
        %341 = vst [vmem:[%s224 + $0x138] sm:$0xff] %v309
        %342 = vst [vmem:[%s224 + $0x148] sm:$0xff] %v310
        %343 = vst [vmem:[%s224 + $0x158] sm:$0xff] %v311
        %344 = vst [vmem:[%s224 + $0x168] sm:$0xff] %v312
        %345 = vst [vmem:[%s224 + $0x178] sm:$0xff] %v313
        %346 = vst [vmem:[%s224 + $0x188] sm:$0xff] %v314
        %347 = vst [vmem:[%s224 + $0x198] sm:$0xff] %v315
        %348 = vst [vmem:[%s224 + $0x1a8] sm:$0xff] %v316
        %349 = vst [vmem:[%s224 + $0x1b8] sm:$0xff] %v317
        %350 = vst [vmem:[%s224 + $0x1c8] sm:$0xff] %v318
        %351 = vst [vmem:[%s224 + $0x1d8] sm:$0xff] %v319
        %352 = vst [vmem:[%s224 + $0x1e8] sm:$0xff] %v320
        %353 = vst [vmem:[%s224 + $0x1f8] sm:$0xff] %v321
        %354 = vst [vmem:[%s241] sm:$0xff] %v290
        %355 = vst [vmem:[%s241 + $0x10] sm:$0xff] %v291
        %356 = vst [vmem:[%s241 + $0x20] sm:$0xff] %v292
        %357 = vst [vmem:[%s241 + $0x30] sm:$0xff] %v293
        %358 = vst [vmem:[%s241 + $0x40] sm:$0xff] %v294
        %359 = vst [vmem:[%s241 + $0x50] sm:$0xff] %v295
        %360 = vst [vmem:[%s241 + $0x60] sm:$0xff] %v296
        %361 = vst [vmem:[%s241 + $0x70] sm:$0xff] %v297
        %362 = vst [vmem:[%s241 + $0x80] sm:$0xff] %v298
        %363 = vst [vmem:[%s241 + $0x90] sm:$0xff] %v299
        %364 = vst [vmem:[%s241 + $0xa0] sm:$0xff] %v300
        %365 = vst [vmem:[%s241 + $0xb0] sm:$0xff] %v301
        %366 = vst [vmem:[%s241 + $0xc0] sm:$0xff] %v302
        %367 = vst [vmem:[%s241 + $0xd0] sm:$0xff] %v303
        %368 = vst [vmem:[%s241 + $0xe0] sm:$0xff] %v304
        %369 = vst [vmem:[%s241 + $0xf0] sm:$0xff] %v305
        %370 = vst [vmem:[%s241 + $0x100] sm:$0xff] %v306
        %371 = vst [vmem:[%s241 + $0x110] sm:$0xff] %v307
        %372 = vst [vmem:[%s241 + $0x120] sm:$0xff] %v308
        %373 = vst [vmem:[%s241 + $0x130] sm:$0xff] %v309
        %374 = vst [vmem:[%s241 + $0x140] sm:$0xff] %v310
        %375 = vst [vmem:[%s241 + $0x150] sm:$0xff] %v311
        %376 = vst [vmem:[%s241 + $0x160] sm:$0xff] %v312
        %377 = vst [vmem:[%s241 + $0x170] sm:$0xff] %v313
        %378 = vst [vmem:[%s241 + $0x180] sm:$0xff] %v314
        %379 = vst [vmem:[%s241 + $0x190] sm:$0xff] %v315
        %380 = vst [vmem:[%s241 + $0x1a0] sm:$0xff] %v316
        %381 = vst [vmem:[%s241 + $0x1b0] sm:$0xff] %v317
        %382 = vst [vmem:[%s241 + $0x1c0] sm:$0xff] %v318
        %383 = vst [vmem:[%s241 + $0x1d0] sm:$0xff] %v319
        %384 = vst [vmem:[%s241 + $0x1e0] sm:$0xff] %v320
        %385 = vst [vmem:[%s241 + $0x1f0] sm:$0xff] %v321
        %vm418 = vcmask 1040384
        %v419 = vrot.slane %v290, 7
        %v420 = vrot.slane %v291, 7
        %v421 = vsel %vm418, %v419, %v420
        %v422 = vrot.slane %v292, 7
        %v423 = vrot.slane %v293, 7
        %v424 = vsel %vm418, %v422, %v423
        %v425 = vrot.slane %v294, 7
        %v426 = vrot.slane %v295, 7
        %v427 = vsel %vm418, %v425, %v426
        %v428 = vrot.slane %v296, 7
        %v429 = vrot.slane %v297, 7
        %v430 = vsel %vm418, %v428, %v429
        %v431 = vrot.slane %v298, 7
        %v432 = vrot.slane %v299, 7
        %v433 = vsel %vm418, %v431, %v432
        %v434 = vrot.slane %v300, 7
        %v435 = vrot.slane %v301, 7
        %v436 = vsel %vm418, %v434, %v435
        %v437 = vrot.slane %v302, 7
        %v438 = vrot.slane %v303, 7
        %v439 = vsel %vm418, %v437, %v438
        %v440 = vrot.slane %v304, 7
        %v441 = vrot.slane %v305, 7
        %v442 = vsel %vm418, %v440, %v441
        %v443 = vrot.slane %v306, 7
        %v444 = vrot.slane %v307, 7
        %v445 = vsel %vm418, %v443, %v444
        %v446 = vrot.slane %v308, 7
        %v447 = vrot.slane %v309, 7
        %v448 = vsel %vm418, %v446, %v447
        %v449 = vrot.slane %v310, 7
        %v450 = vrot.slane %v311, 7
        %v451 = vsel %vm418, %v449, %v450
        %v452 = vrot.slane %v312, 7
        %v453 = vrot.slane %v313, 7
        %v454 = vsel %vm418, %v452, %v453
        %v455 = vrot.slane %v314, 7
        %v456 = vrot.slane %v315, 7
        %v457 = vsel %vm418, %v455, %v456
        %v458 = vrot.slane %v316, 7
        %v459 = vrot.slane %v317, 7
        %v460 = vsel %vm418, %v458, %v459
        %v461 = vrot.slane %v318, 7
        %v462 = vrot.slane %v319, 7
        %v463 = vsel %vm418, %v461, %v462
        %v464 = vrot.slane %v320, 7
        %v465 = vrot.slane %v321, 7
        %v466 = vsel %vm418, %v464, %v465
        %499 = vst [vmem:[%s224] sm:$0xfe] %v419
        %500 = vst [vmem:[%s224 + $0x10] sm:$0xff] %v421
        %501 = vst [vmem:[%s224 + $0x20] sm:$0xfe] %v422
        %502 = vst [vmem:[%s224 + $0x30] sm:$0xff] %v424
        %503 = vst [vmem:[%s224 + $0x40] sm:$0xfe] %v425
        %504 = vst [vmem:[%s224 + $0x50] sm:$0xff] %v427
        %505 = vst [vmem:[%s224 + $0x60] sm:$0xfe] %v428
        %506 = vst [vmem:[%s224 + $0x70] sm:$0xff] %v430
        %507 = vst [vmem:[%s224 + $0x80] sm:$0xfe] %v431
        %508 = vst [vmem:[%s224 + $0x90] sm:$0xff] %v433
        %509 = vst [vmem:[%s224 + $0xa0] sm:$0xfe] %v434
        %510 = vst [vmem:[%s224 + $0xb0] sm:$0xff] %v436
        %511 = vst [vmem:[%s224 + $0xc0] sm:$0xfe] %v437
        %512 = vst [vmem:[%s224 + $0xd0] sm:$0xff] %v439
        %513 = vst [vmem:[%s224 + $0xe0] sm:$0xfe] %v440
        %514 = vst [vmem:[%s224 + $0xf0] sm:$0xff] %v442
        %515 = vst [vmem:[%s224 + $0x100] sm:$0xfe] %v443
        %516 = vst [vmem:[%s224 + $0x110] sm:$0xff] %v445
        %517 = vst [vmem:[%s224 + $0x120] sm:$0xfe] %v446
        %518 = vst [vmem:[%s224 + $0x130] sm:$0xff] %v448
        %519 = vst [vmem:[%s224 + $0x140] sm:$0xfe] %v449
        %520 = vst [vmem:[%s224 + $0x150] sm:$0xff] %v451
        %521 = vst [vmem:[%s224 + $0x160] sm:$0xfe] %v452
        %522 = vst [vmem:[%s224 + $0x170] sm:$0xff] %v454
        %523 = vst [vmem:[%s224 + $0x180] sm:$0xfe] %v455
        %524 = vst [vmem:[%s224 + $0x190] sm:$0xff] %v457
        %525 = vst [vmem:[%s224 + $0x1a0] sm:$0xfe] %v458
        %526 = vst [vmem:[%s224 + $0x1b0] sm:$0xff] %v460
        %527 = vst [vmem:[%s224 + $0x1c0] sm:$0xfe] %v461
        %528 = vst [vmem:[%s224 + $0x1d0] sm:$0xff] %v463
        %529 = vst [vmem:[%s224 + $0x1e0] sm:$0xfe] %v464
        %530 = vst [vmem:[%s224 + $0x1f0] sm:$0xff] %v466
        %vm531 = vcmask 1046528
        %v532 = vrot.slane %v290, 1
        %v533 = vrot.slane %v291, 1
        %v534 = vsel %vm531, %v532, %v533
        %v535 = vrot.slane %v292, 1
        %v536 = vrot.slane %v293, 1
        %v537 = vsel %vm531, %v535, %v536
        %v538 = vrot.slane %v294, 1
        %v539 = vrot.slane %v295, 1
        %v540 = vsel %vm531, %v538, %v539
        %v541 = vrot.slane %v296, 1
        %v542 = vrot.slane %v297, 1
        %v543 = vsel %vm531, %v541, %v542
        %v544 = vrot.slane %v298, 1
        %v545 = vrot.slane %v299, 1
        %v546 = vsel %vm531, %v544, %v545
        %v547 = vrot.slane %v300, 1
        %v548 = vrot.slane %v301, 1
        %v549 = vsel %vm531, %v547, %v548
        %v550 = vrot.slane %v302, 1
        %v551 = vrot.slane %v303, 1
        %v552 = vsel %vm531, %v550, %v551
        %v553 = vrot.slane %v304, 1
        %v554 = vrot.slane %v305, 1
        %v555 = vsel %vm531, %v553, %v554
        %v556 = vrot.slane %v306, 1
        %v557 = vrot.slane %v307, 1
        %v558 = vsel %vm531, %v556, %v557
        %v559 = vrot.slane %v308, 1
        %v560 = vrot.slane %v309, 1
        %v561 = vsel %vm531, %v559, %v560
        %v562 = vrot.slane %v310, 1
        %v563 = vrot.slane %v311, 1
        %v564 = vsel %vm531, %v562, %v563
        %v565 = vrot.slane %v312, 1
        %v566 = vrot.slane %v313, 1
        %v567 = vsel %vm531, %v565, %v566
        %v568 = vrot.slane %v314, 1
        %v569 = vrot.slane %v315, 1
        %v570 = vsel %vm531, %v568, %v569
        %v571 = vrot.slane %v316, 1
        %v572 = vrot.slane %v317, 1
        %v573 = vsel %vm531, %v571, %v572
        %v574 = vrot.slane %v318, 1
        %v575 = vrot.slane %v319, 1
        %v576 = vsel %vm531, %v574, %v575
        %v577 = vrot.slane %v320, 1
        %v578 = vrot.slane %v321, 1
        %v579 = vsel %vm531, %v577, %v578
        %612 = vst [vmem:[%s241 + $0x8] sm:$0xff] %v534
        %613 = vst [vmem:[%s241 + $0x18] sm:$0x7f] %v533
        %614 = vst [vmem:[%s241 + $0x28] sm:$0xff] %v537
        %615 = vst [vmem:[%s241 + $0x38] sm:$0x7f] %v536
        %616 = vst [vmem:[%s241 + $0x48] sm:$0xff] %v540
        %617 = vst [vmem:[%s241 + $0x58] sm:$0x7f] %v539
        %618 = vst [vmem:[%s241 + $0x68] sm:$0xff] %v543
        %619 = vst [vmem:[%s241 + $0x78] sm:$0x7f] %v542
        %620 = vst [vmem:[%s241 + $0x88] sm:$0xff] %v546
        %621 = vst [vmem:[%s241 + $0x98] sm:$0x7f] %v545
        %622 = vst [vmem:[%s241 + $0xa8] sm:$0xff] %v549
        %623 = vst [vmem:[%s241 + $0xb8] sm:$0x7f] %v548
        %624 = vst [vmem:[%s241 + $0xc8] sm:$0xff] %v552
        %625 = vst [vmem:[%s241 + $0xd8] sm:$0x7f] %v551
        %626 = vst [vmem:[%s241 + $0xe8] sm:$0xff] %v555
        %627 = vst [vmem:[%s241 + $0xf8] sm:$0x7f] %v554
        %628 = vst [vmem:[%s241 + $0x108] sm:$0xff] %v558
        %629 = vst [vmem:[%s241 + $0x118] sm:$0x7f] %v557
        %630 = vst [vmem:[%s241 + $0x128] sm:$0xff] %v561
        %631 = vst [vmem:[%s241 + $0x138] sm:$0x7f] %v560
        %632 = vst [vmem:[%s241 + $0x148] sm:$0xff] %v564
        %633 = vst [vmem:[%s241 + $0x158] sm:$0x7f] %v563
        %634 = vst [vmem:[%s241 + $0x168] sm:$0xff] %v567
        %635 = vst [vmem:[%s241 + $0x178] sm:$0x7f] %v566
        %636 = vst [vmem:[%s241 + $0x188] sm:$0xff] %v570
        %637 = vst [vmem:[%s241 + $0x198] sm:$0x7f] %v569
        %638 = vst [vmem:[%s241 + $0x1a8] sm:$0xff] %v573
        %639 = vst [vmem:[%s241 + $0x1b8] sm:$0x7f] %v572
        %640 = vst [vmem:[%s241 + $0x1c8] sm:$0xff] %v576
        %641 = vst [vmem:[%s241 + $0x1d8] sm:$0x7f] %v575
        %642 = vst [vmem:[%s241 + $0x1e8] sm:$0xff] %v579
        %643 = vst [vmem:[%s241 + $0x1f8] sm:$0x7f] %v578
        %v644 = vld [vmem:[%s2] sm:$0x1]
        %v645 = vld [vmem:[#allocation2] sm:$0xff]
        %v646 = vld [vmem:[#allocation2 + $0x8] sm:$0xff]
        %v647 = vld [vmem:[#allocation2 + $0x10] sm:$0xff]
        %v648 = vld [vmem:[#allocation2 + $0x18] sm:$0xff]
        %v649 = vld [vmem:[#allocation2 + $0x20] sm:$0xff]
        %v650 = vld [vmem:[#allocation2 + $0x28] sm:$0xff]
        %v651 = vld [vmem:[#allocation2 + $0x30] sm:$0xff]
        %v652 = vld [vmem:[#allocation2 + $0x38] sm:$0xff]
        %v653 = vld [vmem:[#allocation2 + $0x40] sm:$0xff]
        %v654 = vld [vmem:[#allocation2 + $0x48] sm:$0xff]
        %v655 = vld [vmem:[#allocation2 + $0x50] sm:$0xff]
        %v656 = vld [vmem:[#allocation2 + $0x58] sm:$0xff]
        %v657 = vld [vmem:[#allocation2 + $0x60] sm:$0xff]
        %v658 = vld [vmem:[#allocation2 + $0x68] sm:$0xff]
        %v659 = vld [vmem:[#allocation2 + $0x70] sm:$0xff]
        %v660 = vld [vmem:[#allocation2 + $0x78] sm:$0xff]
        %v661 = vld [vmem:[#allocation2 + $0x80] sm:$0xff]
        %v662 = vld [vmem:[#allocation2 + $0x88] sm:$0xff]
        %v663 = vld [vmem:[#allocation2 + $0x90] sm:$0xff]
        %v664 = vld [vmem:[#allocation2 + $0x98] sm:$0xff]
        %v665 = vld [vmem:[#allocation2 + $0xa0] sm:$0xff]
        %v666 = vld [vmem:[#allocation2 + $0xa8] sm:$0xff]
        %v667 = vld [vmem:[#allocation2 + $0xb0] sm:$0xff]
        %v668 = vld [vmem:[#allocation2 + $0xb8] sm:$0xff]
        %v669 = vld [vmem:[#allocation2 + $0xc0] sm:$0xff]
        %v670 = vld [vmem:[#allocation2 + $0xc8] sm:$0xff]
        %v671 = vld [vmem:[#allocation2 + $0xd0] sm:$0xff]
        %v672 = vld [vmem:[#allocation2 + $0xd8] sm:$0xff]
        %v673 = vld [vmem:[#allocation2 + $0xe0] sm:$0xff]
        %v674 = vld [vmem:[#allocation2 + $0xe8] sm:$0xff]
        %v675 = vld [vmem:[#allocation2 + $0xf0] sm:$0xff]
        %v676 = vld [vmem:[#allocation2 + $0xf8] sm:$0xff]
        %v677 = vld [vmem:[#allocation2 + $0x100] sm:$0xff]
        %v678 = vld [vmem:[#allocation2 + $0x108] sm:$0xff]
        %v679 = vld [vmem:[#allocation2 + $0x110] sm:$0xff]
        %v680 = vld [vmem:[#allocation2 + $0x118] sm:$0xff]
        %v681 = vld [vmem:[#allocation2 + $0x120] sm:$0xff]
        %v682 = vld [vmem:[#allocation2 + $0x128] sm:$0xff]
        %v683 = vld [vmem:[#allocation2 + $0x130] sm:$0xff]
        %v684 = vld [vmem:[#allocation2 + $0x138] sm:$0xff]
        %v685 = vld [vmem:[#allocation2 + $0x140] sm:$0xff]
        %v686 = vld [vmem:[#allocation2 + $0x148] sm:$0xff]
        %v687 = vld [vmem:[#allocation2 + $0x150] sm:$0xff]
        %v688 = vld [vmem:[#allocation2 + $0x158] sm:$0xff]
        %v689 = vld [vmem:[#allocation2 + $0x160] sm:$0xff]
        %v690 = vld [vmem:[#allocation2 + $0x168] sm:$0xff]
        %v691 = vld [vmem:[#allocation2 + $0x170] sm:$0xff]
        %v692 = vld [vmem:[#allocation2 + $0x178] sm:$0xff]
        %v693 = vld [vmem:[#allocation2 + $0x180] sm:$0xff]
        %v694 = vld [vmem:[#allocation2 + $0x188] sm:$0xff]
        %v695 = vld [vmem:[#allocation2 + $0x190] sm:$0xff]
        %v696 = vld [vmem:[#allocation2 + $0x198] sm:$0xff]
        %v697 = vld [vmem:[#allocation2 + $0x1a0] sm:$0xff]
        %v698 = vld [vmem:[#allocation2 + $0x1a8] sm:$0xff]
        %v699 = vld [vmem:[#allocation2 + $0x1b0] sm:$0xff]
        %v700 = vld [vmem:[#allocation2 + $0x1b8] sm:$0xff]
        %v701 = vld [vmem:[#allocation2 + $0x1c0] sm:$0xff]
        %v702 = vld [vmem:[#allocation2 + $0x1c8] sm:$0xff]
        %v703 = vld [vmem:[#allocation2 + $0x1d0] sm:$0xff]
        %v704 = vld [vmem:[#allocation2 + $0x1d8] sm:$0xff]
        %v705 = vld [vmem:[#allocation2 + $0x1e0] sm:$0xff]
        %v706 = vld [vmem:[#allocation2 + $0x1e8] sm:$0xff]
        %v707 = vld [vmem:[#allocation2 + $0x1f0] sm:$0xff]
        %v708 = vld [vmem:[#allocation2 + $0x1f8] sm:$0xff]
        %v709 = vpack.c.bf16 %v647, %v645
        %v710 = vpack.c.bf16 %v648, %v646
        %v711 = vpack.c.bf16 %v651, %v649
        %v712 = vpack.c.bf16 %v652, %v650
        %v713 = vpack.c.bf16 %v655, %v653
        %v714 = vpack.c.bf16 %v656, %v654
        %v715 = vpack.c.bf16 %v659, %v657
        %v716 = vpack.c.bf16 %v660, %v658
        %v717 = vpack.c.bf16 %v663, %v661
        %v718 = vpack.c.bf16 %v664, %v662
        %v719 = vpack.c.bf16 %v667, %v665
        %v720 = vpack.c.bf16 %v668, %v666
        %v721 = vpack.c.bf16 %v671, %v669
        %v722 = vpack.c.bf16 %v672, %v670
        %v723 = vpack.c.bf16 %v675, %v673
        %v724 = vpack.c.bf16 %v676, %v674
        %v725 = vpack.c.bf16 %v679, %v677
        %v726 = vpack.c.bf16 %v680, %v678
        %v727 = vpack.c.bf16 %v683, %v681
        %v728 = vpack.c.bf16 %v684, %v682
        %v729 = vpack.c.bf16 %v687, %v685
        %v730 = vpack.c.bf16 %v688, %v686
        %v731 = vpack.c.bf16 %v691, %v689
        %v732 = vpack.c.bf16 %v692, %v690
        %v733 = vpack.c.bf16 %v695, %v693
        %v734 = vpack.c.bf16 %v696, %v694
        %v735 = vpack.c.bf16 %v699, %v697
        %v736 = vpack.c.bf16 %v700, %v698
        %v737 = vpack.c.bf16 %v703, %v701
        %v738 = vpack.c.bf16 %v704, %v702
        %v739 = vpack.c.bf16 %v707, %v705
        %v740 = vpack.c.bf16 %v708, %v706
        %v741 = vld [vmem:[#allocation6] sm:$0xf]
        %v742 = vld [vmem:[#allocation6 + $0x4] sm:$0xf]
        %v743 = vld [vmem:[#allocation6 + $0x8] sm:$0xf]
        %v744 = vld [vmem:[#allocation6 + $0xc] sm:$0xf]
        %v745 = vld [vmem:[#allocation6 + $0x10] sm:$0xf]
        %v746 = vld [vmem:[#allocation6 + $0x14] sm:$0xf]
        %v747 = vld [vmem:[#allocation6 + $0x18] sm:$0xf]
        %v748 = vld [vmem:[#allocation6 + $0x1c] sm:$0xf]
        %v749 = vld [vmem:[#allocation6 + $0x20] sm:$0xf]
        %v750 = vld [vmem:[#allocation6 + $0x24] sm:$0xf]
        %v751 = vld [vmem:[#allocation6 + $0x28] sm:$0xf]
        %v752 = vld [vmem:[#allocation6 + $0x2c] sm:$0xf]
        %v753 = vld [vmem:[#allocation6 + $0x30] sm:$0xf]
        %v754 = vld [vmem:[#allocation6 + $0x34] sm:$0xf]
        %v755 = vld [vmem:[#allocation6 + $0x38] sm:$0xf]
        %v756 = vld [vmem:[#allocation6 + $0x3c] sm:$0xf]
        %v757 = vld [vmem:[#allocation6 + $0x40] sm:$0xf]
        %v758 = vld [vmem:[#allocation6 + $0x44] sm:$0xf]
        %v759 = vld [vmem:[#allocation6 + $0x48] sm:$0xf]
        %v760 = vld [vmem:[#allocation6 + $0x4c] sm:$0xf]
        %v761 = vld [vmem:[#allocation6 + $0x50] sm:$0xf]
        %v762 = vld [vmem:[#allocation6 + $0x54] sm:$0xf]
        %v763 = vld [vmem:[#allocation6 + $0x58] sm:$0xf]
        %v764 = vld [vmem:[#allocation6 + $0x5c] sm:$0xf]
        %v765 = vld [vmem:[#allocation6 + $0x60] sm:$0xf]
        %v766 = vld [vmem:[#allocation6 + $0x64] sm:$0xf]
        %v767 = vld [vmem:[#allocation6 + $0x68] sm:$0xf]
        %v768 = vld [vmem:[#allocation6 + $0x6c] sm:$0xf]
        %v769 = vld [vmem:[#allocation6 + $0x70] sm:$0xf]
        %v770 = vld [vmem:[#allocation6 + $0x74] sm:$0xf]
        %v771 = vld [vmem:[#allocation6 + $0x78] sm:$0xf]
        %v772 = vld [vmem:[#allocation6 + $0x7c] sm:$0xf]
        %v773 = vld [vmem:[%s224] sm:$0xff]
        %v774 = vld [vmem:[%s224 + $0x8] sm:$0xff]
        %v775 = vld [vmem:[%s224 + $0x10] sm:$0xff]
        %v776 = vld [vmem:[%s224 + $0x18] sm:$0xff]
        %v777 = vld [vmem:[%s224 + $0x20] sm:$0xff]
        %v778 = vld [vmem:[%s224 + $0x28] sm:$0xff]
        %v779 = vld [vmem:[%s224 + $0x30] sm:$0xff]
        %v780 = vld [vmem:[%s224 + $0x38] sm:$0xff]
        %v781 = vld [vmem:[%s224 + $0x40] sm:$0xff]
        %v782 = vld [vmem:[%s224 + $0x48] sm:$0xff]
        %v783 = vld [vmem:[%s224 + $0x50] sm:$0xff]
        %v784 = vld [vmem:[%s224 + $0x58] sm:$0xff]
        %v785 = vld [vmem:[%s224 + $0x60] sm:$0xff]
        %v786 = vld [vmem:[%s224 + $0x68] sm:$0xff]
        %v787 = vld [vmem:[%s224 + $0x70] sm:$0xff]
        %v788 = vld [vmem:[%s224 + $0x78] sm:$0xff]
        %v789 = vld [vmem:[%s224 + $0x80] sm:$0xff]
        %v790 = vld [vmem:[%s224 + $0x88] sm:$0xff]
        %v791 = vld [vmem:[%s224 + $0x90] sm:$0xff]
        %v792 = vld [vmem:[%s224 + $0x98] sm:$0xff]
        %v793 = vld [vmem:[%s224 + $0xa0] sm:$0xff]
        %v794 = vld [vmem:[%s224 + $0xa8] sm:$0xff]
        %v795 = vld [vmem:[%s224 + $0xb0] sm:$0xff]
        %v796 = vld [vmem:[%s224 + $0xb8] sm:$0xff]
        %v797 = vld [vmem:[%s224 + $0xc0] sm:$0xff]
        %v798 = vld [vmem:[%s224 + $0xc8] sm:$0xff]
        %v799 = vld [vmem:[%s224 + $0xd0] sm:$0xff]
        %v800 = vld [vmem:[%s224 + $0xd8] sm:$0xff]
        %v801 = vld [vmem:[%s224 + $0xe0] sm:$0xff]
        %v802 = vld [vmem:[%s224 + $0xe8] sm:$0xff]
        %v803 = vld [vmem:[%s224 + $0xf0] sm:$0xff]
        %v804 = vld [vmem:[%s224 + $0xf8] sm:$0xff]
        %v805 = vld [vmem:[%s224 + $0x100] sm:$0xff]
        %v806 = vld [vmem:[%s224 + $0x108] sm:$0xff]
        %v807 = vld [vmem:[%s224 + $0x110] sm:$0xff]
        %v808 = vld [vmem:[%s224 + $0x118] sm:$0xff]
        %v809 = vld [vmem:[%s224 + $0x120] sm:$0xff]
        %v810 = vld [vmem:[%s224 + $0x128] sm:$0xff]
        %v811 = vld [vmem:[%s224 + $0x130] sm:$0xff]
        %v812 = vld [vmem:[%s224 + $0x138] sm:$0xff]
        %v813 = vld [vmem:[%s224 + $0x140] sm:$0xff]
        %v814 = vld [vmem:[%s224 + $0x148] sm:$0xff]
        %v815 = vld [vmem:[%s224 + $0x150] sm:$0xff]
        %v816 = vld [vmem:[%s224 + $0x158] sm:$0xff]
        %v817 = vld [vmem:[%s224 + $0x160] sm:$0xff]
        %v818 = vld [vmem:[%s224 + $0x168] sm:$0xff]
        %v819 = vld [vmem:[%s224 + $0x170] sm:$0xff]
        %v820 = vld [vmem:[%s224 + $0x178] sm:$0xff]
        %v821 = vld [vmem:[%s224 + $0x180] sm:$0xff]
        %v822 = vld [vmem:[%s224 + $0x188] sm:$0xff]
        %v823 = vld [vmem:[%s224 + $0x190] sm:$0xff]
        %v824 = vld [vmem:[%s224 + $0x198] sm:$0xff]
        %v825 = vld [vmem:[%s224 + $0x1a0] sm:$0xff]
        %v826 = vld [vmem:[%s224 + $0x1a8] sm:$0xff]
        %v827 = vld [vmem:[%s224 + $0x1b0] sm:$0xff]
        %v828 = vld [vmem:[%s224 + $0x1b8] sm:$0xff]
        %v829 = vld [vmem:[%s224 + $0x1c0] sm:$0xff]
        %v830 = vld [vmem:[%s224 + $0x1c8] sm:$0xff]
        %v831 = vld [vmem:[%s224 + $0x1d0] sm:$0xff]
        %v832 = vld [vmem:[%s224 + $0x1d8] sm:$0xff]
        %v833 = vld [vmem:[%s224 + $0x1e0] sm:$0xff]
        %v834 = vld [vmem:[%s224 + $0x1e8] sm:$0xff]
        %v835 = vld [vmem:[%s224 + $0x1f0] sm:$0xff]
        %v836 = vld [vmem:[%s224 + $0x1f8] sm:$0xff]
        %v837 = vpack.c.bf16 %v775, %v773
        %v838 = vpack.c.bf16 %v776, %v774
        %v839 = vpack.c.bf16 %v779, %v777
        %v840 = vpack.c.bf16 %v780, %v778
        %v841 = vpack.c.bf16 %v783, %v781
        %v842 = vpack.c.bf16 %v784, %v782
        %v843 = vpack.c.bf16 %v787, %v785
        %v844 = vpack.c.bf16 %v788, %v786
        %v845 = vpack.c.bf16 %v791, %v789
        %v846 = vpack.c.bf16 %v792, %v790
        %v847 = vpack.c.bf16 %v795, %v793
        %v848 = vpack.c.bf16 %v796, %v794
        %v849 = vpack.c.bf16 %v799, %v797
        %v850 = vpack.c.bf16 %v800, %v798
        %v851 = vpack.c.bf16 %v803, %v801
        %v852 = vpack.c.bf16 %v804, %v802
        %v853 = vpack.c.bf16 %v807, %v805
        %v854 = vpack.c.bf16 %v808, %v806
        %v855 = vpack.c.bf16 %v811, %v809
        %v856 = vpack.c.bf16 %v812, %v810
        %v857 = vpack.c.bf16 %v815, %v813
        %v858 = vpack.c.bf16 %v816, %v814
        %v859 = vpack.c.bf16 %v819, %v817
        %v860 = vpack.c.bf16 %v820, %v818
        %v861 = vpack.c.bf16 %v823, %v821
        %v862 = vpack.c.bf16 %v824, %v822
        %v863 = vpack.c.bf16 %v827, %v825
        %v864 = vpack.c.bf16 %v828, %v826
        %v865 = vpack.c.bf16 %v831, %v829
        %v866 = vpack.c.bf16 %v832, %v830
        %v867 = vpack.c.bf16 %v835, %v833
        %v868 = vpack.c.bf16 %v836, %v834
        %s869 = scalar_lea.vmem [#allocation6], 128
        %v870 = vld [vmem:[%s869] sm:$0xf]
        %v871 = vld [vmem:[%s869 + $0x4] sm:$0xf]
        %v872 = vld [vmem:[%s869 + $0x8] sm:$0xf]
        %v873 = vld [vmem:[%s869 + $0xc] sm:$0xf]
        %v874 = vld [vmem:[%s869 + $0x10] sm:$0xf]
        %v875 = vld [vmem:[%s869 + $0x14] sm:$0xf]
        %v876 = vld [vmem:[%s869 + $0x18] sm:$0xf]
        %v877 = vld [vmem:[%s869 + $0x1c] sm:$0xf]
        %v878 = vld [vmem:[%s869 + $0x20] sm:$0xf]
        %v879 = vld [vmem:[%s869 + $0x24] sm:$0xf]
        %v880 = vld [vmem:[%s869 + $0x28] sm:$0xf]
        %v881 = vld [vmem:[%s869 + $0x2c] sm:$0xf]
        %v882 = vld [vmem:[%s869 + $0x30] sm:$0xf]
        %v883 = vld [vmem:[%s869 + $0x34] sm:$0xf]
        %v884 = vld [vmem:[%s869 + $0x38] sm:$0xf]
        %v885 = vld [vmem:[%s869 + $0x3c] sm:$0xf]
        %v886 = vld [vmem:[%s869 + $0x40] sm:$0xf]
        %v887 = vld [vmem:[%s869 + $0x44] sm:$0xf]
        %v888 = vld [vmem:[%s869 + $0x48] sm:$0xf]
        %v889 = vld [vmem:[%s869 + $0x4c] sm:$0xf]
        %v890 = vld [vmem:[%s869 + $0x50] sm:$0xf]
        %v891 = vld [vmem:[%s869 + $0x54] sm:$0xf]
        %v892 = vld [vmem:[%s869 + $0x58] sm:$0xf]
        %v893 = vld [vmem:[%s869 + $0x5c] sm:$0xf]
        %v894 = vld [vmem:[%s869 + $0x60] sm:$0xf]
        %v895 = vld [vmem:[%s869 + $0x64] sm:$0xf]
        %v896 = vld [vmem:[%s869 + $0x68] sm:$0xf]
        %v897 = vld [vmem:[%s869 + $0x6c] sm:$0xf]
        %v898 = vld [vmem:[%s869 + $0x70] sm:$0xf]
        %v899 = vld [vmem:[%s869 + $0x74] sm:$0xf]
        %v900 = vld [vmem:[%s869 + $0x78] sm:$0xf]
        %v901 = vld [vmem:[%s869 + $0x7c] sm:$0xf]
        %v934 = vunpack.c.l.b16 %v870
        %v935 = vunpack.c.l.b16 %v871
        %v936 = vunpack.c.l.b16 %v872
        %v937 = vunpack.c.l.b16 %v873
        %v938 = vunpack.c.l.b16 %v874
        %v939 = vunpack.c.l.b16 %v875
        %v940 = vunpack.c.l.b16 %v876
        %v941 = vunpack.c.l.b16 %v877
        %v942 = vunpack.c.l.b16 %v878
        %v943 = vunpack.c.l.b16 %v879
        %v944 = vunpack.c.l.b16 %v880
        %v945 = vunpack.c.l.b16 %v881
        %v946 = vunpack.c.l.b16 %v882
        %v947 = vunpack.c.l.b16 %v883
        %v948 = vunpack.c.l.b16 %v884
        %v949 = vunpack.c.l.b16 %v885
        %v950 = vunpack.c.l.b16 %v886
        %v951 = vunpack.c.l.b16 %v887
        %v952 = vunpack.c.l.b16 %v888
        %v953 = vunpack.c.l.b16 %v889
        %v954 = vunpack.c.l.b16 %v890
        %v955 = vunpack.c.l.b16 %v891
        %v956 = vunpack.c.l.b16 %v892
        %v957 = vunpack.c.l.b16 %v893
        %v958 = vunpack.c.l.b16 %v894
        %v959 = vunpack.c.l.b16 %v895
        %v960 = vunpack.c.l.b16 %v896
        %v961 = vunpack.c.l.b16 %v897
        %v962 = vunpack.c.l.b16 %v898
        %v963 = vunpack.c.l.b16 %v899
        %v964 = vunpack.c.l.b16 %v900
        %v965 = vunpack.c.l.b16 %v901
        %v966 = vpack.c.b16 %v935, %v934
        %v967 = vpack.c.b16 %v937, %v936
        %v968 = vpack.c.b16 %v939, %v938
        %v969 = vpack.c.b16 %v941, %v940
        %v970 = vpack.c.b16 %v943, %v942
        %v971 = vpack.c.b16 %v945, %v944
        %v972 = vpack.c.b16 %v947, %v946
        %v973 = vpack.c.b16 %v949, %v948
        %v974 = vpack.c.b16 %v951, %v950
        %v975 = vpack.c.b16 %v953, %v952
        %v976 = vpack.c.b16 %v955, %v954
        %v977 = vpack.c.b16 %v957, %v956
        %v978 = vpack.c.b16 %v959, %v958
        %v979 = vpack.c.b16 %v961, %v960
        %v980 = vpack.c.b16 %v963, %v962
        %v981 = vpack.c.b16 %v965, %v964
        %998 = vmatprep.subr.bf16.mxu0 0
        %999 = vmatpush1.bf16.msra.mxu0 %v966
        %1000 = vmatprep.subr.bf16.mxu0 0
        %1001 = vmatpush1.bf16.msra.mxu0 %v967
        %1002 = vmatprep.subr.bf16.mxu0 0
        %1003 = vmatpush1.bf16.msra.mxu0 %v968
        %1004 = vmatprep.subr.bf16.mxu0 0
        %1005 = vmatpush1.bf16.msra.mxu0 %v969
        %1006 = vmatprep.subr.bf16.mxu0 0
        %1007 = vmatpush1.bf16.msra.mxu0 %v970
        %1008 = vmatprep.subr.bf16.mxu0 0
        %1009 = vmatpush1.bf16.msra.mxu0 %v971
        %1010 = vmatprep.subr.bf16.mxu0 0
        %1011 = vmatpush1.bf16.msra.mxu0 %v972
        %1012 = vmatprep.subr.bf16.mxu0 0
        %1013 = vmatpush1.bf16.msra.mxu0 %v973
        %1014 = vmatprep.subr.bf16.mxu0 0
        %1015 = vmatpush1.bf16.msra.mxu0 %v974
        %1016 = vmatprep.subr.bf16.mxu0 0
        %1017 = vmatpush1.bf16.msra.mxu0 %v975
        %1018 = vmatprep.subr.bf16.mxu0 0
        %1019 = vmatpush1.bf16.msra.mxu0 %v976
        %1020 = vmatprep.subr.bf16.mxu0 0
        %1021 = vmatpush1.bf16.msra.mxu0 %v977
        %1022 = vmatprep.subr.bf16.mxu0 0
        %1023 = vmatpush1.bf16.msra.mxu0 %v978
        %1024 = vmatprep.subr.bf16.mxu0 0
        %1025 = vmatpush1.bf16.msra.mxu0 %v979
        %1026 = vmatprep.subr.bf16.mxu0 0
        %1027 = vmatpush1.bf16.msra.mxu0 %v980
        %1028 = vmatprep.subr.bf16.mxu0 0
        %1029 = vmatpush1.bf16.msra.mxu0 %v981
        %1030 = vmatprep.mubr.bf16.mxu0 %v838
        %1031 = vmatmul.mubr.bf16.gmra.mrb[0].mxu0 %v837
        %v1032 = vpop.f32.mrb[0].mxu0
        %v1033 = vadd.f32 0.0, %v1032
        %v1034 = vpop.f32.mrb[0].mxu0
        %v1035 = vpop.f32.mrb[0].mxu0
        %v1036 = vadd.f32 0.0, %v1035
        %v1037 = vpop.f32.mrb[0].mxu0
        %1038 = vmatprep.mubr.bf16.mxu0 %v840
        %1039 = vmatmul.mubr.bf16.gmra.mrb[0].mxu0 %v839
        %v1040 = vpop.f32.mrb[0].mxu0
        %v1041 = vadd.f32 0.0, %v1040
        %v1042 = vpop.f32.mrb[0].mxu0
        %v1043 = vpop.f32.mrb[0].mxu0
        %v1044 = vadd.f32 0.0, %v1043
        %v1045 = vpop.f32.mrb[0].mxu0
        %1046 = vmatprep.mubr.bf16.mxu0 %v842
        %1047 = vmatmul.mubr.bf16.gmra.mrb[0].mxu0 %v841
        %v1048 = vpop.f32.mrb[0].mxu0
        %v1049 = vadd.f32 0.0, %v1048
        %v1050 = vpop.f32.mrb[0].mxu0
        %v1051 = vpop.f32.mrb[0].mxu0
        %v1052 = vadd.f32 0.0, %v1051
        %v1053 = vpop.f32.mrb[0].mxu0
        %1054 = vmatprep.mubr.bf16.mxu0 %v844
        %1055 = vmatmul.mubr.bf16.gmra.mrb[0].mxu0 %v843
        %v1056 = vpop.f32.mrb[0].mxu0
        %v1057 = vadd.f32 0.0, %v1056
        %v1058 = vpop.f32.mrb[0].mxu0
        %v1059 = vpop.f32.mrb[0].mxu0
        %v1060 = vadd.f32 0.0, %v1059
        %v1061 = vpop.f32.mrb[0].mxu0
        %1062 = vmatprep.mubr.bf16.mxu0 %v846
        %1063 = vmatmul.mubr.bf16.gmra.mrb[0].mxu0 %v845
        %v1064 = vpop.f32.mrb[0].mxu0
        %v1065 = vadd.f32 0.0, %v1064
        %v1066 = vpop.f32.mrb[0].mxu0
        %v1067 = vpop.f32.mrb[0].mxu0
        %v1068 = vadd.f32 0.0, %v1067
        %v1069 = vpop.f32.mrb[0].mxu0
        %1070 = vmatprep.mubr.bf16.mxu0 %v848
        %1071 = vmatmul.mubr.bf16.gmra.mrb[0].mxu0 %v847
        %v1072 = vpop.f32.mrb[0].mxu0
        %v1073 = vadd.f32 0.0, %v1072
        %v1074 = vpop.f32.mrb[0].mxu0
        %v1075 = vpop.f32.mrb[0].mxu0
        %v1076 = vadd.f32 0.0, %v1075
        %v1077 = vpop.f32.mrb[0].mxu0
        %1078 = vmatprep.mubr.bf16.mxu0 %v850
        %1079 = vmatmul.mubr.bf16.gmra.mrb[0].mxu0 %v849
        %v1080 = vpop.f32.mrb[0].mxu0
        %v1081 = vadd.f32 0.0, %v1080
        %v1082 = vpop.f32.mrb[0].mxu0
        %v1083 = vpop.f32.mrb[0].mxu0
        %v1084 = vadd.f32 0.0, %v1083
        %v1085 = vpop.f32.mrb[0].mxu0
        %1086 = vmatprep.mubr.bf16.mxu0 %v852
        %1087 = vmatmul.mubr.bf16.gmra.mrb[0].mxu0 %v851
        %v1088 = vpop.f32.mrb[0].mxu0
        %v1089 = vadd.f32 0.0, %v1088
        %v1090 = vpop.f32.mrb[0].mxu0
        %v1091 = vpop.f32.mrb[0].mxu0
        %v1092 = vadd.f32 0.0, %v1091
        %v1093 = vpop.f32.mrb[0].mxu0
        %1094 = vmatprep.mubr.bf16.mxu0 %v854
        %1095 = vmatmul.mubr.bf16.gmra.mrb[0].mxu0 %v853
        %v1096 = vpop.f32.mrb[0].mxu0
        %v1097 = vadd.f32 0.0, %v1096
        %v1098 = vpop.f32.mrb[0].mxu0
        %v1099 = vpop.f32.mrb[0].mxu0
        %v1100 = vadd.f32 0.0, %v1099
        %v1101 = vpop.f32.mrb[0].mxu0
        %1102 = vmatprep.mubr.bf16.mxu0 %v856
        %1103 = vmatmul.mubr.bf16.gmra.mrb[0].mxu0 %v855
        %v1104 = vpop.f32.mrb[0].mxu0
        %v1105 = vadd.f32 0.0, %v1104
        %v1106 = vpop.f32.mrb[0].mxu0
        %v1107 = vpop.f32.mrb[0].mxu0
        %v1108 = vadd.f32 0.0, %v1107
        %v1109 = vpop.f32.mrb[0].mxu0
        %1110 = vmatprep.mubr.bf16.mxu0 %v858
        %1111 = vmatmul.mubr.bf16.gmra.mrb[0].mxu0 %v857
        %v1112 = vpop.f32.mrb[0].mxu0
        %v1113 = vadd.f32 0.0, %v1112
        %v1114 = vpop.f32.mrb[0].mxu0
        %v1115 = vpop.f32.mrb[0].mxu0
        %v1116 = vadd.f32 0.0, %v1115
        %v1117 = vpop.f32.mrb[0].mxu0
        %1118 = vmatprep.mubr.bf16.mxu0 %v860
        %1119 = vmatmul.mubr.bf16.gmra.mrb[0].mxu0 %v859
        %v1120 = vpop.f32.mrb[0].mxu0
        %v1121 = vadd.f32 0.0, %v1120
        %v1122 = vpop.f32.mrb[0].mxu0
        %v1123 = vpop.f32.mrb[0].mxu0
        %v1124 = vadd.f32 0.0, %v1123
        %v1125 = vpop.f32.mrb[0].mxu0
        %1126 = vmatprep.mubr.bf16.mxu0 %v862
        %1127 = vmatmul.mubr.bf16.gmra.mrb[0].mxu0 %v861
        %v1128 = vpop.f32.mrb[0].mxu0
        %v1129 = vadd.f32 0.0, %v1128
        %v1130 = vpop.f32.mrb[0].mxu0
        %v1131 = vpop.f32.mrb[0].mxu0
        %v1132 = vadd.f32 0.0, %v1131
        %v1133 = vpop.f32.mrb[0].mxu0
        %1134 = vmatprep.mubr.bf16.mxu0 %v864
        %1135 = vmatmul.mubr.bf16.gmra.mrb[0].mxu0 %v863
        %v1136 = vpop.f32.mrb[0].mxu0
        %v1137 = vadd.f32 0.0, %v1136
        %v1138 = vpop.f32.mrb[0].mxu0
        %v1139 = vpop.f32.mrb[0].mxu0
        %v1140 = vadd.f32 0.0, %v1139
        %v1141 = vpop.f32.mrb[0].mxu0
        %1142 = vmatprep.mubr.bf16.mxu0 %v866
        %1143 = vmatmul.mubr.bf16.gmra.mrb[0].mxu0 %v865
        %v1144 = vpop.f32.mrb[0].mxu0
        %v1145 = vadd.f32 0.0, %v1144
        %v1146 = vpop.f32.mrb[0].mxu0
        %v1147 = vpop.f32.mrb[0].mxu0
        %v1148 = vadd.f32 0.0, %v1147
        %v1149 = vpop.f32.mrb[0].mxu0
        %1150 = vmatprep.mubr.bf16.mxu0 %v868
        %1151 = vmatmul.mubr.bf16.gmra.mrb[0].mxu0 %v867
        %v1152 = vpop.f32.mrb[0].mxu0
        %v1153 = vadd.f32 0.0, %v1152
        %v1154 = vpop.f32.mrb[0].mxu0
        %v1155 = vpop.f32.mrb[0].mxu0
        %v1156 = vadd.f32 0.0, %v1155
        %v1157 = vpop.f32.mrb[0].mxu0
        %1158 = vdwg.mxu0
        %v1191 = vunpack.c.l.b16 %v741
        %v1192 = vunpack.c.l.b16 %v742
        %v1193 = vunpack.c.l.b16 %v743
        %v1194 = vunpack.c.l.b16 %v744
        %v1195 = vunpack.c.l.b16 %v745
        %v1196 = vunpack.c.l.b16 %v746
        %v1197 = vunpack.c.l.b16 %v747
        %v1198 = vunpack.c.l.b16 %v748
        %v1199 = vunpack.c.l.b16 %v749
        %v1200 = vunpack.c.l.b16 %v750
        %v1201 = vunpack.c.l.b16 %v751
        %v1202 = vunpack.c.l.b16 %v752
        %v1203 = vunpack.c.l.b16 %v753
        %v1204 = vunpack.c.l.b16 %v754
        %v1205 = vunpack.c.l.b16 %v755
        %v1206 = vunpack.c.l.b16 %v756
        %v1207 = vunpack.c.l.b16 %v757
        %v1208 = vunpack.c.l.b16 %v758
        %v1209 = vunpack.c.l.b16 %v759
        %v1210 = vunpack.c.l.b16 %v760
        %v1211 = vunpack.c.l.b16 %v761
        %v1212 = vunpack.c.l.b16 %v762
        %v1213 = vunpack.c.l.b16 %v763
        %v1214 = vunpack.c.l.b16 %v764
        %v1215 = vunpack.c.l.b16 %v765
        %v1216 = vunpack.c.l.b16 %v766
        %v1217 = vunpack.c.l.b16 %v767
        %v1218 = vunpack.c.l.b16 %v768
        %v1219 = vunpack.c.l.b16 %v769
        %v1220 = vunpack.c.l.b16 %v770
        %v1221 = vunpack.c.l.b16 %v771
        %v1222 = vunpack.c.l.b16 %v772
        %v1223 = vpack.c.b16 %v1192, %v1191
        %v1224 = vpack.c.b16 %v1194, %v1193
        %v1225 = vpack.c.b16 %v1196, %v1195
        %v1226 = vpack.c.b16 %v1198, %v1197
        %v1227 = vpack.c.b16 %v1200, %v1199
        %v1228 = vpack.c.b16 %v1202, %v1201
        %v1229 = vpack.c.b16 %v1204, %v1203
        %v1230 = vpack.c.b16 %v1206, %v1205
        %v1231 = vpack.c.b16 %v1208, %v1207
        %v1232 = vpack.c.b16 %v1210, %v1209
        %v1233 = vpack.c.b16 %v1212, %v1211
        %v1234 = vpack.c.b16 %v1214, %v1213
        %v1235 = vpack.c.b16 %v1216, %v1215
        %v1236 = vpack.c.b16 %v1218, %v1217
        %v1237 = vpack.c.b16 %v1220, %v1219
        %v1238 = vpack.c.b16 %v1222, %v1221
        %1255 = vmatprep.subr.bf16.mxu0 0
        %1256 = vmatpush1.bf16.msra.mxu0 %v1223
        %1257 = vmatprep.subr.bf16.mxu0 0
        %1258 = vmatpush1.bf16.msra.mxu0 %v1224
        %1259 = vmatprep.subr.bf16.mxu0 0
        %1260 = vmatpush1.bf16.msra.mxu0 %v1225
        %1261 = vmatprep.subr.bf16.mxu0 0
        %1262 = vmatpush1.bf16.msra.mxu0 %v1226
        %1263 = vmatprep.subr.bf16.mxu0 0
        %1264 = vmatpush1.bf16.msra.mxu0 %v1227
        %1265 = vmatprep.subr.bf16.mxu0 0
        %1266 = vmatpush1.bf16.msra.mxu0 %v1228
        %1267 = vmatprep.subr.bf16.mxu0 0
        %1268 = vmatpush1.bf16.msra.mxu0 %v1229
        %1269 = vmatprep.subr.bf16.mxu0 0
        %1270 = vmatpush1.bf16.msra.mxu0 %v1230
        %1271 = vmatprep.subr.bf16.mxu0 0
        %1272 = vmatpush1.bf16.msra.mxu0 %v1231
        %1273 = vmatprep.subr.bf16.mxu0 0
        %1274 = vmatpush1.bf16.msra.mxu0 %v1232
        %1275 = vmatprep.subr.bf16.mxu0 0
        %1276 = vmatpush1.bf16.msra.mxu0 %v1233
        %1277 = vmatprep.subr.bf16.mxu0 0
        %1278 = vmatpush1.bf16.msra.mxu0 %v1234
        %1279 = vmatprep.subr.bf16.mxu0 0
        %1280 = vmatpush1.bf16.msra.mxu0 %v1235
        %1281 = vmatprep.subr.bf16.mxu0 0
        %1282 = vmatpush1.bf16.msra.mxu0 %v1236
        %1283 = vmatprep.subr.bf16.mxu0 0
        %1284 = vmatpush1.bf16.msra.mxu0 %v1237
        %1285 = vmatprep.subr.bf16.mxu0 0
        %1286 = vmatpush1.bf16.msra.mxu0 %v1238
        %1287 = vmatprep.mubr.bf16.mxu0 %v710
        %1288 = vmatmul.mubr.bf16.gmra.mrb[0].mxu0 %v709
        %v1289 = vpop.f32.mrb[0].mxu0
        %v1290 = vadd.f32 %v1033, %v1289
        %v1291 = vpop.f32.mrb[0].mxu0
        %v1292 = vpop.f32.mrb[0].mxu0
        %v1293 = vadd.f32 %v1036, %v1292
        %v1294 = vpop.f32.mrb[0].mxu0
        %1295 = vmatprep.mubr.bf16.mxu0 %v712
        %1296 = vmatmul.mubr.bf16.gmra.mrb[0].mxu0 %v711
        %v1297 = vpop.f32.mrb[0].mxu0
        %v1298 = vadd.f32 %v1041, %v1297
        %v1299 = vpop.f32.mrb[0].mxu0
        %v1300 = vpop.f32.mrb[0].mxu0
        %v1301 = vadd.f32 %v1044, %v1300
        %v1302 = vpop.f32.mrb[0].mxu0
        %1303 = vmatprep.mubr.bf16.mxu0 %v714
        %1304 = vmatmul.mubr.bf16.gmra.mrb[0].mxu0 %v713
        %v1305 = vpop.f32.mrb[0].mxu0
        %v1306 = vadd.f32 %v1049, %v1305
        %v1307 = vpop.f32.mrb[0].mxu0
        %v1308 = vpop.f32.mrb[0].mxu0
        %v1309 = vadd.f32 %v1052, %v1308
        %v1310 = vpop.f32.mrb[0].mxu0
        %1311 = vmatprep.mubr.bf16.mxu0 %v716
        %1312 = vmatmul.mubr.bf16.gmra.mrb[0].mxu0 %v715
        %v1313 = vpop.f32.mrb[0].mxu0
        %v1314 = vadd.f32 %v1057, %v1313
        %v1315 = vpop.f32.mrb[0].mxu0
        %v1316 = vpop.f32.mrb[0].mxu0
        %v1317 = vadd.f32 %v1060, %v1316
        %v1318 = vpop.f32.mrb[0].mxu0
        %1319 = vmatprep.mubr.bf16.mxu0 %v718
        %1320 = vmatmul.mubr.bf16.gmra.mrb[0].mxu0 %v717
        %v1321 = vpop.f32.mrb[0].mxu0
        %v1322 = vadd.f32 %v1065, %v1321
        %v1323 = vpop.f32.mrb[0].mxu0
        %v1324 = vpop.f32.mrb[0].mxu0
        %v1325 = vadd.f32 %v1068, %v1324
        %v1326 = vpop.f32.mrb[0].mxu0
        %1327 = vmatprep.mubr.bf16.mxu0 %v720
        %1328 = vmatmul.mubr.bf16.gmra.mrb[0].mxu0 %v719
        %v1329 = vpop.f32.mrb[0].mxu0
        %v1330 = vadd.f32 %v1073, %v1329
        %v1331 = vpop.f32.mrb[0].mxu0
        %v1332 = vpop.f32.mrb[0].mxu0
        %v1333 = vadd.f32 %v1076, %v1332
        %v1334 = vpop.f32.mrb[0].mxu0
        %1335 = vmatprep.mubr.bf16.mxu0 %v722
        %1336 = vmatmul.mubr.bf16.gmra.mrb[0].mxu0 %v721
        %v1337 = vpop.f32.mrb[0].mxu0
        %v1338 = vadd.f32 %v1081, %v1337
        %v1339 = vpop.f32.mrb[0].mxu0
        %v1340 = vpop.f32.mrb[0].mxu0
        %v1341 = vadd.f32 %v1084, %v1340
        %v1342 = vpop.f32.mrb[0].mxu0
        %1343 = vmatprep.mubr.bf16.mxu0 %v724
        %1344 = vmatmul.mubr.bf16.gmra.mrb[0].mxu0 %v723
        %v1345 = vpop.f32.mrb[0].mxu0
        %v1346 = vadd.f32 %v1089, %v1345
        %v1347 = vpop.f32.mrb[0].mxu0
        %v1348 = vpop.f32.mrb[0].mxu0
        %v1349 = vadd.f32 %v1092, %v1348
        %v1350 = vpop.f32.mrb[0].mxu0
        %1351 = vmatprep.mubr.bf16.mxu0 %v726
        %1352 = vmatmul.mubr.bf16.gmra.mrb[0].mxu0 %v725
        %v1353 = vpop.f32.mrb[0].mxu0
        %v1354 = vadd.f32 %v1097, %v1353
        %v1355 = vpop.f32.mrb[0].mxu0
        %v1356 = vpop.f32.mrb[0].mxu0
        %v1357 = vadd.f32 %v1100, %v1356
        %v1358 = vpop.f32.mrb[0].mxu0
        %1359 = vmatprep.mubr.bf16.mxu0 %v728
        %1360 = vmatmul.mubr.bf16.gmra.mrb[0].mxu0 %v727
        %v1361 = vpop.f32.mrb[0].mxu0
        %v1362 = vadd.f32 %v1105, %v1361
        %v1363 = vpop.f32.mrb[0].mxu0
        %v1364 = vpop.f32.mrb[0].mxu0
        %v1365 = vadd.f32 %v1108, %v1364
        %v1366 = vpop.f32.mrb[0].mxu0
        %1367 = vmatprep.mubr.bf16.mxu0 %v730
        %1368 = vmatmul.mubr.bf16.gmra.mrb[0].mxu0 %v729
        %v1369 = vpop.f32.mrb[0].mxu0
        %v1370 = vadd.f32 %v1113, %v1369
        %v1371 = vpop.f32.mrb[0].mxu0
        %v1372 = vpop.f32.mrb[0].mxu0
        %v1373 = vadd.f32 %v1116, %v1372
        %v1374 = vpop.f32.mrb[0].mxu0
        %1375 = vmatprep.mubr.bf16.mxu0 %v732
        %1376 = vmatmul.mubr.bf16.gmra.mrb[0].mxu0 %v731
        %v1377 = vpop.f32.mrb[0].mxu0
        %v1378 = vadd.f32 %v1121, %v1377
        %v1379 = vpop.f32.mrb[0].mxu0
        %v1380 = vpop.f32.mrb[0].mxu0
        %v1381 = vadd.f32 %v1124, %v1380
        %v1382 = vpop.f32.mrb[0].mxu0
        %1383 = vmatprep.mubr.bf16.mxu0 %v734
        %1384 = vmatmul.mubr.bf16.gmra.mrb[0].mxu0 %v733
        %v1385 = vpop.f32.mrb[0].mxu0
        %v1386 = vadd.f32 %v1129, %v1385
        %v1387 = vpop.f32.mrb[0].mxu0
        %v1388 = vpop.f32.mrb[0].mxu0
        %v1389 = vadd.f32 %v1132, %v1388
        %v1390 = vpop.f32.mrb[0].mxu0
        %1391 = vmatprep.mubr.bf16.mxu0 %v736
        %1392 = vmatmul.mubr.bf16.gmra.mrb[0].mxu0 %v735
        %v1393 = vpop.f32.mrb[0].mxu0
        %v1394 = vadd.f32 %v1137, %v1393
        %v1395 = vpop.f32.mrb[0].mxu0
        %v1396 = vpop.f32.mrb[0].mxu0
        %v1397 = vadd.f32 %v1140, %v1396
        %v1398 = vpop.f32.mrb[0].mxu0
        %1399 = vmatprep.mubr.bf16.mxu0 %v738
        %1400 = vmatmul.mubr.bf16.gmra.mrb[0].mxu0 %v737
        %v1401 = vpop.f32.mrb[0].mxu0
        %v1402 = vadd.f32 %v1145, %v1401
        %v1403 = vpop.f32.mrb[0].mxu0
        %v1404 = vpop.f32.mrb[0].mxu0
        %v1405 = vadd.f32 %v1148, %v1404
        %v1406 = vpop.f32.mrb[0].mxu0
        %1407 = vmatprep.mubr.bf16.mxu0 %v740
        %1408 = vmatmul.mubr.bf16.gmra.mrb[0].mxu0 %v739
        %v1409 = vpop.f32.mrb[0].mxu0
        %v1410 = vadd.f32 %v1153, %v1409
        %v1411 = vpop.f32.mrb[0].mxu0
        %v1412 = vpop.f32.mrb[0].mxu0
        %v1413 = vadd.f32 %v1156, %v1412
        %v1414 = vpop.f32.mrb[0].mxu0
        %1415 = vdwg.mxu0
        %v1417 = vlaneseq
        %v1418 = vshrl.u32 %v1417, 7
        %v1419 = vsub.s32 0, %v1418
        %v1420 = vrot.slane %v644, %v1419
        %v1422 = vadd.f32 %v1290, %v1420
        %v1423 = vadd.f32 %v1293, %v1420
        %v1424 = vadd.f32 %v1298, %v1420
        %v1425 = vadd.f32 %v1301, %v1420
        %v1426 = vadd.f32 %v1306, %v1420
        %v1427 = vadd.f32 %v1309, %v1420
        %v1428 = vadd.f32 %v1314, %v1420
        %v1429 = vadd.f32 %v1317, %v1420
        %v1430 = vadd.f32 %v1322, %v1420
        %v1431 = vadd.f32 %v1325, %v1420
        %v1432 = vadd.f32 %v1330, %v1420
        %v1433 = vadd.f32 %v1333, %v1420
        %v1434 = vadd.f32 %v1338, %v1420
        %v1435 = vadd.f32 %v1341, %v1420
        %v1436 = vadd.f32 %v1346, %v1420
        %v1437 = vadd.f32 %v1349, %v1420
        %v1438 = vadd.f32 %v1354, %v1420
        %v1439 = vadd.f32 %v1357, %v1420
        %v1440 = vadd.f32 %v1362, %v1420
        %v1441 = vadd.f32 %v1365, %v1420
        %v1442 = vadd.f32 %v1370, %v1420
        %v1443 = vadd.f32 %v1373, %v1420
        %v1444 = vadd.f32 %v1378, %v1420
        %v1445 = vadd.f32 %v1381, %v1420
        %v1446 = vadd.f32 %v1386, %v1420
        %v1447 = vadd.f32 %v1389, %v1420
        %v1448 = vadd.f32 %v1394, %v1420
        %v1449 = vadd.f32 %v1397, %v1420
        %v1450 = vadd.f32 %v1402, %v1420
        %v1451 = vadd.f32 %v1405, %v1420
        %v1452 = vadd.f32 %v1410, %v1420
        %v1453 = vadd.f32 %v1413, %v1420
        %1454 = vst [vmem:[%s203] sm:$0xff] %v1422
        %1455 = vst [vmem:[%s203 + $0x8] sm:$0xff] %v1423
        %1456 = vst [vmem:[%s203 + $0x10] sm:$0xff] %v1424
        %1457 = vst [vmem:[%s203 + $0x18] sm:$0xff] %v1425
        %1458 = vst [vmem:[%s203 + $0x20] sm:$0xff] %v1426
        %1459 = vst [vmem:[%s203 + $0x28] sm:$0xff] %v1427
        %1460 = vst [vmem:[%s203 + $0x30] sm:$0xff] %v1428
        %1461 = vst [vmem:[%s203 + $0x38] sm:$0xff] %v1429
        %1462 = vst [vmem:[%s203 + $0x40] sm:$0xff] %v1430
        %1463 = vst [vmem:[%s203 + $0x48] sm:$0xff] %v1431
        %1464 = vst [vmem:[%s203 + $0x50] sm:$0xff] %v1432
        %1465 = vst [vmem:[%s203 + $0x58] sm:$0xff] %v1433
        %1466 = vst [vmem:[%s203 + $0x60] sm:$0xff] %v1434
        %1467 = vst [vmem:[%s203 + $0x68] sm:$0xff] %v1435
        %1468 = vst [vmem:[%s203 + $0x70] sm:$0xff] %v1436
        %1469 = vst [vmem:[%s203 + $0x78] sm:$0xff] %v1437
        %1470 = vst [vmem:[%s203 + $0x80] sm:$0xff] %v1438
        %1471 = vst [vmem:[%s203 + $0x88] sm:$0xff] %v1439
        %1472 = vst [vmem:[%s203 + $0x90] sm:$0xff] %v1440
        %1473 = vst [vmem:[%s203 + $0x98] sm:$0xff] %v1441
        %1474 = vst [vmem:[%s203 + $0xa0] sm:$0xff] %v1442
        %1475 = vst [vmem:[%s203 + $0xa8] sm:$0xff] %v1443
        %1476 = vst [vmem:[%s203 + $0xb0] sm:$0xff] %v1444
        %1477 = vst [vmem:[%s203 + $0xb8] sm:$0xff] %v1445
        %1478 = vst [vmem:[%s203 + $0xc0] sm:$0xff] %v1446
        %1479 = vst [vmem:[%s203 + $0xc8] sm:$0xff] %v1447
        %1480 = vst [vmem:[%s203 + $0xd0] sm:$0xff] %v1448
        %1481 = vst [vmem:[%s203 + $0xd8] sm:$0xff] %v1449
        %1482 = vst [vmem:[%s203 + $0xe0] sm:$0xff] %v1450
        %1483 = vst [vmem:[%s203 + $0xe8] sm:$0xff] %v1451
        %1484 = vst [vmem:[%s203 + $0xf0] sm:$0xff] %v1452
        %1485 = vst [vmem:[%s203 + $0xf8] sm:$0xff] %v1453
        %v1486 = vld [vmem:[%s214] sm:$0xff]
        %v1487 = vld [vmem:[%s214 + $0x8] sm:$0xff]
        %v1488 = vld [vmem:[%s214 + $0x10] sm:$0xff]
        %v1489 = vld [vmem:[%s214 + $0x18] sm:$0xff]
        %v1490 = vld [vmem:[%s214 + $0x20] sm:$0xff]
        %v1491 = vld [vmem:[%s214 + $0x28] sm:$0xff]
        %v1492 = vld [vmem:[%s214 + $0x30] sm:$0xff]
        %v1493 = vld [vmem:[%s214 + $0x38] sm:$0xff]
        %v1494 = vld [vmem:[%s214 + $0x40] sm:$0xff]
        %v1495 = vld [vmem:[%s214 + $0x48] sm:$0xff]
        %v1496 = vld [vmem:[%s214 + $0x50] sm:$0xff]
        %v1497 = vld [vmem:[%s214 + $0x58] sm:$0xff]
        %v1498 = vld [vmem:[%s214 + $0x60] sm:$0xff]
        %v1499 = vld [vmem:[%s214 + $0x68] sm:$0xff]
        %v1500 = vld [vmem:[%s214 + $0x70] sm:$0xff]
        %v1501 = vld [vmem:[%s214 + $0x78] sm:$0xff]
        %v1502 = vld [vmem:[%s214 + $0x80] sm:$0xff]
        %v1503 = vld [vmem:[%s214 + $0x88] sm:$0xff]
        %v1504 = vld [vmem:[%s214 + $0x90] sm:$0xff]
        %v1505 = vld [vmem:[%s214 + $0x98] sm:$0xff]
        %v1506 = vld [vmem:[%s214 + $0xa0] sm:$0xff]
        %v1507 = vld [vmem:[%s214 + $0xa8] sm:$0xff]
        %v1508 = vld [vmem:[%s214 + $0xb0] sm:$0xff]
        %v1509 = vld [vmem:[%s214 + $0xb8] sm:$0xff]
        %v1510 = vld [vmem:[%s214 + $0xc0] sm:$0xff]
        %v1511 = vld [vmem:[%s214 + $0xc8] sm:$0xff]
        %v1512 = vld [vmem:[%s214 + $0xd0] sm:$0xff]
        %v1513 = vld [vmem:[%s214 + $0xd8] sm:$0xff]
        %v1514 = vld [vmem:[%s214 + $0xe0] sm:$0xff]
        %v1515 = vld [vmem:[%s214 + $0xe8] sm:$0xff]
        %v1516 = vld [vmem:[%s214 + $0xf0] sm:$0xff]
        %v1517 = vld [vmem:[%s214 + $0xf8] sm:$0xff]
        %v1518 = vld [vmem:[%s214 + $0x100] sm:$0xff]
        %v1519 = vld [vmem:[%s214 + $0x108] sm:$0xff]
        %v1520 = vld [vmem:[%s214 + $0x110] sm:$0xff]
        %v1521 = vld [vmem:[%s214 + $0x118] sm:$0xff]
        %v1522 = vld [vmem:[%s214 + $0x120] sm:$0xff]
        %v1523 = vld [vmem:[%s214 + $0x128] sm:$0xff]
        %v1524 = vld [vmem:[%s214 + $0x130] sm:$0xff]
        %v1525 = vld [vmem:[%s214 + $0x138] sm:$0xff]
        %v1526 = vld [vmem:[%s214 + $0x140] sm:$0xff]
        %v1527 = vld [vmem:[%s214 + $0x148] sm:$0xff]
        %v1528 = vld [vmem:[%s214 + $0x150] sm:$0xff]
        %v1529 = vld [vmem:[%s214 + $0x158] sm:$0xff]
        %v1530 = vld [vmem:[%s214 + $0x160] sm:$0xff]
        %v1531 = vld [vmem:[%s214 + $0x168] sm:$0xff]
        %v1532 = vld [vmem:[%s214 + $0x170] sm:$0xff]
        %v1533 = vld [vmem:[%s214 + $0x178] sm:$0xff]
        %v1534 = vld [vmem:[%s214 + $0x180] sm:$0xff]
        %v1535 = vld [vmem:[%s214 + $0x188] sm:$0xff]
        %v1536 = vld [vmem:[%s214 + $0x190] sm:$0xff]
        %v1537 = vld [vmem:[%s214 + $0x198] sm:$0xff]
        %v1538 = vld [vmem:[%s214 + $0x1a0] sm:$0xff]
        %v1539 = vld [vmem:[%s214 + $0x1a8] sm:$0xff]
        %v1540 = vld [vmem:[%s214 + $0x1b0] sm:$0xff]
        %v1541 = vld [vmem:[%s214 + $0x1b8] sm:$0xff]
        %v1542 = vld [vmem:[%s214 + $0x1c0] sm:$0xff]
        %v1543 = vld [vmem:[%s214 + $0x1c8] sm:$0xff]
        %v1544 = vld [vmem:[%s214 + $0x1d0] sm:$0xff]
        %v1545 = vld [vmem:[%s214 + $0x1d8] sm:$0xff]
        %v1546 = vld [vmem:[%s214 + $0x1e0] sm:$0xff]
        %v1547 = vld [vmem:[%s214 + $0x1e8] sm:$0xff]
        %v1548 = vld [vmem:[%s214 + $0x1f0] sm:$0xff]
        %v1549 = vld [vmem:[%s214 + $0x1f8] sm:$0xff]
        %v1550 = vpack.c.bf16 %v1488, %v1486
        %v1551 = vpack.c.bf16 %v1489, %v1487
        %v1552 = vpack.c.bf16 %v1492, %v1490
        %v1553 = vpack.c.bf16 %v1493, %v1491
        %v1554 = vpack.c.bf16 %v1496, %v1494
        %v1555 = vpack.c.bf16 %v1497, %v1495
        %v1556 = vpack.c.bf16 %v1500, %v1498
        %v1557 = vpack.c.bf16 %v1501, %v1499
        %v1558 = vpack.c.bf16 %v1504, %v1502
        %v1559 = vpack.c.bf16 %v1505, %v1503
        %v1560 = vpack.c.bf16 %v1508, %v1506
        %v1561 = vpack.c.bf16 %v1509, %v1507
        %v1562 = vpack.c.bf16 %v1512, %v1510
        %v1563 = vpack.c.bf16 %v1513, %v1511
        %v1564 = vpack.c.bf16 %v1516, %v1514
        %v1565 = vpack.c.bf16 %v1517, %v1515
        %v1566 = vpack.c.bf16 %v1520, %v1518
        %v1567 = vpack.c.bf16 %v1521, %v1519
        %v1568 = vpack.c.bf16 %v1524, %v1522
        %v1569 = vpack.c.bf16 %v1525, %v1523
        %v1570 = vpack.c.bf16 %v1528, %v1526
        %v1571 = vpack.c.bf16 %v1529, %v1527
        %v1572 = vpack.c.bf16 %v1532, %v1530
        %v1573 = vpack.c.bf16 %v1533, %v1531
        %v1574 = vpack.c.bf16 %v1536, %v1534
        %v1575 = vpack.c.bf16 %v1537, %v1535
        %v1576 = vpack.c.bf16 %v1540, %v1538
        %v1577 = vpack.c.bf16 %v1541, %v1539
        %v1578 = vpack.c.bf16 %v1544, %v1542
        %v1579 = vpack.c.bf16 %v1545, %v1543
        %v1580 = vpack.c.bf16 %v1548, %v1546
        %v1581 = vpack.c.bf16 %v1549, %v1547
        %s1582 = scalar_lea.vmem [#allocation6], 256
        %v1583 = vld [vmem:[%s1582] sm:$0xf]
        %v1584 = vld [vmem:[%s1582 + $0x4] sm:$0xf]
        %v1585 = vld [vmem:[%s1582 + $0x8] sm:$0xf]
        %v1586 = vld [vmem:[%s1582 + $0xc] sm:$0xf]
        %v1587 = vld [vmem:[%s1582 + $0x10] sm:$0xf]
        %v1588 = vld [vmem:[%s1582 + $0x14] sm:$0xf]
        %v1589 = vld [vmem:[%s1582 + $0x18] sm:$0xf]
        %v1590 = vld [vmem:[%s1582 + $0x1c] sm:$0xf]
        %v1591 = vld [vmem:[%s1582 + $0x20] sm:$0xf]
        %v1592 = vld [vmem:[%s1582 + $0x24] sm:$0xf]
        %v1593 = vld [vmem:[%s1582 + $0x28] sm:$0xf]
        %v1594 = vld [vmem:[%s1582 + $0x2c] sm:$0xf]
        %v1595 = vld [vmem:[%s1582 + $0x30] sm:$0xf]
        %v1596 = vld [vmem:[%s1582 + $0x34] sm:$0xf]
        %v1597 = vld [vmem:[%s1582 + $0x38] sm:$0xf]
        %v1598 = vld [vmem:[%s1582 + $0x3c] sm:$0xf]
        %v1599 = vld [vmem:[%s1582 + $0x40] sm:$0xf]
        %v1600 = vld [vmem:[%s1582 + $0x44] sm:$0xf]
        %v1601 = vld [vmem:[%s1582 + $0x48] sm:$0xf]
        %v1602 = vld [vmem:[%s1582 + $0x4c] sm:$0xf]
        %v1603 = vld [vmem:[%s1582 + $0x50] sm:$0xf]
        %v1604 = vld [vmem:[%s1582 + $0x54] sm:$0xf]
        %v1605 = vld [vmem:[%s1582 + $0x58] sm:$0xf]
        %v1606 = vld [vmem:[%s1582 + $0x5c] sm:$0xf]
        %v1607 = vld [vmem:[%s1582 + $0x60] sm:$0xf]
        %v1608 = vld [vmem:[%s1582 + $0x64] sm:$0xf]
        %v1609 = vld [vmem:[%s1582 + $0x68] sm:$0xf]
        %v1610 = vld [vmem:[%s1582 + $0x6c] sm:$0xf]
        %v1611 = vld [vmem:[%s1582 + $0x70] sm:$0xf]
        %v1612 = vld [vmem:[%s1582 + $0x74] sm:$0xf]
        %v1613 = vld [vmem:[%s1582 + $0x78] sm:$0xf]
        %v1614 = vld [vmem:[%s1582 + $0x7c] sm:$0xf]
        %v1615 = vld [vmem:[%s241] sm:$0xff]
        %v1616 = vld [vmem:[%s241 + $0x8] sm:$0xff]
        %v1617 = vld [vmem:[%s241 + $0x10] sm:$0xff]
        %v1618 = vld [vmem:[%s241 + $0x18] sm:$0xff]
        %v1619 = vld [vmem:[%s241 + $0x20] sm:$0xff]
        %v1620 = vld [vmem:[%s241 + $0x28] sm:$0xff]
        %v1621 = vld [vmem:[%s241 + $0x30] sm:$0xff]
        %v1622 = vld [vmem:[%s241 + $0x38] sm:$0xff]
        %v1623 = vld [vmem:[%s241 + $0x40] sm:$0xff]
        %v1624 = vld [vmem:[%s241 + $0x48] sm:$0xff]
        %v1625 = vld [vmem:[%s241 + $0x50] sm:$0xff]
        %v1626 = vld [vmem:[%s241 + $0x58] sm:$0xff]
        %v1627 = vld [vmem:[%s241 + $0x60] sm:$0xff]
        %v1628 = vld [vmem:[%s241 + $0x68] sm:$0xff]
        %v1629 = vld [vmem:[%s241 + $0x70] sm:$0xff]
        %v1630 = vld [vmem:[%s241 + $0x78] sm:$0xff]
        %v1631 = vld [vmem:[%s241 + $0x80] sm:$0xff]
        %v1632 = vld [vmem:[%s241 + $0x88] sm:$0xff]
        %v1633 = vld [vmem:[%s241 + $0x90] sm:$0xff]
        %v1634 = vld [vmem:[%s241 + $0x98] sm:$0xff]
        %v1635 = vld [vmem:[%s241 + $0xa0] sm:$0xff]
        %v1636 = vld [vmem:[%s241 + $0xa8] sm:$0xff]
        %v1637 = vld [vmem:[%s241 + $0xb0] sm:$0xff]
        %v1638 = vld [vmem:[%s241 + $0xb8] sm:$0xff]
        %v1639 = vld [vmem:[%s241 + $0xc0] sm:$0xff]
        %v1640 = vld [vmem:[%s241 + $0xc8] sm:$0xff]
        %v1641 = vld [vmem:[%s241 + $0xd0] sm:$0xff]
        %v1642 = vld [vmem:[%s241 + $0xd8] sm:$0xff]
        %v1643 = vld [vmem:[%s241 + $0xe0] sm:$0xff]
        %v1644 = vld [vmem:[%s241 + $0xe8] sm:$0xff]
        %v1645 = vld [vmem:[%s241 + $0xf0] sm:$0xff]
        %v1646 = vld [vmem:[%s241 + $0xf8] sm:$0xff]
        %v1647 = vld [vmem:[%s241 + $0x100] sm:$0xff]
        %v1648 = vld [vmem:[%s241 + $0x108] sm:$0xff]
        %v1649 = vld [vmem:[%s241 + $0x110] sm:$0xff]
        %v1650 = vld [vmem:[%s241 + $0x118] sm:$0xff]
        %v1651 = vld [vmem:[%s241 + $0x120] sm:$0xff]
        %v1652 = vld [vmem:[%s241 + $0x128] sm:$0xff]
        %v1653 = vld [vmem:[%s241 + $0x130] sm:$0xff]
        %v1654 = vld [vmem:[%s241 + $0x138] sm:$0xff]
        %v1655 = vld [vmem:[%s241 + $0x140] sm:$0xff]
        %v1656 = vld [vmem:[%s241 + $0x148] sm:$0xff]
        %v1657 = vld [vmem:[%s241 + $0x150] sm:$0xff]
        %v1658 = vld [vmem:[%s241 + $0x158] sm:$0xff]
        %v1659 = vld [vmem:[%s241 + $0x160] sm:$0xff]
        %v1660 = vld [vmem:[%s241 + $0x168] sm:$0xff]
        %v1661 = vld [vmem:[%s241 + $0x170] sm:$0xff]
        %v1662 = vld [vmem:[%s241 + $0x178] sm:$0xff]
        %v1663 = vld [vmem:[%s241 + $0x180] sm:$0xff]
        %v1664 = vld [vmem:[%s241 + $0x188] sm:$0xff]
        %v1665 = vld [vmem:[%s241 + $0x190] sm:$0xff]
        %v1666 = vld [vmem:[%s241 + $0x198] sm:$0xff]
        %v1667 = vld [vmem:[%s241 + $0x1a0] sm:$0xff]
        %v1668 = vld [vmem:[%s241 + $0x1a8] sm:$0xff]
        %v1669 = vld [vmem:[%s241 + $0x1b0] sm:$0xff]
        %v1670 = vld [vmem:[%s241 + $0x1b8] sm:$0xff]
        %v1671 = vld [vmem:[%s241 + $0x1c0] sm:$0xff]
        %v1672 = vld [vmem:[%s241 + $0x1c8] sm:$0xff]
        %v1673 = vld [vmem:[%s241 + $0x1d0] sm:$0xff]
        %v1674 = vld [vmem:[%s241 + $0x1d8] sm:$0xff]
        %v1675 = vld [vmem:[%s241 + $0x1e0] sm:$0xff]
        %v1676 = vld [vmem:[%s241 + $0x1e8] sm:$0xff]
        %v1677 = vld [vmem:[%s241 + $0x1f0] sm:$0xff]
        %v1678 = vld [vmem:[%s241 + $0x1f8] sm:$0xff]
        %v1679 = vpack.c.bf16 %v1617, %v1615
        %v1680 = vpack.c.bf16 %v1618, %v1616
        %v1681 = vpack.c.bf16 %v1621, %v1619
        %v1682 = vpack.c.bf16 %v1622, %v1620
        %v1683 = vpack.c.bf16 %v1625, %v1623
        %v1684 = vpack.c.bf16 %v1626, %v1624
        %v1685 = vpack.c.bf16 %v1629, %v1627
        %v1686 = vpack.c.bf16 %v1630, %v1628
        %v1687 = vpack.c.bf16 %v1633, %v1631
        %v1688 = vpack.c.bf16 %v1634, %v1632
        %v1689 = vpack.c.bf16 %v1637, %v1635
        %v1690 = vpack.c.bf16 %v1638, %v1636
        %v1691 = vpack.c.bf16 %v1641, %v1639
        %v1692 = vpack.c.bf16 %v1642, %v1640
        %v1693 = vpack.c.bf16 %v1645, %v1643
        %v1694 = vpack.c.bf16 %v1646, %v1644
        %v1695 = vpack.c.bf16 %v1649, %v1647
        %v1696 = vpack.c.bf16 %v1650, %v1648
        %v1697 = vpack.c.bf16 %v1653, %v1651
        %v1698 = vpack.c.bf16 %v1654, %v1652
        %v1699 = vpack.c.bf16 %v1657, %v1655
        %v1700 = vpack.c.bf16 %v1658, %v1656
        %v1701 = vpack.c.bf16 %v1661, %v1659
        %v1702 = vpack.c.bf16 %v1662, %v1660
        %v1703 = vpack.c.bf16 %v1665, %v1663
        %v1704 = vpack.c.bf16 %v1666, %v1664
        %v1705 = vpack.c.bf16 %v1669, %v1667
        %v1706 = vpack.c.bf16 %v1670, %v1668
        %v1707 = vpack.c.bf16 %v1673, %v1671
        %v1708 = vpack.c.bf16 %v1674, %v1672
        %v1709 = vpack.c.bf16 %v1677, %v1675
        %v1710 = vpack.c.bf16 %v1678, %v1676
        %s1711 = scalar_lea.vmem [#allocation6], 384
        %v1712 = vld [vmem:[%s1711] sm:$0xf]
        %v1713 = vld [vmem:[%s1711 + $0x4] sm:$0xf]
        %v1714 = vld [vmem:[%s1711 + $0x8] sm:$0xf]
        %v1715 = vld [vmem:[%s1711 + $0xc] sm:$0xf]
        %v1716 = vld [vmem:[%s1711 + $0x10] sm:$0xf]
        %v1717 = vld [vmem:[%s1711 + $0x14] sm:$0xf]
        %v1718 = vld [vmem:[%s1711 + $0x18] sm:$0xf]
        %v1719 = vld [vmem:[%s1711 + $0x1c] sm:$0xf]
        %v1720 = vld [vmem:[%s1711 + $0x20] sm:$0xf]
        %v1721 = vld [vmem:[%s1711 + $0x24] sm:$0xf]
        %v1722 = vld [vmem:[%s1711 + $0x28] sm:$0xf]
        %v1723 = vld [vmem:[%s1711 + $0x2c] sm:$0xf]
        %v1724 = vld [vmem:[%s1711 + $0x30] sm:$0xf]
        %v1725 = vld [vmem:[%s1711 + $0x34] sm:$0xf]
        %v1726 = vld [vmem:[%s1711 + $0x38] sm:$0xf]
        %v1727 = vld [vmem:[%s1711 + $0x3c] sm:$0xf]
        %v1728 = vld [vmem:[%s1711 + $0x40] sm:$0xf]
        %v1729 = vld [vmem:[%s1711 + $0x44] sm:$0xf]
        %v1730 = vld [vmem:[%s1711 + $0x48] sm:$0xf]
        %v1731 = vld [vmem:[%s1711 + $0x4c] sm:$0xf]
        %v1732 = vld [vmem:[%s1711 + $0x50] sm:$0xf]
        %v1733 = vld [vmem:[%s1711 + $0x54] sm:$0xf]
        %v1734 = vld [vmem:[%s1711 + $0x58] sm:$0xf]
        %v1735 = vld [vmem:[%s1711 + $0x5c] sm:$0xf]
        %v1736 = vld [vmem:[%s1711 + $0x60] sm:$0xf]
        %v1737 = vld [vmem:[%s1711 + $0x64] sm:$0xf]
        %v1738 = vld [vmem:[%s1711 + $0x68] sm:$0xf]
        %v1739 = vld [vmem:[%s1711 + $0x6c] sm:$0xf]
        %v1740 = vld [vmem:[%s1711 + $0x70] sm:$0xf]
        %v1741 = vld [vmem:[%s1711 + $0x74] sm:$0xf]
        %v1742 = vld [vmem:[%s1711 + $0x78] sm:$0xf]
        %v1743 = vld [vmem:[%s1711 + $0x7c] sm:$0xf]
        %v1776 = vunpack.c.l.b16 %v1712
        %v1777 = vunpack.c.l.b16 %v1713
        %v1778 = vunpack.c.l.b16 %v1714
        %v1779 = vunpack.c.l.b16 %v1715
        %v1780 = vunpack.c.l.b16 %v1716
        %v1781 = vunpack.c.l.b16 %v1717
        %v1782 = vunpack.c.l.b16 %v1718
        %v1783 = vunpack.c.l.b16 %v1719
        %v1784 = vunpack.c.l.b16 %v1720
        %v1785 = vunpack.c.l.b16 %v1721
        %v1786 = vunpack.c.l.b16 %v1722
        %v1787 = vunpack.c.l.b16 %v1723
        %v1788 = vunpack.c.l.b16 %v1724
        %v1789 = vunpack.c.l.b16 %v1725
        %v1790 = vunpack.c.l.b16 %v1726
        %v1791 = vunpack.c.l.b16 %v1727
        %v1792 = vunpack.c.l.b16 %v1728
        %v1793 = vunpack.c.l.b16 %v1729
        %v1794 = vunpack.c.l.b16 %v1730
        %v1795 = vunpack.c.l.b16 %v1731
        %v1796 = vunpack.c.l.b16 %v1732
        %v1797 = vunpack.c.l.b16 %v1733
        %v1798 = vunpack.c.l.b16 %v1734
        %v1799 = vunpack.c.l.b16 %v1735
        %v1800 = vunpack.c.l.b16 %v1736
        %v1801 = vunpack.c.l.b16 %v1737
        %v1802 = vunpack.c.l.b16 %v1738
        %v1803 = vunpack.c.l.b16 %v1739
        %v1804 = vunpack.c.l.b16 %v1740
        %v1805 = vunpack.c.l.b16 %v1741
        %v1806 = vunpack.c.l.b16 %v1742
        %v1807 = vunpack.c.l.b16 %v1743
        %v1808 = vpack.c.b16 %v1777, %v1776
        %v1809 = vpack.c.b16 %v1779, %v1778
        %v1810 = vpack.c.b16 %v1781, %v1780
        %v1811 = vpack.c.b16 %v1783, %v1782
        %v1812 = vpack.c.b16 %v1785, %v1784
        %v1813 = vpack.c.b16 %v1787, %v1786
        %v1814 = vpack.c.b16 %v1789, %v1788
        %v1815 = vpack.c.b16 %v1791, %v1790
        %v1816 = vpack.c.b16 %v1793, %v1792
        %v1817 = vpack.c.b16 %v1795, %v1794
        %v1818 = vpack.c.b16 %v1797, %v1796
        %v1819 = vpack.c.b16 %v1799, %v1798
        %v1820 = vpack.c.b16 %v1801, %v1800
        %v1821 = vpack.c.b16 %v1803, %v1802
        %v1822 = vpack.c.b16 %v1805, %v1804
        %v1823 = vpack.c.b16 %v1807, %v1806
        %1840 = vmatprep.subr.bf16.mxu0 0
        %1841 = vmatpush1.bf16.msra.mxu0 %v1808
        %1842 = vmatprep.subr.bf16.mxu0 0
        %1843 = vmatpush1.bf16.msra.mxu0 %v1809
        %1844 = vmatprep.subr.bf16.mxu0 0
        %1845 = vmatpush1.bf16.msra.mxu0 %v1810
        %1846 = vmatprep.subr.bf16.mxu0 0
        %1847 = vmatpush1.bf16.msra.mxu0 %v1811
        %1848 = vmatprep.subr.bf16.mxu0 0
        %1849 = vmatpush1.bf16.msra.mxu0 %v1812
        %1850 = vmatprep.subr.bf16.mxu0 0
        %1851 = vmatpush1.bf16.msra.mxu0 %v1813
        %1852 = vmatprep.subr.bf16.mxu0 0
        %1853 = vmatpush1.bf16.msra.mxu0 %v1814
        %1854 = vmatprep.subr.bf16.mxu0 0
        %1855 = vmatpush1.bf16.msra.mxu0 %v1815
        %1856 = vmatprep.subr.bf16.mxu0 0
        %1857 = vmatpush1.bf16.msra.mxu0 %v1816
        %1858 = vmatprep.subr.bf16.mxu0 0
        %1859 = vmatpush1.bf16.msra.mxu0 %v1817
        %1860 = vmatprep.subr.bf16.mxu0 0
        %1861 = vmatpush1.bf16.msra.mxu0 %v1818
        %1862 = vmatprep.subr.bf16.mxu0 0
        %1863 = vmatpush1.bf16.msra.mxu0 %v1819
        %1864 = vmatprep.subr.bf16.mxu0 0
        %1865 = vmatpush1.bf16.msra.mxu0 %v1820
        %1866 = vmatprep.subr.bf16.mxu0 0
        %1867 = vmatpush1.bf16.msra.mxu0 %v1821
        %1868 = vmatprep.subr.bf16.mxu0 0
        %1869 = vmatpush1.bf16.msra.mxu0 %v1822
        %1870 = vmatprep.subr.bf16.mxu0 0
        %1871 = vmatpush1.bf16.msra.mxu0 %v1823
        %1872 = vmatprep.mubr.bf16.mxu0 %v1680
        %1873 = vmatmul.mubr.bf16.gmra.mrb[0].mxu0 %v1679
        %v1874 = vpop.f32.mrb[0].mxu0
        %v1875 = vadd.f32 0.0, %v1874
        %v1876 = vpop.f32.mrb[0].mxu0
        %v1877 = vpop.f32.mrb[0].mxu0
        %v1878 = vadd.f32 0.0, %v1877
        %v1879 = vpop.f32.mrb[0].mxu0
        %1880 = vmatprep.mubr.bf16.mxu0 %v1682
        %1881 = vmatmul.mubr.bf16.gmra.mrb[0].mxu0 %v1681
        %v1882 = vpop.f32.mrb[0].mxu0
        %v1883 = vadd.f32 0.0, %v1882
        %v1884 = vpop.f32.mrb[0].mxu0
        %v1885 = vpop.f32.mrb[0].mxu0
        %v1886 = vadd.f32 0.0, %v1885
        %v1887 = vpop.f32.mrb[0].mxu0
        %1888 = vmatprep.mubr.bf16.mxu0 %v1684
        %1889 = vmatmul.mubr.bf16.gmra.mrb[0].mxu0 %v1683
        %v1890 = vpop.f32.mrb[0].mxu0
        %v1891 = vadd.f32 0.0, %v1890
        %v1892 = vpop.f32.mrb[0].mxu0
        %v1893 = vpop.f32.mrb[0].mxu0
        %v1894 = vadd.f32 0.0, %v1893
        %v1895 = vpop.f32.mrb[0].mxu0
        %1896 = vmatprep.mubr.bf16.mxu0 %v1686
        %1897 = vmatmul.mubr.bf16.gmra.mrb[0].mxu0 %v1685
        %v1898 = vpop.f32.mrb[0].mxu0
        %v1899 = vadd.f32 0.0, %v1898
        %v1900 = vpop.f32.mrb[0].mxu0
        %v1901 = vpop.f32.mrb[0].mxu0
        %v1902 = vadd.f32 0.0, %v1901
        %v1903 = vpop.f32.mrb[0].mxu0
        %1904 = vmatprep.mubr.bf16.mxu0 %v1688
        %1905 = vmatmul.mubr.bf16.gmra.mrb[0].mxu0 %v1687
        %v1906 = vpop.f32.mrb[0].mxu0
        %v1907 = vadd.f32 0.0, %v1906
        %v1908 = vpop.f32.mrb[0].mxu0
        %v1909 = vpop.f32.mrb[0].mxu0
        %v1910 = vadd.f32 0.0, %v1909
        %v1911 = vpop.f32.mrb[0].mxu0
        %1912 = vmatprep.mubr.bf16.mxu0 %v1690
        %1913 = vmatmul.mubr.bf16.gmra.mrb[0].mxu0 %v1689
        %v1914 = vpop.f32.mrb[0].mxu0
        %v1915 = vadd.f32 0.0, %v1914
        %v1916 = vpop.f32.mrb[0].mxu0
        %v1917 = vpop.f32.mrb[0].mxu0
        %v1918 = vadd.f32 0.0, %v1917
        %v1919 = vpop.f32.mrb[0].mxu0
        %1920 = vmatprep.mubr.bf16.mxu0 %v1692
        %1921 = vmatmul.mubr.bf16.gmra.mrb[0].mxu0 %v1691
        %v1922 = vpop.f32.mrb[0].mxu0
        %v1923 = vadd.f32 0.0, %v1922
        %v1924 = vpop.f32.mrb[0].mxu0
        %v1925 = vpop.f32.mrb[0].mxu0
        %v1926 = vadd.f32 0.0, %v1925
        %v1927 = vpop.f32.mrb[0].mxu0
        %1928 = vmatprep.mubr.bf16.mxu0 %v1694
        %1929 = vmatmul.mubr.bf16.gmra.mrb[0].mxu0 %v1693
        %v1930 = vpop.f32.mrb[0].mxu0
        %v1931 = vadd.f32 0.0, %v1930
        %v1932 = vpop.f32.mrb[0].mxu0
        %v1933 = vpop.f32.mrb[0].mxu0
        %v1934 = vadd.f32 0.0, %v1933
        %v1935 = vpop.f32.mrb[0].mxu0
        %1936 = vmatprep.mubr.bf16.mxu0 %v1696
        %1937 = vmatmul.mubr.bf16.gmra.mrb[0].mxu0 %v1695
        %v1938 = vpop.f32.mrb[0].mxu0
        %v1939 = vadd.f32 0.0, %v1938
        %v1940 = vpop.f32.mrb[0].mxu0
        %v1941 = vpop.f32.mrb[0].mxu0
        %v1942 = vadd.f32 0.0, %v1941
        %v1943 = vpop.f32.mrb[0].mxu0
        %1944 = vmatprep.mubr.bf16.mxu0 %v1698
        %1945 = vmatmul.mubr.bf16.gmra.mrb[0].mxu0 %v1697
        %v1946 = vpop.f32.mrb[0].mxu0
        %v1947 = vadd.f32 0.0, %v1946
        %v1948 = vpop.f32.mrb[0].mxu0
        %v1949 = vpop.f32.mrb[0].mxu0
        %v1950 = vadd.f32 0.0, %v1949
        %v1951 = vpop.f32.mrb[0].mxu0
        %1952 = vmatprep.mubr.bf16.mxu0 %v1700
        %1953 = vmatmul.mubr.bf16.gmra.mrb[0].mxu0 %v1699
        %v1954 = vpop.f32.mrb[0].mxu0
        %v1955 = vadd.f32 0.0, %v1954
        %v1956 = vpop.f32.mrb[0].mxu0
        %v1957 = vpop.f32.mrb[0].mxu0
        %v1958 = vadd.f32 0.0, %v1957
        %v1959 = vpop.f32.mrb[0].mxu0
        %1960 = vmatprep.mubr.bf16.mxu0 %v1702
        %1961 = vmatmul.mubr.bf16.gmra.mrb[0].mxu0 %v1701
        %v1962 = vpop.f32.mrb[0].mxu0
        %v1963 = vadd.f32 0.0, %v1962
        %v1964 = vpop.f32.mrb[0].mxu0
        %v1965 = vpop.f32.mrb[0].mxu0
        %v1966 = vadd.f32 0.0, %v1965
        %v1967 = vpop.f32.mrb[0].mxu0
        %1968 = vmatprep.mubr.bf16.mxu0 %v1704
        %1969 = vmatmul.mubr.bf16.gmra.mrb[0].mxu0 %v1703
        %v1970 = vpop.f32.mrb[0].mxu0
        %v1971 = vadd.f32 0.0, %v1970
        %v1972 = vpop.f32.mrb[0].mxu0
        %v1973 = vpop.f32.mrb[0].mxu0
        %v1974 = vadd.f32 0.0, %v1973
        %v1975 = vpop.f32.mrb[0].mxu0
        %1976 = vmatprep.mubr.bf16.mxu0 %v1706
        %1977 = vmatmul.mubr.bf16.gmra.mrb[0].mxu0 %v1705
        %v1978 = vpop.f32.mrb[0].mxu0
        %v1979 = vadd.f32 0.0, %v1978
        %v1980 = vpop.f32.mrb[0].mxu0
        %v1981 = vpop.f32.mrb[0].mxu0
        %v1982 = vadd.f32 0.0, %v1981
        %v1983 = vpop.f32.mrb[0].mxu0
        %1984 = vmatprep.mubr.bf16.mxu0 %v1708
        %1985 = vmatmul.mubr.bf16.gmra.mrb[0].mxu0 %v1707
        %v1986 = vpop.f32.mrb[0].mxu0
        %v1987 = vadd.f32 0.0, %v1986
        %v1988 = vpop.f32.mrb[0].mxu0
        %v1989 = vpop.f32.mrb[0].mxu0
        %v1990 = vadd.f32 0.0, %v1989
        %v1991 = vpop.f32.mrb[0].mxu0
        %1992 = vmatprep.mubr.bf16.mxu0 %v1710
        %1993 = vmatmul.mubr.bf16.gmra.mrb[0].mxu0 %v1709
        %v1994 = vpop.f32.mrb[0].mxu0
        %v1995 = vadd.f32 0.0, %v1994
        %v1996 = vpop.f32.mrb[0].mxu0
        %v1997 = vpop.f32.mrb[0].mxu0
        %v1998 = vadd.f32 0.0, %v1997
        %v1999 = vpop.f32.mrb[0].mxu0
        %2000 = vdwg.mxu0
        %v2033 = vunpack.c.l.b16 %v1583
        %v2034 = vunpack.c.l.b16 %v1584
        %v2035 = vunpack.c.l.b16 %v1585
        %v2036 = vunpack.c.l.b16 %v1586
        %v2037 = vunpack.c.l.b16 %v1587
        %v2038 = vunpack.c.l.b16 %v1588
        %v2039 = vunpack.c.l.b16 %v1589
        %v2040 = vunpack.c.l.b16 %v1590
        %v2041 = vunpack.c.l.b16 %v1591
        %v2042 = vunpack.c.l.b16 %v1592
        %v2043 = vunpack.c.l.b16 %v1593
        %v2044 = vunpack.c.l.b16 %v1594
        %v2045 = vunpack.c.l.b16 %v1595
        %v2046 = vunpack.c.l.b16 %v1596
        %v2047 = vunpack.c.l.b16 %v1597
        %v2048 = vunpack.c.l.b16 %v1598
        %v2049 = vunpack.c.l.b16 %v1599
        %v2050 = vunpack.c.l.b16 %v1600
        %v2051 = vunpack.c.l.b16 %v1601
        %v2052 = vunpack.c.l.b16 %v1602
        %v2053 = vunpack.c.l.b16 %v1603
        %v2054 = vunpack.c.l.b16 %v1604
        %v2055 = vunpack.c.l.b16 %v1605
        %v2056 = vunpack.c.l.b16 %v1606
        %v2057 = vunpack.c.l.b16 %v1607
        %v2058 = vunpack.c.l.b16 %v1608
        %v2059 = vunpack.c.l.b16 %v1609
        %v2060 = vunpack.c.l.b16 %v1610
        %v2061 = vunpack.c.l.b16 %v1611
        %v2062 = vunpack.c.l.b16 %v1612
        %v2063 = vunpack.c.l.b16 %v1613
        %v2064 = vunpack.c.l.b16 %v1614
        %v2065 = vpack.c.b16 %v2034, %v2033
        %v2066 = vpack.c.b16 %v2036, %v2035
        %v2067 = vpack.c.b16 %v2038, %v2037
        %v2068 = vpack.c.b16 %v2040, %v2039
        %v2069 = vpack.c.b16 %v2042, %v2041
        %v2070 = vpack.c.b16 %v2044, %v2043
        %v2071 = vpack.c.b16 %v2046, %v2045
        %v2072 = vpack.c.b16 %v2048, %v2047
        %v2073 = vpack.c.b16 %v2050, %v2049
        %v2074 = vpack.c.b16 %v2052, %v2051
        %v2075 = vpack.c.b16 %v2054, %v2053
        %v2076 = vpack.c.b16 %v2056, %v2055
        %v2077 = vpack.c.b16 %v2058, %v2057
        %v2078 = vpack.c.b16 %v2060, %v2059
        %v2079 = vpack.c.b16 %v2062, %v2061
        %v2080 = vpack.c.b16 %v2064, %v2063
        %2097 = vmatprep.subr.bf16.mxu0 0
        %2098 = vmatpush1.bf16.msra.mxu0 %v2065
        %2099 = vmatprep.subr.bf16.mxu0 0
        %2100 = vmatpush1.bf16.msra.mxu0 %v2066
        %2101 = vmatprep.subr.bf16.mxu0 0
        %2102 = vmatpush1.bf16.msra.mxu0 %v2067
        %2103 = vmatprep.subr.bf16.mxu0 0
        %2104 = vmatpush1.bf16.msra.mxu0 %v2068
        %2105 = vmatprep.subr.bf16.mxu0 0
        %2106 = vmatpush1.bf16.msra.mxu0 %v2069
        %2107 = vmatprep.subr.bf16.mxu0 0
        %2108 = vmatpush1.bf16.msra.mxu0 %v2070
        %2109 = vmatprep.subr.bf16.mxu0 0
        %2110 = vmatpush1.bf16.msra.mxu0 %v2071
        %2111 = vmatprep.subr.bf16.mxu0 0
        %2112 = vmatpush1.bf16.msra.mxu0 %v2072
        %2113 = vmatprep.subr.bf16.mxu0 0
        %2114 = vmatpush1.bf16.msra.mxu0 %v2073
        %2115 = vmatprep.subr.bf16.mxu0 0
        %2116 = vmatpush1.bf16.msra.mxu0 %v2074
        %2117 = vmatprep.subr.bf16.mxu0 0
        %2118 = vmatpush1.bf16.msra.mxu0 %v2075
        %2119 = vmatprep.subr.bf16.mxu0 0
        %2120 = vmatpush1.bf16.msra.mxu0 %v2076
        %2121 = vmatprep.subr.bf16.mxu0 0
        %2122 = vmatpush1.bf16.msra.mxu0 %v2077
        %2123 = vmatprep.subr.bf16.mxu0 0
        %2124 = vmatpush1.bf16.msra.mxu0 %v2078
        %2125 = vmatprep.subr.bf16.mxu0 0
        %2126 = vmatpush1.bf16.msra.mxu0 %v2079
        %2127 = vmatprep.subr.bf16.mxu0 0
        %2128 = vmatpush1.bf16.msra.mxu0 %v2080
        %2129 = vmatprep.mubr.bf16.mxu0 %v1551
        %2130 = vmatmul.mubr.bf16.gmra.mrb[0].mxu0 %v1550
        %v2131 = vpop.f32.mrb[0].mxu0
        %v2132 = vadd.f32 %v1875, %v2131
        %v2133 = vpop.f32.mrb[0].mxu0
        %v2134 = vpop.f32.mrb[0].mxu0
        %v2135 = vadd.f32 %v1878, %v2134
        %v2136 = vpop.f32.mrb[0].mxu0
        %2137 = vmatprep.mubr.bf16.mxu0 %v1553
        %2138 = vmatmul.mubr.bf16.gmra.mrb[0].mxu0 %v1552
        %v2139 = vpop.f32.mrb[0].mxu0
        %v2140 = vadd.f32 %v1883, %v2139
        %v2141 = vpop.f32.mrb[0].mxu0
        %v2142 = vpop.f32.mrb[0].mxu0
        %v2143 = vadd.f32 %v1886, %v2142
        %v2144 = vpop.f32.mrb[0].mxu0
        %2145 = vmatprep.mubr.bf16.mxu0 %v1555
        %2146 = vmatmul.mubr.bf16.gmra.mrb[0].mxu0 %v1554
        %v2147 = vpop.f32.mrb[0].mxu0
        %v2148 = vadd.f32 %v1891, %v2147
        %v2149 = vpop.f32.mrb[0].mxu0
        %v2150 = vpop.f32.mrb[0].mxu0
        %v2151 = vadd.f32 %v1894, %v2150
        %v2152 = vpop.f32.mrb[0].mxu0
        %2153 = vmatprep.mubr.bf16.mxu0 %v1557
        %2154 = vmatmul.mubr.bf16.gmra.mrb[0].mxu0 %v1556
        %v2155 = vpop.f32.mrb[0].mxu0
        %v2156 = vadd.f32 %v1899, %v2155
        %v2157 = vpop.f32.mrb[0].mxu0
        %v2158 = vpop.f32.mrb[0].mxu0
        %v2159 = vadd.f32 %v1902, %v2158
        %v2160 = vpop.f32.mrb[0].mxu0
        %2161 = vmatprep.mubr.bf16.mxu0 %v1559
        %2162 = vmatmul.mubr.bf16.gmra.mrb[0].mxu0 %v1558
        %v2163 = vpop.f32.mrb[0].mxu0
        %v2164 = vadd.f32 %v1907, %v2163
        %v2165 = vpop.f32.mrb[0].mxu0
        %v2166 = vpop.f32.mrb[0].mxu0
        %v2167 = vadd.f32 %v1910, %v2166
        %v2168 = vpop.f32.mrb[0].mxu0
        %2169 = vmatprep.mubr.bf16.mxu0 %v1561
        %2170 = vmatmul.mubr.bf16.gmra.mrb[0].mxu0 %v1560
        %v2171 = vpop.f32.mrb[0].mxu0
        %v2172 = vadd.f32 %v1915, %v2171
        %v2173 = vpop.f32.mrb[0].mxu0
        %v2174 = vpop.f32.mrb[0].mxu0
        %v2175 = vadd.f32 %v1918, %v2174
        %v2176 = vpop.f32.mrb[0].mxu0
        %2177 = vmatprep.mubr.bf16.mxu0 %v1563
        %2178 = vmatmul.mubr.bf16.gmra.mrb[0].mxu0 %v1562
        %v2179 = vpop.f32.mrb[0].mxu0
        %v2180 = vadd.f32 %v1923, %v2179
        %v2181 = vpop.f32.mrb[0].mxu0
        %v2182 = vpop.f32.mrb[0].mxu0
        %v2183 = vadd.f32 %v1926, %v2182
        %v2184 = vpop.f32.mrb[0].mxu0
        %2185 = vmatprep.mubr.bf16.mxu0 %v1565
        %2186 = vmatmul.mubr.bf16.gmra.mrb[0].mxu0 %v1564
        %v2187 = vpop.f32.mrb[0].mxu0
        %v2188 = vadd.f32 %v1931, %v2187
        %v2189 = vpop.f32.mrb[0].mxu0
        %v2190 = vpop.f32.mrb[0].mxu0
        %v2191 = vadd.f32 %v1934, %v2190
        %v2192 = vpop.f32.mrb[0].mxu0
        %2193 = vmatprep.mubr.bf16.mxu0 %v1567
        %2194 = vmatmul.mubr.bf16.gmra.mrb[0].mxu0 %v1566
        %v2195 = vpop.f32.mrb[0].mxu0
        %v2196 = vadd.f32 %v1939, %v2195
        %v2197 = vpop.f32.mrb[0].mxu0
        %v2198 = vpop.f32.mrb[0].mxu0
        %v2199 = vadd.f32 %v1942, %v2198
        %v2200 = vpop.f32.mrb[0].mxu0
        %2201 = vmatprep.mubr.bf16.mxu0 %v1569
        %2202 = vmatmul.mubr.bf16.gmra.mrb[0].mxu0 %v1568
        %v2203 = vpop.f32.mrb[0].mxu0
        %v2204 = vadd.f32 %v1947, %v2203
        %v2205 = vpop.f32.mrb[0].mxu0
        %v2206 = vpop.f32.mrb[0].mxu0
        %v2207 = vadd.f32 %v1950, %v2206
        %v2208 = vpop.f32.mrb[0].mxu0
        %2209 = vmatprep.mubr.bf16.mxu0 %v1571
        %2210 = vmatmul.mubr.bf16.gmra.mrb[0].mxu0 %v1570
        %v2211 = vpop.f32.mrb[0].mxu0
        %v2212 = vadd.f32 %v1955, %v2211
        %v2213 = vpop.f32.mrb[0].mxu0
        %v2214 = vpop.f32.mrb[0].mxu0
        %v2215 = vadd.f32 %v1958, %v2214
        %v2216 = vpop.f32.mrb[0].mxu0
        %2217 = vmatprep.mubr.bf16.mxu0 %v1573
        %2218 = vmatmul.mubr.bf16.gmra.mrb[0].mxu0 %v1572
        %v2219 = vpop.f32.mrb[0].mxu0
        %v2220 = vadd.f32 %v1963, %v2219
        %v2221 = vpop.f32.mrb[0].mxu0
        %v2222 = vpop.f32.mrb[0].mxu0
        %v2223 = vadd.f32 %v1966, %v2222
        %v2224 = vpop.f32.mrb[0].mxu0
        %2225 = vmatprep.mubr.bf16.mxu0 %v1575
        %2226 = vmatmul.mubr.bf16.gmra.mrb[0].mxu0 %v1574
        %v2227 = vpop.f32.mrb[0].mxu0
        %v2228 = vadd.f32 %v1971, %v2227
        %v2229 = vpop.f32.mrb[0].mxu0
        %v2230 = vpop.f32.mrb[0].mxu0
        %v2231 = vadd.f32 %v1974, %v2230
        %v2232 = vpop.f32.mrb[0].mxu0
        %2233 = vmatprep.mubr.bf16.mxu0 %v1577
        %2234 = vmatmul.mubr.bf16.gmra.mrb[0].mxu0 %v1576
        %v2235 = vpop.f32.mrb[0].mxu0
        %v2236 = vadd.f32 %v1979, %v2235
        %v2237 = vpop.f32.mrb[0].mxu0
        %v2238 = vpop.f32.mrb[0].mxu0
        %v2239 = vadd.f32 %v1982, %v2238
        %v2240 = vpop.f32.mrb[0].mxu0
        %2241 = vmatprep.mubr.bf16.mxu0 %v1579
        %2242 = vmatmul.mubr.bf16.gmra.mrb[0].mxu0 %v1578
        %v2243 = vpop.f32.mrb[0].mxu0
        %v2244 = vadd.f32 %v1987, %v2243
        %v2245 = vpop.f32.mrb[0].mxu0
        %v2246 = vpop.f32.mrb[0].mxu0
        %v2247 = vadd.f32 %v1990, %v2246
        %v2248 = vpop.f32.mrb[0].mxu0
        %2249 = vmatprep.mubr.bf16.mxu0 %v1581
        %2250 = vmatmul.mubr.bf16.gmra.mrb[0].mxu0 %v1580
        %v2251 = vpop.f32.mrb[0].mxu0
        %v2252 = vadd.f32 %v1995, %v2251
        %v2253 = vpop.f32.mrb[0].mxu0
        %v2254 = vpop.f32.mrb[0].mxu0
        %v2255 = vadd.f32 %v1998, %v2254
        %v2256 = vpop.f32.mrb[0].mxu0
        %2257 = vdwg.mxu0
        %v2258 = vadd.f32 %v2132, %v1420
        %v2259 = vadd.f32 %v2135, %v1420
        %v2260 = vadd.f32 %v2140, %v1420
        %v2261 = vadd.f32 %v2143, %v1420
        %v2262 = vadd.f32 %v2148, %v1420
        %v2263 = vadd.f32 %v2151, %v1420
        %v2264 = vadd.f32 %v2156, %v1420
        %v2265 = vadd.f32 %v2159, %v1420
        %v2266 = vadd.f32 %v2164, %v1420
        %v2267 = vadd.f32 %v2167, %v1420
        %v2268 = vadd.f32 %v2172, %v1420
        %v2269 = vadd.f32 %v2175, %v1420
        %v2270 = vadd.f32 %v2180, %v1420
        %v2271 = vadd.f32 %v2183, %v1420
        %v2272 = vadd.f32 %v2188, %v1420
        %v2273 = vadd.f32 %v2191, %v1420
        %v2274 = vadd.f32 %v2196, %v1420
        %v2275 = vadd.f32 %v2199, %v1420
        %v2276 = vadd.f32 %v2204, %v1420
        %v2277 = vadd.f32 %v2207, %v1420
        %v2278 = vadd.f32 %v2212, %v1420
        %v2279 = vadd.f32 %v2215, %v1420
        %v2280 = vadd.f32 %v2220, %v1420
        %v2281 = vadd.f32 %v2223, %v1420
        %v2282 = vadd.f32 %v2228, %v1420
        %v2283 = vadd.f32 %v2231, %v1420
        %v2284 = vadd.f32 %v2236, %v1420
        %v2285 = vadd.f32 %v2239, %v1420
        %v2286 = vadd.f32 %v2244, %v1420
        %v2287 = vadd.f32 %v2247, %v1420
        %v2288 = vadd.f32 %v2252, %v1420
        %v2289 = vadd.f32 %v2255, %v1420
        %s2290 = scalar_lea.vmem %s203, 256 [#allocation8]
        %2291 = vst [vmem:[%s2290] sm:$0xff] %v2258
        %2292 = vst [vmem:[%s2290 + $0x8] sm:$0xff] %v2259
        %2293 = vst [vmem:[%s2290 + $0x10] sm:$0xff] %v2260
        %2294 = vst [vmem:[%s2290 + $0x18] sm:$0xff] %v2261
        %2295 = vst [vmem:[%s2290 + $0x20] sm:$0xff] %v2262
        %2296 = vst [vmem:[%s2290 + $0x28] sm:$0xff] %v2263
        %2297 = vst [vmem:[%s2290 + $0x30] sm:$0xff] %v2264
        %2298 = vst [vmem:[%s2290 + $0x38] sm:$0xff] %v2265
        %2299 = vst [vmem:[%s2290 + $0x40] sm:$0xff] %v2266
        %2300 = vst [vmem:[%s2290 + $0x48] sm:$0xff] %v2267
        %2301 = vst [vmem:[%s2290 + $0x50] sm:$0xff] %v2268
        %2302 = vst [vmem:[%s2290 + $0x58] sm:$0xff] %v2269
        %2303 = vst [vmem:[%s2290 + $0x60] sm:$0xff] %v2270
        %2304 = vst [vmem:[%s2290 + $0x68] sm:$0xff] %v2271
        %2305 = vst [vmem:[%s2290 + $0x70] sm:$0xff] %v2272
        %2306 = vst [vmem:[%s2290 + $0x78] sm:$0xff] %v2273
        %2307 = vst [vmem:[%s2290 + $0x80] sm:$0xff] %v2274
        %2308 = vst [vmem:[%s2290 + $0x88] sm:$0xff] %v2275
        %2309 = vst [vmem:[%s2290 + $0x90] sm:$0xff] %v2276
        %2310 = vst [vmem:[%s2290 + $0x98] sm:$0xff] %v2277
        %2311 = vst [vmem:[%s2290 + $0xa0] sm:$0xff] %v2278
        %2312 = vst [vmem:[%s2290 + $0xa8] sm:$0xff] %v2279
        %2313 = vst [vmem:[%s2290 + $0xb0] sm:$0xff] %v2280
        %2314 = vst [vmem:[%s2290 + $0xb8] sm:$0xff] %v2281
        %2315 = vst [vmem:[%s2290 + $0xc0] sm:$0xff] %v2282
        %2316 = vst [vmem:[%s2290 + $0xc8] sm:$0xff] %v2283
        %2317 = vst [vmem:[%s2290 + $0xd0] sm:$0xff] %v2284
        %2318 = vst [vmem:[%s2290 + $0xd8] sm:$0xff] %v2285
        %2319 = vst [vmem:[%s2290 + $0xe0] sm:$0xff] %v2286
        %2320 = vst [vmem:[%s2290 + $0xe8] sm:$0xff] %v2287
        %2321 = vst [vmem:[%s2290 + $0xf0] sm:$0xff] %v2288
        %2322 = vst [vmem:[%s2290 + $0xf8] sm:$0xff] %v2289
        %v2323 = vld [vmem:[%s224] sm:$0xff]
        %v2324 = vld [vmem:[%s224 + $0x8] sm:$0xff]
        %v2325 = vld [vmem:[%s224 + $0x10] sm:$0xff]
        %v2326 = vld [vmem:[%s224 + $0x18] sm:$0xff]
        %v2327 = vld [vmem:[%s224 + $0x20] sm:$0xff]
        %v2328 = vld [vmem:[%s224 + $0x28] sm:$0xff]
        %v2329 = vld [vmem:[%s224 + $0x30] sm:$0xff]
        %v2330 = vld [vmem:[%s224 + $0x38] sm:$0xff]
        %v2331 = vld [vmem:[%s224 + $0x40] sm:$0xff]
        %v2332 = vld [vmem:[%s224 + $0x48] sm:$0xff]
        %v2333 = vld [vmem:[%s224 + $0x50] sm:$0xff]
        %v2334 = vld [vmem:[%s224 + $0x58] sm:$0xff]
        %v2335 = vld [vmem:[%s224 + $0x60] sm:$0xff]
        %v2336 = vld [vmem:[%s224 + $0x68] sm:$0xff]
        %v2337 = vld [vmem:[%s224 + $0x70] sm:$0xff]
        %v2338 = vld [vmem:[%s224 + $0x78] sm:$0xff]
        %v2339 = vld [vmem:[%s224 + $0x80] sm:$0xff]
        %v2340 = vld [vmem:[%s224 + $0x88] sm:$0xff]
        %v2341 = vld [vmem:[%s224 + $0x90] sm:$0xff]
        %v2342 = vld [vmem:[%s224 + $0x98] sm:$0xff]
        %v2343 = vld [vmem:[%s224 + $0xa0] sm:$0xff]
        %v2344 = vld [vmem:[%s224 + $0xa8] sm:$0xff]
        %v2345 = vld [vmem:[%s224 + $0xb0] sm:$0xff]
        %v2346 = vld [vmem:[%s224 + $0xb8] sm:$0xff]
        %v2347 = vld [vmem:[%s224 + $0xc0] sm:$0xff]
        %v2348 = vld [vmem:[%s224 + $0xc8] sm:$0xff]
        %v2349 = vld [vmem:[%s224 + $0xd0] sm:$0xff]
        %v2350 = vld [vmem:[%s224 + $0xd8] sm:$0xff]
        %v2351 = vld [vmem:[%s224 + $0xe0] sm:$0xff]
        %v2352 = vld [vmem:[%s224 + $0xe8] sm:$0xff]
        %v2353 = vld [vmem:[%s224 + $0xf0] sm:$0xff]
        %v2354 = vld [vmem:[%s224 + $0xf8] sm:$0xff]
        %v2355 = vld [vmem:[%s224 + $0x100] sm:$0xff]
        %v2356 = vld [vmem:[%s224 + $0x108] sm:$0xff]
        %v2357 = vld [vmem:[%s224 + $0x110] sm:$0xff]
        %v2358 = vld [vmem:[%s224 + $0x118] sm:$0xff]
        %v2359 = vld [vmem:[%s224 + $0x120] sm:$0xff]
        %v2360 = vld [vmem:[%s224 + $0x128] sm:$0xff]
        %v2361 = vld [vmem:[%s224 + $0x130] sm:$0xff]
        %v2362 = vld [vmem:[%s224 + $0x138] sm:$0xff]
        %v2363 = vld [vmem:[%s224 + $0x140] sm:$0xff]
        %v2364 = vld [vmem:[%s224 + $0x148] sm:$0xff]
        %v2365 = vld [vmem:[%s224 + $0x150] sm:$0xff]
        %v2366 = vld [vmem:[%s224 + $0x158] sm:$0xff]
        %v2367 = vld [vmem:[%s224 + $0x160] sm:$0xff]
        %v2368 = vld [vmem:[%s224 + $0x168] sm:$0xff]
        %v2369 = vld [vmem:[%s224 + $0x170] sm:$0xff]
        %v2370 = vld [vmem:[%s224 + $0x178] sm:$0xff]
        %v2371 = vld [vmem:[%s224 + $0x180] sm:$0xff]
        %v2372 = vld [vmem:[%s224 + $0x188] sm:$0xff]
        %v2373 = vld [vmem:[%s224 + $0x190] sm:$0xff]
        %v2374 = vld [vmem:[%s224 + $0x198] sm:$0xff]
        %v2375 = vld [vmem:[%s224 + $0x1a0] sm:$0xff]
        %v2376 = vld [vmem:[%s224 + $0x1a8] sm:$0xff]
        %v2377 = vld [vmem:[%s224 + $0x1b0] sm:$0xff]
        %v2378 = vld [vmem:[%s224 + $0x1b8] sm:$0xff]
        %v2379 = vld [vmem:[%s224 + $0x1c0] sm:$0xff]
        %v2380 = vld [vmem:[%s224 + $0x1c8] sm:$0xff]
        %v2381 = vld [vmem:[%s224 + $0x1d0] sm:$0xff]
        %v2382 = vld [vmem:[%s224 + $0x1d8] sm:$0xff]
        %v2383 = vld [vmem:[%s224 + $0x1e0] sm:$0xff]
        %v2384 = vld [vmem:[%s224 + $0x1e8] sm:$0xff]
        %v2385 = vld [vmem:[%s224 + $0x1f0] sm:$0xff]
        %v2386 = vld [vmem:[%s224 + $0x1f8] sm:$0xff]
        %v2387 = vpack.c.bf16 %v2325, %v2323
        %v2388 = vpack.c.bf16 %v2326, %v2324
        %v2389 = vpack.c.bf16 %v2329, %v2327
        %v2390 = vpack.c.bf16 %v2330, %v2328
        %v2391 = vpack.c.bf16 %v2333, %v2331
        %v2392 = vpack.c.bf16 %v2334, %v2332
        %v2393 = vpack.c.bf16 %v2337, %v2335
        %v2394 = vpack.c.bf16 %v2338, %v2336
        %v2395 = vpack.c.bf16 %v2341, %v2339
        %v2396 = vpack.c.bf16 %v2342, %v2340
        %v2397 = vpack.c.bf16 %v2345, %v2343
        %v2398 = vpack.c.bf16 %v2346, %v2344
        %v2399 = vpack.c.bf16 %v2349, %v2347
        %v2400 = vpack.c.bf16 %v2350, %v2348
        %v2401 = vpack.c.bf16 %v2353, %v2351
        %v2402 = vpack.c.bf16 %v2354, %v2352
        %v2403 = vpack.c.bf16 %v2357, %v2355
        %v2404 = vpack.c.bf16 %v2358, %v2356
        %v2405 = vpack.c.bf16 %v2361, %v2359
        %v2406 = vpack.c.bf16 %v2362, %v2360
        %v2407 = vpack.c.bf16 %v2365, %v2363
        %v2408 = vpack.c.bf16 %v2366, %v2364
        %v2409 = vpack.c.bf16 %v2369, %v2367
        %v2410 = vpack.c.bf16 %v2370, %v2368
        %v2411 = vpack.c.bf16 %v2373, %v2371
        %v2412 = vpack.c.bf16 %v2374, %v2372
        %v2413 = vpack.c.bf16 %v2377, %v2375
        %v2414 = vpack.c.bf16 %v2378, %v2376
        %v2415 = vpack.c.bf16 %v2381, %v2379
        %v2416 = vpack.c.bf16 %v2382, %v2380
        %v2417 = vpack.c.bf16 %v2385, %v2383
        %v2418 = vpack.c.bf16 %v2386, %v2384
        %s2419 = scalar_lea.vmem [#allocation6], 512
        %v2420 = vld [vmem:[%s2419] sm:$0xf]
        %v2421 = vld [vmem:[%s2419 + $0x4] sm:$0xf]
        %v2422 = vld [vmem:[%s2419 + $0x8] sm:$0xf]
        %v2423 = vld [vmem:[%s2419 + $0xc] sm:$0xf]
        %v2424 = vld [vmem:[%s2419 + $0x10] sm:$0xf]
        %v2425 = vld [vmem:[%s2419 + $0x14] sm:$0xf]
        %v2426 = vld [vmem:[%s2419 + $0x18] sm:$0xf]
        %v2427 = vld [vmem:[%s2419 + $0x1c] sm:$0xf]
        %v2428 = vld [vmem:[%s2419 + $0x20] sm:$0xf]
        %v2429 = vld [vmem:[%s2419 + $0x24] sm:$0xf]
        %v2430 = vld [vmem:[%s2419 + $0x28] sm:$0xf]
        %v2431 = vld [vmem:[%s2419 + $0x2c] sm:$0xf]
        %v2432 = vld [vmem:[%s2419 + $0x30] sm:$0xf]
        %v2433 = vld [vmem:[%s2419 + $0x34] sm:$0xf]
        %v2434 = vld [vmem:[%s2419 + $0x38] sm:$0xf]
        %v2435 = vld [vmem:[%s2419 + $0x3c] sm:$0xf]
        %v2436 = vld [vmem:[%s2419 + $0x40] sm:$0xf]
        %v2437 = vld [vmem:[%s2419 + $0x44] sm:$0xf]
        %v2438 = vld [vmem:[%s2419 + $0x48] sm:$0xf]
        %v2439 = vld [vmem:[%s2419 + $0x4c] sm:$0xf]
        %v2440 = vld [vmem:[%s2419 + $0x50] sm:$0xf]
        %v2441 = vld [vmem:[%s2419 + $0x54] sm:$0xf]
        %v2442 = vld [vmem:[%s2419 + $0x58] sm:$0xf]
        %v2443 = vld [vmem:[%s2419 + $0x5c] sm:$0xf]
        %v2444 = vld [vmem:[%s2419 + $0x60] sm:$0xf]
        %v2445 = vld [vmem:[%s2419 + $0x64] sm:$0xf]
        %v2446 = vld [vmem:[%s2419 + $0x68] sm:$0xf]
        %v2447 = vld [vmem:[%s2419 + $0x6c] sm:$0xf]
        %v2448 = vld [vmem:[%s2419 + $0x70] sm:$0xf]
        %v2449 = vld [vmem:[%s2419 + $0x74] sm:$0xf]
        %v2450 = vld [vmem:[%s2419 + $0x78] sm:$0xf]
        %v2451 = vld [vmem:[%s2419 + $0x7c] sm:$0xf]
        %s2452 = scalar_lea.vmem [#allocation2], 64
        %v2453 = vld [vmem:[%s2452] sm:$0xff]
        %v2454 = vld [vmem:[%s2452 + $0x8] sm:$0xff]
        %v2455 = vld [vmem:[%s2452 + $0x10] sm:$0xff]
        %v2456 = vld [vmem:[%s2452 + $0x18] sm:$0xff]
        %v2457 = vld [vmem:[%s2452 + $0x20] sm:$0xff]
        %v2458 = vld [vmem:[%s2452 + $0x28] sm:$0xff]
        %v2459 = vld [vmem:[%s2452 + $0x30] sm:$0xff]
        %v2460 = vld [vmem:[%s2452 + $0x38] sm:$0xff]
        %v2461 = vld [vmem:[%s2452 + $0x40] sm:$0xff]
        %v2462 = vld [vmem:[%s2452 + $0x48] sm:$0xff]
        %v2463 = vld [vmem:[%s2452 + $0x50] sm:$0xff]
        %v2464 = vld [vmem:[%s2452 + $0x58] sm:$0xff]
        %v2465 = vld [vmem:[%s2452 + $0x60] sm:$0xff]
        %v2466 = vld [vmem:[%s2452 + $0x68] sm:$0xff]
        %v2467 = vld [vmem:[%s2452 + $0x70] sm:$0xff]
        %v2468 = vld [vmem:[%s2452 + $0x78] sm:$0xff]
        %v2469 = vld [vmem:[%s2452 + $0x80] sm:$0xff]
        %v2470 = vld [vmem:[%s2452 + $0x88] sm:$0xff]
        %v2471 = vld [vmem:[%s2452 + $0x90] sm:$0xff]
        %v2472 = vld [vmem:[%s2452 + $0x98] sm:$0xff]
        %v2473 = vld [vmem:[%s2452 + $0xa0] sm:$0xff]
        %v2474 = vld [vmem:[%s2452 + $0xa8] sm:$0xff]
        %v2475 = vld [vmem:[%s2452 + $0xb0] sm:$0xff]
        %v2476 = vld [vmem:[%s2452 + $0xb8] sm:$0xff]
        %v2477 = vld [vmem:[%s2452 + $0xc0] sm:$0xff]
        %v2478 = vld [vmem:[%s2452 + $0xc8] sm:$0xff]
        %v2479 = vld [vmem:[%s2452 + $0xd0] sm:$0xff]
        %v2480 = vld [vmem:[%s2452 + $0xd8] sm:$0xff]
        %v2481 = vld [vmem:[%s2452 + $0xe0] sm:$0xff]
        %v2482 = vld [vmem:[%s2452 + $0xe8] sm:$0xff]
        %v2483 = vld [vmem:[%s2452 + $0xf0] sm:$0xff]
        %v2484 = vld [vmem:[%s2452 + $0xf8] sm:$0xff]
        %v2485 = vld [vmem:[%s2452 + $0x100] sm:$0xff]
        %v2486 = vld [vmem:[%s2452 + $0x108] sm:$0xff]
        %v2487 = vld [vmem:[%s2452 + $0x110] sm:$0xff]
        %v2488 = vld [vmem:[%s2452 + $0x118] sm:$0xff]
        %v2489 = vld [vmem:[%s2452 + $0x120] sm:$0xff]
        %v2490 = vld [vmem:[%s2452 + $0x128] sm:$0xff]
        %v2491 = vld [vmem:[%s2452 + $0x130] sm:$0xff]
        %v2492 = vld [vmem:[%s2452 + $0x138] sm:$0xff]
        %v2493 = vld [vmem:[%s2452 + $0x140] sm:$0xff]
        %v2494 = vld [vmem:[%s2452 + $0x148] sm:$0xff]
        %v2495 = vld [vmem:[%s2452 + $0x150] sm:$0xff]
        %v2496 = vld [vmem:[%s2452 + $0x158] sm:$0xff]
        %v2497 = vld [vmem:[%s2452 + $0x160] sm:$0xff]
        %v2498 = vld [vmem:[%s2452 + $0x168] sm:$0xff]
        %v2499 = vld [vmem:[%s2452 + $0x170] sm:$0xff]
        %v2500 = vld [vmem:[%s2452 + $0x178] sm:$0xff]
        %v2501 = vld [vmem:[%s2452 + $0x180] sm:$0xff]
        %v2502 = vld [vmem:[%s2452 + $0x188] sm:$0xff]
        %v2503 = vld [vmem:[%s2452 + $0x190] sm:$0xff]
        %v2504 = vld [vmem:[%s2452 + $0x198] sm:$0xff]
        %v2505 = vld [vmem:[%s2452 + $0x1a0] sm:$0xff]
        %v2506 = vld [vmem:[%s2452 + $0x1a8] sm:$0xff]
        %v2507 = vld [vmem:[%s2452 + $0x1b0] sm:$0xff]
        %v2508 = vld [vmem:[%s2452 + $0x1b8] sm:$0xff]
        %v2509 = vld [vmem:[%s2452 + $0x1c0] sm:$0xff]
        %v2510 = vld [vmem:[%s2452 + $0x1c8] sm:$0xff]
        %v2511 = vld [vmem:[%s2452 + $0x1d0] sm:$0xff]
        %v2512 = vld [vmem:[%s2452 + $0x1d8] sm:$0xff]
        %v2513 = vld [vmem:[%s2452 + $0x1e0] sm:$0xff]
        %v2514 = vld [vmem:[%s2452 + $0x1e8] sm:$0xff]
        %v2515 = vld [vmem:[%s2452 + $0x1f0] sm:$0xff]
        %v2516 = vld [vmem:[%s2452 + $0x1f8] sm:$0xff]
        %v2517 = vpack.c.bf16 %v2455, %v2453
        %v2518 = vpack.c.bf16 %v2456, %v2454
        %v2519 = vpack.c.bf16 %v2459, %v2457
        %v2520 = vpack.c.bf16 %v2460, %v2458
        %v2521 = vpack.c.bf16 %v2463, %v2461
        %v2522 = vpack.c.bf16 %v2464, %v2462
        %v2523 = vpack.c.bf16 %v2467, %v2465
        %v2524 = vpack.c.bf16 %v2468, %v2466
        %v2525 = vpack.c.bf16 %v2471, %v2469
        %v2526 = vpack.c.bf16 %v2472, %v2470
        %v2527 = vpack.c.bf16 %v2475, %v2473
        %v2528 = vpack.c.bf16 %v2476, %v2474
        %v2529 = vpack.c.bf16 %v2479, %v2477
        %v2530 = vpack.c.bf16 %v2480, %v2478
        %v2531 = vpack.c.bf16 %v2483, %v2481
        %v2532 = vpack.c.bf16 %v2484, %v2482
        %v2533 = vpack.c.bf16 %v2487, %v2485
        %v2534 = vpack.c.bf16 %v2488, %v2486
        %v2535 = vpack.c.bf16 %v2491, %v2489
        %v2536 = vpack.c.bf16 %v2492, %v2490
        %v2537 = vpack.c.bf16 %v2495, %v2493
        %v2538 = vpack.c.bf16 %v2496, %v2494
        %v2539 = vpack.c.bf16 %v2499, %v2497
        %v2540 = vpack.c.bf16 %v2500, %v2498
        %v2541 = vpack.c.bf16 %v2503, %v2501
        %v2542 = vpack.c.bf16 %v2504, %v2502
        %v2543 = vpack.c.bf16 %v2507, %v2505
        %v2544 = vpack.c.bf16 %v2508, %v2506
        %v2545 = vpack.c.bf16 %v2511, %v2509
        %v2546 = vpack.c.bf16 %v2512, %v2510
        %v2547 = vpack.c.bf16 %v2515, %v2513
        %v2548 = vpack.c.bf16 %v2516, %v2514
        %s2549 = scalar_lea.vmem [#allocation6], 640
        %v2550 = vld [vmem:[%s2549] sm:$0xf]
        %v2551 = vld [vmem:[%s2549 + $0x4] sm:$0xf]
        %v2552 = vld [vmem:[%s2549 + $0x8] sm:$0xf]
        %v2553 = vld [vmem:[%s2549 + $0xc] sm:$0xf]
        %v2554 = vld [vmem:[%s2549 + $0x10] sm:$0xf]
        %v2555 = vld [vmem:[%s2549 + $0x14] sm:$0xf]
        %v2556 = vld [vmem:[%s2549 + $0x18] sm:$0xf]
        %v2557 = vld [vmem:[%s2549 + $0x1c] sm:$0xf]
        %v2558 = vld [vmem:[%s2549 + $0x20] sm:$0xf]
        %v2559 = vld [vmem:[%s2549 + $0x24] sm:$0xf]
        %v2560 = vld [vmem:[%s2549 + $0x28] sm:$0xf]
        %v2561 = vld [vmem:[%s2549 + $0x2c] sm:$0xf]
        %v2562 = vld [vmem:[%s2549 + $0x30] sm:$0xf]
        %v2563 = vld [vmem:[%s2549 + $0x34] sm:$0xf]
        %v2564 = vld [vmem:[%s2549 + $0x38] sm:$0xf]
        %v2565 = vld [vmem:[%s2549 + $0x3c] sm:$0xf]
        %v2566 = vld [vmem:[%s2549 + $0x40] sm:$0xf]
        %v2567 = vld [vmem:[%s2549 + $0x44] sm:$0xf]
        %v2568 = vld [vmem:[%s2549 + $0x48] sm:$0xf]
        %v2569 = vld [vmem:[%s2549 + $0x4c] sm:$0xf]
        %v2570 = vld [vmem:[%s2549 + $0x50] sm:$0xf]
        %v2571 = vld [vmem:[%s2549 + $0x54] sm:$0xf]
        %v2572 = vld [vmem:[%s2549 + $0x58] sm:$0xf]
        %v2573 = vld [vmem:[%s2549 + $0x5c] sm:$0xf]
        %v2574 = vld [vmem:[%s2549 + $0x60] sm:$0xf]
        %v2575 = vld [vmem:[%s2549 + $0x64] sm:$0xf]
        %v2576 = vld [vmem:[%s2549 + $0x68] sm:$0xf]
        %v2577 = vld [vmem:[%s2549 + $0x6c] sm:$0xf]
        %v2578 = vld [vmem:[%s2549 + $0x70] sm:$0xf]
        %v2579 = vld [vmem:[%s2549 + $0x74] sm:$0xf]
        %v2580 = vld [vmem:[%s2549 + $0x78] sm:$0xf]
        %v2581 = vld [vmem:[%s2549 + $0x7c] sm:$0xf]
        %v2614 = vunpack.c.l.b16 %v2550
        %v2615 = vunpack.c.l.b16 %v2551
        %v2616 = vunpack.c.l.b16 %v2552
        %v2617 = vunpack.c.l.b16 %v2553
        %v2618 = vunpack.c.l.b16 %v2554
        %v2619 = vunpack.c.l.b16 %v2555
        %v2620 = vunpack.c.l.b16 %v2556
        %v2621 = vunpack.c.l.b16 %v2557
        %v2622 = vunpack.c.l.b16 %v2558
        %v2623 = vunpack.c.l.b16 %v2559
        %v2624 = vunpack.c.l.b16 %v2560
        %v2625 = vunpack.c.l.b16 %v2561
        %v2626 = vunpack.c.l.b16 %v2562
        %v2627 = vunpack.c.l.b16 %v2563
        %v2628 = vunpack.c.l.b16 %v2564
        %v2629 = vunpack.c.l.b16 %v2565
        %v2630 = vunpack.c.l.b16 %v2566
        %v2631 = vunpack.c.l.b16 %v2567
        %v2632 = vunpack.c.l.b16 %v2568
        %v2633 = vunpack.c.l.b16 %v2569
        %v2634 = vunpack.c.l.b16 %v2570
        %v2635 = vunpack.c.l.b16 %v2571
        %v2636 = vunpack.c.l.b16 %v2572
        %v2637 = vunpack.c.l.b16 %v2573
        %v2638 = vunpack.c.l.b16 %v2574
        %v2639 = vunpack.c.l.b16 %v2575
        %v2640 = vunpack.c.l.b16 %v2576
        %v2641 = vunpack.c.l.b16 %v2577
        %v2642 = vunpack.c.l.b16 %v2578
        %v2643 = vunpack.c.l.b16 %v2579
        %v2644 = vunpack.c.l.b16 %v2580
        %v2645 = vunpack.c.l.b16 %v2581
        %v2646 = vpack.c.b16 %v2615, %v2614
        %v2647 = vpack.c.b16 %v2617, %v2616
        %v2648 = vpack.c.b16 %v2619, %v2618
        %v2649 = vpack.c.b16 %v2621, %v2620
        %v2650 = vpack.c.b16 %v2623, %v2622
        %v2651 = vpack.c.b16 %v2625, %v2624
        %v2652 = vpack.c.b16 %v2627, %v2626
        %v2653 = vpack.c.b16 %v2629, %v2628
        %v2654 = vpack.c.b16 %v2631, %v2630
        %v2655 = vpack.c.b16 %v2633, %v2632
        %v2656 = vpack.c.b16 %v2635, %v2634
        %v2657 = vpack.c.b16 %v2637, %v2636
        %v2658 = vpack.c.b16 %v2639, %v2638
        %v2659 = vpack.c.b16 %v2641, %v2640
        %v2660 = vpack.c.b16 %v2643, %v2642
        %v2661 = vpack.c.b16 %v2645, %v2644
        %2678 = vmatprep.subr.bf16.mxu0 0
        %2679 = vmatpush1.bf16.msra.mxu0 %v2646
        %2680 = vmatprep.subr.bf16.mxu0 0
        %2681 = vmatpush1.bf16.msra.mxu0 %v2647
        %2682 = vmatprep.subr.bf16.mxu0 0
        %2683 = vmatpush1.bf16.msra.mxu0 %v2648
        %2684 = vmatprep.subr.bf16.mxu0 0
        %2685 = vmatpush1.bf16.msra.mxu0 %v2649
        %2686 = vmatprep.subr.bf16.mxu0 0
        %2687 = vmatpush1.bf16.msra.mxu0 %v2650
        %2688 = vmatprep.subr.bf16.mxu0 0
        %2689 = vmatpush1.bf16.msra.mxu0 %v2651
        %2690 = vmatprep.subr.bf16.mxu0 0
        %2691 = vmatpush1.bf16.msra.mxu0 %v2652
        %2692 = vmatprep.subr.bf16.mxu0 0
        %2693 = vmatpush1.bf16.msra.mxu0 %v2653
        %2694 = vmatprep.subr.bf16.mxu0 0
        %2695 = vmatpush1.bf16.msra.mxu0 %v2654
        %2696 = vmatprep.subr.bf16.mxu0 0
        %2697 = vmatpush1.bf16.msra.mxu0 %v2655
        %2698 = vmatprep.subr.bf16.mxu0 0
        %2699 = vmatpush1.bf16.msra.mxu0 %v2656
        %2700 = vmatprep.subr.bf16.mxu0 0
        %2701 = vmatpush1.bf16.msra.mxu0 %v2657
        %2702 = vmatprep.subr.bf16.mxu0 0
        %2703 = vmatpush1.bf16.msra.mxu0 %v2658
        %2704 = vmatprep.subr.bf16.mxu0 0
        %2705 = vmatpush1.bf16.msra.mxu0 %v2659
        %2706 = vmatprep.subr.bf16.mxu0 0
        %2707 = vmatpush1.bf16.msra.mxu0 %v2660
        %2708 = vmatprep.subr.bf16.mxu0 0
        %2709 = vmatpush1.bf16.msra.mxu0 %v2661
        %2710 = vmatprep.mubr.bf16.mxu0 %v2518
        %2711 = vmatmul.mubr.bf16.gmra.mrb[0].mxu0 %v2517
        %v2712 = vpop.f32.mrb[0].mxu0
        %v2713 = vadd.f32 0.0, %v2712
        %v2714 = vpop.f32.mrb[0].mxu0
        %v2715 = vpop.f32.mrb[0].mxu0
        %v2716 = vadd.f32 0.0, %v2715
        %v2717 = vpop.f32.mrb[0].mxu0
        %2718 = vmatprep.mubr.bf16.mxu0 %v2520
        %2719 = vmatmul.mubr.bf16.gmra.mrb[0].mxu0 %v2519
        %v2720 = vpop.f32.mrb[0].mxu0
        %v2721 = vadd.f32 0.0, %v2720
        %v2722 = vpop.f32.mrb[0].mxu0
        %v2723 = vpop.f32.mrb[0].mxu0
        %v2724 = vadd.f32 0.0, %v2723
        %v2725 = vpop.f32.mrb[0].mxu0
        %2726 = vmatprep.mubr.bf16.mxu0 %v2522
        %2727 = vmatmul.mubr.bf16.gmra.mrb[0].mxu0 %v2521
        %v2728 = vpop.f32.mrb[0].mxu0
        %v2729 = vadd.f32 0.0, %v2728
        %v2730 = vpop.f32.mrb[0].mxu0
        %v2731 = vpop.f32.mrb[0].mxu0
        %v2732 = vadd.f32 0.0, %v2731
        %v2733 = vpop.f32.mrb[0].mxu0
        %2734 = vmatprep.mubr.bf16.mxu0 %v2524
        %2735 = vmatmul.mubr.bf16.gmra.mrb[0].mxu0 %v2523
        %v2736 = vpop.f32.mrb[0].mxu0
        %v2737 = vadd.f32 0.0, %v2736
        %v2738 = vpop.f32.mrb[0].mxu0
        %v2739 = vpop.f32.mrb[0].mxu0
        %v2740 = vadd.f32 0.0, %v2739
        %v2741 = vpop.f32.mrb[0].mxu0
        %2742 = vmatprep.mubr.bf16.mxu0 %v2526
        %2743 = vmatmul.mubr.bf16.gmra.mrb[0].mxu0 %v2525
        %v2744 = vpop.f32.mrb[0].mxu0
        %v2745 = vadd.f32 0.0, %v2744
        %v2746 = vpop.f32.mrb[0].mxu0
        %v2747 = vpop.f32.mrb[0].mxu0
        %v2748 = vadd.f32 0.0, %v2747
        %v2749 = vpop.f32.mrb[0].mxu0
        %2750 = vmatprep.mubr.bf16.mxu0 %v2528
        %2751 = vmatmul.mubr.bf16.gmra.mrb[0].mxu0 %v2527
        %v2752 = vpop.f32.mrb[0].mxu0
        %v2753 = vadd.f32 0.0, %v2752
        %v2754 = vpop.f32.mrb[0].mxu0
        %v2755 = vpop.f32.mrb[0].mxu0
        %v2756 = vadd.f32 0.0, %v2755
        %v2757 = vpop.f32.mrb[0].mxu0
        %2758 = vmatprep.mubr.bf16.mxu0 %v2530
        %2759 = vmatmul.mubr.bf16.gmra.mrb[0].mxu0 %v2529
        %v2760 = vpop.f32.mrb[0].mxu0
        %v2761 = vadd.f32 0.0, %v2760
        %v2762 = vpop.f32.mrb[0].mxu0
        %v2763 = vpop.f32.mrb[0].mxu0
        %v2764 = vadd.f32 0.0, %v2763
        %v2765 = vpop.f32.mrb[0].mxu0
        %2766 = vmatprep.mubr.bf16.mxu0 %v2532
        %2767 = vmatmul.mubr.bf16.gmra.mrb[0].mxu0 %v2531
        %v2768 = vpop.f32.mrb[0].mxu0
        %v2769 = vadd.f32 0.0, %v2768
        %v2770 = vpop.f32.mrb[0].mxu0
        %v2771 = vpop.f32.mrb[0].mxu0
        %v2772 = vadd.f32 0.0, %v2771
        %v2773 = vpop.f32.mrb[0].mxu0
        %2774 = vmatprep.mubr.bf16.mxu0 %v2534
        %2775 = vmatmul.mubr.bf16.gmra.mrb[0].mxu0 %v2533
        %v2776 = vpop.f32.mrb[0].mxu0
        %v2777 = vadd.f32 0.0, %v2776
        %v2778 = vpop.f32.mrb[0].mxu0
        %v2779 = vpop.f32.mrb[0].mxu0
        %v2780 = vadd.f32 0.0, %v2779
        %v2781 = vpop.f32.mrb[0].mxu0
        %2782 = vmatprep.mubr.bf16.mxu0 %v2536
        %2783 = vmatmul.mubr.bf16.gmra.mrb[0].mxu0 %v2535
        %v2784 = vpop.f32.mrb[0].mxu0
        %v2785 = vadd.f32 0.0, %v2784
        %v2786 = vpop.f32.mrb[0].mxu0
        %v2787 = vpop.f32.mrb[0].mxu0
        %v2788 = vadd.f32 0.0, %v2787
        %v2789 = vpop.f32.mrb[0].mxu0
        %2790 = vmatprep.mubr.bf16.mxu0 %v2538
        %2791 = vmatmul.mubr.bf16.gmra.mrb[0].mxu0 %v2537
        %v2792 = vpop.f32.mrb[0].mxu0
        %v2793 = vadd.f32 0.0, %v2792
        %v2794 = vpop.f32.mrb[0].mxu0
        %v2795 = vpop.f32.mrb[0].mxu0
        %v2796 = vadd.f32 0.0, %v2795
        %v2797 = vpop.f32.mrb[0].mxu0
        %2798 = vmatprep.mubr.bf16.mxu0 %v2540
        %2799 = vmatmul.mubr.bf16.gmra.mrb[0].mxu0 %v2539
        %v2800 = vpop.f32.mrb[0].mxu0
        %v2801 = vadd.f32 0.0, %v2800
        %v2802 = vpop.f32.mrb[0].mxu0
        %v2803 = vpop.f32.mrb[0].mxu0
        %v2804 = vadd.f32 0.0, %v2803
        %v2805 = vpop.f32.mrb[0].mxu0
        %2806 = vmatprep.mubr.bf16.mxu0 %v2542
        %2807 = vmatmul.mubr.bf16.gmra.mrb[0].mxu0 %v2541
        %v2808 = vpop.f32.mrb[0].mxu0
        %v2809 = vadd.f32 0.0, %v2808
        %v2810 = vpop.f32.mrb[0].mxu0
        %v2811 = vpop.f32.mrb[0].mxu0
        %v2812 = vadd.f32 0.0, %v2811
        %v2813 = vpop.f32.mrb[0].mxu0
        %2814 = vmatprep.mubr.bf16.mxu0 %v2544
        %2815 = vmatmul.mubr.bf16.gmra.mrb[0].mxu0 %v2543
        %v2816 = vpop.f32.mrb[0].mxu0
        %v2817 = vadd.f32 0.0, %v2816
        %v2818 = vpop.f32.mrb[0].mxu0
        %v2819 = vpop.f32.mrb[0].mxu0
        %v2820 = vadd.f32 0.0, %v2819
        %v2821 = vpop.f32.mrb[0].mxu0
        %2822 = vmatprep.mubr.bf16.mxu0 %v2546
        %2823 = vmatmul.mubr.bf16.gmra.mrb[0].mxu0 %v2545
        %v2824 = vpop.f32.mrb[0].mxu0
        %v2825 = vadd.f32 0.0, %v2824
        %v2826 = vpop.f32.mrb[0].mxu0
        %v2827 = vpop.f32.mrb[0].mxu0
        %v2828 = vadd.f32 0.0, %v2827
        %v2829 = vpop.f32.mrb[0].mxu0
        %2830 = vmatprep.mubr.bf16.mxu0 %v2548
        %2831 = vmatmul.mubr.bf16.gmra.mrb[0].mxu0 %v2547
        %v2832 = vpop.f32.mrb[0].mxu0
        %v2833 = vadd.f32 0.0, %v2832
        %v2834 = vpop.f32.mrb[0].mxu0
        %v2835 = vpop.f32.mrb[0].mxu0
        %v2836 = vadd.f32 0.0, %v2835
        %v2837 = vpop.f32.mrb[0].mxu0
        %2838 = vdwg.mxu0
        %v2871 = vunpack.c.l.b16 %v2420
        %v2872 = vunpack.c.l.b16 %v2421
        %v2873 = vunpack.c.l.b16 %v2422
        %v2874 = vunpack.c.l.b16 %v2423
        %v2875 = vunpack.c.l.b16 %v2424
        %v2876 = vunpack.c.l.b16 %v2425
        %v2877 = vunpack.c.l.b16 %v2426
        %v2878 = vunpack.c.l.b16 %v2427
        %v2879 = vunpack.c.l.b16 %v2428
        %v2880 = vunpack.c.l.b16 %v2429
        %v2881 = vunpack.c.l.b16 %v2430
        %v2882 = vunpack.c.l.b16 %v2431
        %v2883 = vunpack.c.l.b16 %v2432
        %v2884 = vunpack.c.l.b16 %v2433
        %v2885 = vunpack.c.l.b16 %v2434
        %v2886 = vunpack.c.l.b16 %v2435
        %v2887 = vunpack.c.l.b16 %v2436
        %v2888 = vunpack.c.l.b16 %v2437
        %v2889 = vunpack.c.l.b16 %v2438
        %v2890 = vunpack.c.l.b16 %v2439
        %v2891 = vunpack.c.l.b16 %v2440
        %v2892 = vunpack.c.l.b16 %v2441
        %v2893 = vunpack.c.l.b16 %v2442
        %v2894 = vunpack.c.l.b16 %v2443
        %v2895 = vunpack.c.l.b16 %v2444
        %v2896 = vunpack.c.l.b16 %v2445
        %v2897 = vunpack.c.l.b16 %v2446
        %v2898 = vunpack.c.l.b16 %v2447
        %v2899 = vunpack.c.l.b16 %v2448
        %v2900 = vunpack.c.l.b16 %v2449
        %v2901 = vunpack.c.l.b16 %v2450
        %v2902 = vunpack.c.l.b16 %v2451
        %v2903 = vpack.c.b16 %v2872, %v2871
        %v2904 = vpack.c.b16 %v2874, %v2873
        %v2905 = vpack.c.b16 %v2876, %v2875
        %v2906 = vpack.c.b16 %v2878, %v2877
        %v2907 = vpack.c.b16 %v2880, %v2879
        %v2908 = vpack.c.b16 %v2882, %v2881
        %v2909 = vpack.c.b16 %v2884, %v2883
        %v2910 = vpack.c.b16 %v2886, %v2885
        %v2911 = vpack.c.b16 %v2888, %v2887
        %v2912 = vpack.c.b16 %v2890, %v2889
        %v2913 = vpack.c.b16 %v2892, %v2891
        %v2914 = vpack.c.b16 %v2894, %v2893
        %v2915 = vpack.c.b16 %v2896, %v2895
        %v2916 = vpack.c.b16 %v2898, %v2897
        %v2917 = vpack.c.b16 %v2900, %v2899
        %v2918 = vpack.c.b16 %v2902, %v2901
        %2935 = vmatprep.subr.bf16.mxu0 0
        %2936 = vmatpush1.bf16.msra.mxu0 %v2903
        %2937 = vmatprep.subr.bf16.mxu0 0
        %2938 = vmatpush1.bf16.msra.mxu0 %v2904
        %2939 = vmatprep.subr.bf16.mxu0 0
        %2940 = vmatpush1.bf16.msra.mxu0 %v2905
        %2941 = vmatprep.subr.bf16.mxu0 0
        %2942 = vmatpush1.bf16.msra.mxu0 %v2906
        %2943 = vmatprep.subr.bf16.mxu0 0
        %2944 = vmatpush1.bf16.msra.mxu0 %v2907
        %2945 = vmatprep.subr.bf16.mxu0 0
        %2946 = vmatpush1.bf16.msra.mxu0 %v2908
        %2947 = vmatprep.subr.bf16.mxu0 0
        %2948 = vmatpush1.bf16.msra.mxu0 %v2909
        %2949 = vmatprep.subr.bf16.mxu0 0
        %2950 = vmatpush1.bf16.msra.mxu0 %v2910
        %2951 = vmatprep.subr.bf16.mxu0 0
        %2952 = vmatpush1.bf16.msra.mxu0 %v2911
        %2953 = vmatprep.subr.bf16.mxu0 0
        %2954 = vmatpush1.bf16.msra.mxu0 %v2912
        %2955 = vmatprep.subr.bf16.mxu0 0
        %2956 = vmatpush1.bf16.msra.mxu0 %v2913
        %2957 = vmatprep.subr.bf16.mxu0 0
        %2958 = vmatpush1.bf16.msra.mxu0 %v2914
        %2959 = vmatprep.subr.bf16.mxu0 0
        %2960 = vmatpush1.bf16.msra.mxu0 %v2915
        %2961 = vmatprep.subr.bf16.mxu0 0
        %2962 = vmatpush1.bf16.msra.mxu0 %v2916
        %2963 = vmatprep.subr.bf16.mxu0 0
        %2964 = vmatpush1.bf16.msra.mxu0 %v2917
        %2965 = vmatprep.subr.bf16.mxu0 0
        %2966 = vmatpush1.bf16.msra.mxu0 %v2918
        %2967 = vmatprep.mubr.bf16.mxu0 %v2388
        %2968 = vmatmul.mubr.bf16.gmra.mrb[0].mxu0 %v2387
        %v2969 = vpop.f32.mrb[0].mxu0
        %v2970 = vadd.f32 %v2713, %v2969
        %v2971 = vpop.f32.mrb[0].mxu0
        %v2972 = vpop.f32.mrb[0].mxu0
        %v2973 = vadd.f32 %v2716, %v2972
        %v2974 = vpop.f32.mrb[0].mxu0
        %2975 = vmatprep.mubr.bf16.mxu0 %v2390
        %2976 = vmatmul.mubr.bf16.gmra.mrb[0].mxu0 %v2389
        %v2977 = vpop.f32.mrb[0].mxu0
        %v2978 = vadd.f32 %v2721, %v2977
        %v2979 = vpop.f32.mrb[0].mxu0
        %v2980 = vpop.f32.mrb[0].mxu0
        %v2981 = vadd.f32 %v2724, %v2980
        %v2982 = vpop.f32.mrb[0].mxu0
        %2983 = vmatprep.mubr.bf16.mxu0 %v2392
        %2984 = vmatmul.mubr.bf16.gmra.mrb[0].mxu0 %v2391
        %v2985 = vpop.f32.mrb[0].mxu0
        %v2986 = vadd.f32 %v2729, %v2985
        %v2987 = vpop.f32.mrb[0].mxu0
        %v2988 = vpop.f32.mrb[0].mxu0
        %v2989 = vadd.f32 %v2732, %v2988
        %v2990 = vpop.f32.mrb[0].mxu0
        %2991 = vmatprep.mubr.bf16.mxu0 %v2394
        %2992 = vmatmul.mubr.bf16.gmra.mrb[0].mxu0 %v2393
        %v2993 = vpop.f32.mrb[0].mxu0
        %v2994 = vadd.f32 %v2737, %v2993
        %v2995 = vpop.f32.mrb[0].mxu0
        %v2996 = vpop.f32.mrb[0].mxu0
        %v2997 = vadd.f32 %v2740, %v2996
        %v2998 = vpop.f32.mrb[0].mxu0
        %2999 = vmatprep.mubr.bf16.mxu0 %v2396
        %3000 = vmatmul.mubr.bf16.gmra.mrb[0].mxu0 %v2395
        %v3001 = vpop.f32.mrb[0].mxu0
        %v3002 = vadd.f32 %v2745, %v3001
        %v3003 = vpop.f32.mrb[0].mxu0
        %v3004 = vpop.f32.mrb[0].mxu0
        %v3005 = vadd.f32 %v2748, %v3004
        %v3006 = vpop.f32.mrb[0].mxu0
        %3007 = vmatprep.mubr.bf16.mxu0 %v2398
        %3008 = vmatmul.mubr.bf16.gmra.mrb[0].mxu0 %v2397
        %v3009 = vpop.f32.mrb[0].mxu0
        %v3010 = vadd.f32 %v2753, %v3009
        %v3011 = vpop.f32.mrb[0].mxu0
        %v3012 = vpop.f32.mrb[0].mxu0
        %v3013 = vadd.f32 %v2756, %v3012
        %v3014 = vpop.f32.mrb[0].mxu0
        %3015 = vmatprep.mubr.bf16.mxu0 %v2400
        %3016 = vmatmul.mubr.bf16.gmra.mrb[0].mxu0 %v2399
        %v3017 = vpop.f32.mrb[0].mxu0
        %v3018 = vadd.f32 %v2761, %v3017
        %v3019 = vpop.f32.mrb[0].mxu0
        %v3020 = vpop.f32.mrb[0].mxu0
        %v3021 = vadd.f32 %v2764, %v3020
        %v3022 = vpop.f32.mrb[0].mxu0
        %3023 = vmatprep.mubr.bf16.mxu0 %v2402
        %3024 = vmatmul.mubr.bf16.gmra.mrb[0].mxu0 %v2401
        %v3025 = vpop.f32.mrb[0].mxu0
        %v3026 = vadd.f32 %v2769, %v3025
        %v3027 = vpop.f32.mrb[0].mxu0
        %v3028 = vpop.f32.mrb[0].mxu0
        %v3029 = vadd.f32 %v2772, %v3028
        %v3030 = vpop.f32.mrb[0].mxu0
        %3031 = vmatprep.mubr.bf16.mxu0 %v2404
        %3032 = vmatmul.mubr.bf16.gmra.mrb[0].mxu0 %v2403
        %v3033 = vpop.f32.mrb[0].mxu0
        %v3034 = vadd.f32 %v2777, %v3033
        %v3035 = vpop.f32.mrb[0].mxu0
        %v3036 = vpop.f32.mrb[0].mxu0
        %v3037 = vadd.f32 %v2780, %v3036
        %v3038 = vpop.f32.mrb[0].mxu0
        %3039 = vmatprep.mubr.bf16.mxu0 %v2406
        %3040 = vmatmul.mubr.bf16.gmra.mrb[0].mxu0 %v2405
        %v3041 = vpop.f32.mrb[0].mxu0
        %v3042 = vadd.f32 %v2785, %v3041
        %v3043 = vpop.f32.mrb[0].mxu0
        %v3044 = vpop.f32.mrb[0].mxu0
        %v3045 = vadd.f32 %v2788, %v3044
        %v3046 = vpop.f32.mrb[0].mxu0
        %3047 = vmatprep.mubr.bf16.mxu0 %v2408
        %3048 = vmatmul.mubr.bf16.gmra.mrb[0].mxu0 %v2407
        %v3049 = vpop.f32.mrb[0].mxu0
        %v3050 = vadd.f32 %v2793, %v3049
        %v3051 = vpop.f32.mrb[0].mxu0
        %v3052 = vpop.f32.mrb[0].mxu0
        %v3053 = vadd.f32 %v2796, %v3052
        %v3054 = vpop.f32.mrb[0].mxu0
        %3055 = vmatprep.mubr.bf16.mxu0 %v2410
        %3056 = vmatmul.mubr.bf16.gmra.mrb[0].mxu0 %v2409
        %v3057 = vpop.f32.mrb[0].mxu0
        %v3058 = vadd.f32 %v2801, %v3057
        %v3059 = vpop.f32.mrb[0].mxu0
        %v3060 = vpop.f32.mrb[0].mxu0
        %v3061 = vadd.f32 %v2804, %v3060
        %v3062 = vpop.f32.mrb[0].mxu0
        %3063 = vmatprep.mubr.bf16.mxu0 %v2412
        %3064 = vmatmul.mubr.bf16.gmra.mrb[0].mxu0 %v2411
        %v3065 = vpop.f32.mrb[0].mxu0
        %v3066 = vadd.f32 %v2809, %v3065
        %v3067 = vpop.f32.mrb[0].mxu0
        %v3068 = vpop.f32.mrb[0].mxu0
        %v3069 = vadd.f32 %v2812, %v3068
        %v3070 = vpop.f32.mrb[0].mxu0
        %3071 = vmatprep.mubr.bf16.mxu0 %v2414
        %3072 = vmatmul.mubr.bf16.gmra.mrb[0].mxu0 %v2413
        %v3073 = vpop.f32.mrb[0].mxu0
        %v3074 = vadd.f32 %v2817, %v3073
        %v3075 = vpop.f32.mrb[0].mxu0
        %v3076 = vpop.f32.mrb[0].mxu0
        %v3077 = vadd.f32 %v2820, %v3076
        %v3078 = vpop.f32.mrb[0].mxu0
        %3079 = vmatprep.mubr.bf16.mxu0 %v2416
        %3080 = vmatmul.mubr.bf16.gmra.mrb[0].mxu0 %v2415
        %v3081 = vpop.f32.mrb[0].mxu0
        %v3082 = vadd.f32 %v2825, %v3081
        %v3083 = vpop.f32.mrb[0].mxu0
        %v3084 = vpop.f32.mrb[0].mxu0
        %v3085 = vadd.f32 %v2828, %v3084
        %v3086 = vpop.f32.mrb[0].mxu0
        %3087 = vmatprep.mubr.bf16.mxu0 %v2418
        %3088 = vmatmul.mubr.bf16.gmra.mrb[0].mxu0 %v2417
        %v3089 = vpop.f32.mrb[0].mxu0
        %v3090 = vadd.f32 %v2833, %v3089
        %v3091 = vpop.f32.mrb[0].mxu0
        %v3092 = vpop.f32.mrb[0].mxu0
        %v3093 = vadd.f32 %v2836, %v3092
        %v3094 = vpop.f32.mrb[0].mxu0
        %3095 = vdwg.mxu0
        %v3096 = vadd.f32 %v2970, %v1420
        %v3097 = vadd.f32 %v2973, %v1420
        %v3098 = vadd.f32 %v2978, %v1420
        %v3099 = vadd.f32 %v2981, %v1420
        %v3100 = vadd.f32 %v2986, %v1420
        %v3101 = vadd.f32 %v2989, %v1420
        %v3102 = vadd.f32 %v2994, %v1420
        %v3103 = vadd.f32 %v2997, %v1420
        %v3104 = vadd.f32 %v3002, %v1420
        %v3105 = vadd.f32 %v3005, %v1420
        %v3106 = vadd.f32 %v3010, %v1420
        %v3107 = vadd.f32 %v3013, %v1420
        %v3108 = vadd.f32 %v3018, %v1420
        %v3109 = vadd.f32 %v3021, %v1420
        %v3110 = vadd.f32 %v3026, %v1420
        %v3111 = vadd.f32 %v3029, %v1420
        %v3112 = vadd.f32 %v3034, %v1420
        %v3113 = vadd.f32 %v3037, %v1420
        %v3114 = vadd.f32 %v3042, %v1420
        %v3115 = vadd.f32 %v3045, %v1420
        %v3116 = vadd.f32 %v3050, %v1420
        %v3117 = vadd.f32 %v3053, %v1420
        %v3118 = vadd.f32 %v3058, %v1420
        %v3119 = vadd.f32 %v3061, %v1420
        %v3120 = vadd.f32 %v3066, %v1420
        %v3121 = vadd.f32 %v3069, %v1420
        %v3122 = vadd.f32 %v3074, %v1420
        %v3123 = vadd.f32 %v3077, %v1420
        %v3124 = vadd.f32 %v3082, %v1420
        %v3125 = vadd.f32 %v3085, %v1420
        %v3126 = vadd.f32 %v3090, %v1420
        %v3127 = vadd.f32 %v3093, %v1420
        %s3128 = scalar_lea.vmem %s203, 512 [#allocation8]
        %3129 = vst [vmem:[%s3128] sm:$0xff] %v3096
        %3130 = vst [vmem:[%s3128 + $0x8] sm:$0xff] %v3097
        %3131 = vst [vmem:[%s3128 + $0x10] sm:$0xff] %v3098
        %3132 = vst [vmem:[%s3128 + $0x18] sm:$0xff] %v3099
        %3133 = vst [vmem:[%s3128 + $0x20] sm:$0xff] %v3100
        %3134 = vst [vmem:[%s3128 + $0x28] sm:$0xff] %v3101
        %3135 = vst [vmem:[%s3128 + $0x30] sm:$0xff] %v3102
        %3136 = vst [vmem:[%s3128 + $0x38] sm:$0xff] %v3103
        %3137 = vst [vmem:[%s3128 + $0x40] sm:$0xff] %v3104
        %3138 = vst [vmem:[%s3128 + $0x48] sm:$0xff] %v3105
        %3139 = vst [vmem:[%s3128 + $0x50] sm:$0xff] %v3106
        %3140 = vst [vmem:[%s3128 + $0x58] sm:$0xff] %v3107
        %3141 = vst [vmem:[%s3128 + $0x60] sm:$0xff] %v3108
        %3142 = vst [vmem:[%s3128 + $0x68] sm:$0xff] %v3109
        %3143 = vst [vmem:[%s3128 + $0x70] sm:$0xff] %v3110
        %3144 = vst [vmem:[%s3128 + $0x78] sm:$0xff] %v3111
        %3145 = vst [vmem:[%s3128 + $0x80] sm:$0xff] %v3112
        %3146 = vst [vmem:[%s3128 + $0x88] sm:$0xff] %v3113
        %3147 = vst [vmem:[%s3128 + $0x90] sm:$0xff] %v3114
        %3148 = vst [vmem:[%s3128 + $0x98] sm:$0xff] %v3115
        %3149 = vst [vmem:[%s3128 + $0xa0] sm:$0xff] %v3116
        %3150 = vst [vmem:[%s3128 + $0xa8] sm:$0xff] %v3117
        %3151 = vst [vmem:[%s3128 + $0xb0] sm:$0xff] %v3118
        %3152 = vst [vmem:[%s3128 + $0xb8] sm:$0xff] %v3119
        %3153 = vst [vmem:[%s3128 + $0xc0] sm:$0xff] %v3120
        %3154 = vst [vmem:[%s3128 + $0xc8] sm:$0xff] %v3121
        %3155 = vst [vmem:[%s3128 + $0xd0] sm:$0xff] %v3122
        %3156 = vst [vmem:[%s3128 + $0xd8] sm:$0xff] %v3123
        %3157 = vst [vmem:[%s3128 + $0xe0] sm:$0xff] %v3124
        %3158 = vst [vmem:[%s3128 + $0xe8] sm:$0xff] %v3125
        %3159 = vst [vmem:[%s3128 + $0xf0] sm:$0xff] %v3126
        %3160 = vst [vmem:[%s3128 + $0xf8] sm:$0xff] %v3127
        %v3161 = vld [vmem:[%s241] sm:$0xff]
        %v3162 = vld [vmem:[%s241 + $0x8] sm:$0xff]
        %v3163 = vld [vmem:[%s241 + $0x10] sm:$0xff]
        %v3164 = vld [vmem:[%s241 + $0x18] sm:$0xff]
        %v3165 = vld [vmem:[%s241 + $0x20] sm:$0xff]
        %v3166 = vld [vmem:[%s241 + $0x28] sm:$0xff]
        %v3167 = vld [vmem:[%s241 + $0x30] sm:$0xff]
        %v3168 = vld [vmem:[%s241 + $0x38] sm:$0xff]
        %v3169 = vld [vmem:[%s241 + $0x40] sm:$0xff]
        %v3170 = vld [vmem:[%s241 + $0x48] sm:$0xff]
        %v3171 = vld [vmem:[%s241 + $0x50] sm:$0xff]
        %v3172 = vld [vmem:[%s241 + $0x58] sm:$0xff]
        %v3173 = vld [vmem:[%s241 + $0x60] sm:$0xff]
        %v3174 = vld [vmem:[%s241 + $0x68] sm:$0xff]
        %v3175 = vld [vmem:[%s241 + $0x70] sm:$0xff]
        %v3176 = vld [vmem:[%s241 + $0x78] sm:$0xff]
        %v3177 = vld [vmem:[%s241 + $0x80] sm:$0xff]
        %v3178 = vld [vmem:[%s241 + $0x88] sm:$0xff]
        %v3179 = vld [vmem:[%s241 + $0x90] sm:$0xff]
        %v3180 = vld [vmem:[%s241 + $0x98] sm:$0xff]
        %v3181 = vld [vmem:[%s241 + $0xa0] sm:$0xff]
        %v3182 = vld [vmem:[%s241 + $0xa8] sm:$0xff]
        %v3183 = vld [vmem:[%s241 + $0xb0] sm:$0xff]
        %v3184 = vld [vmem:[%s241 + $0xb8] sm:$0xff]
        %v3185 = vld [vmem:[%s241 + $0xc0] sm:$0xff]
        %v3186 = vld [vmem:[%s241 + $0xc8] sm:$0xff]
        %v3187 = vld [vmem:[%s241 + $0xd0] sm:$0xff]
        %v3188 = vld [vmem:[%s241 + $0xd8] sm:$0xff]
        %v3189 = vld [vmem:[%s241 + $0xe0] sm:$0xff]
        %v3190 = vld [vmem:[%s241 + $0xe8] sm:$0xff]
        %v3191 = vld [vmem:[%s241 + $0xf0] sm:$0xff]
        %v3192 = vld [vmem:[%s241 + $0xf8] sm:$0xff]
        %v3193 = vld [vmem:[%s241 + $0x100] sm:$0xff]
        %v3194 = vld [vmem:[%s241 + $0x108] sm:$0xff]
        %v3195 = vld [vmem:[%s241 + $0x110] sm:$0xff]
        %v3196 = vld [vmem:[%s241 + $0x118] sm:$0xff]
        %v3197 = vld [vmem:[%s241 + $0x120] sm:$0xff]
        %v3198 = vld [vmem:[%s241 + $0x128] sm:$0xff]
        %v3199 = vld [vmem:[%s241 + $0x130] sm:$0xff]
        %v3200 = vld [vmem:[%s241 + $0x138] sm:$0xff]
        %v3201 = vld [vmem:[%s241 + $0x140] sm:$0xff]
        %v3202 = vld [vmem:[%s241 + $0x148] sm:$0xff]
        %v3203 = vld [vmem:[%s241 + $0x150] sm:$0xff]
        %v3204 = vld [vmem:[%s241 + $0x158] sm:$0xff]
        %v3205 = vld [vmem:[%s241 + $0x160] sm:$0xff]
        %v3206 = vld [vmem:[%s241 + $0x168] sm:$0xff]
        %v3207 = vld [vmem:[%s241 + $0x170] sm:$0xff]
        %v3208 = vld [vmem:[%s241 + $0x178] sm:$0xff]
        %v3209 = vld [vmem:[%s241 + $0x180] sm:$0xff]
        %v3210 = vld [vmem:[%s241 + $0x188] sm:$0xff]
        %v3211 = vld [vmem:[%s241 + $0x190] sm:$0xff]
        %v3212 = vld [vmem:[%s241 + $0x198] sm:$0xff]
        %v3213 = vld [vmem:[%s241 + $0x1a0] sm:$0xff]
        %v3214 = vld [vmem:[%s241 + $0x1a8] sm:$0xff]
        %v3215 = vld [vmem:[%s241 + $0x1b0] sm:$0xff]
        %v3216 = vld [vmem:[%s241 + $0x1b8] sm:$0xff]
        %v3217 = vld [vmem:[%s241 + $0x1c0] sm:$0xff]
        %v3218 = vld [vmem:[%s241 + $0x1c8] sm:$0xff]
        %v3219 = vld [vmem:[%s241 + $0x1d0] sm:$0xff]
        %v3220 = vld [vmem:[%s241 + $0x1d8] sm:$0xff]
        %v3221 = vld [vmem:[%s241 + $0x1e0] sm:$0xff]
        %v3222 = vld [vmem:[%s241 + $0x1e8] sm:$0xff]
        %v3223 = vld [vmem:[%s241 + $0x1f0] sm:$0xff]
        %v3224 = vld [vmem:[%s241 + $0x1f8] sm:$0xff]
        %v3225 = vpack.c.bf16 %v3163, %v3161
        %v3226 = vpack.c.bf16 %v3164, %v3162
        %v3227 = vpack.c.bf16 %v3167, %v3165
        %v3228 = vpack.c.bf16 %v3168, %v3166
        %v3229 = vpack.c.bf16 %v3171, %v3169
        %v3230 = vpack.c.bf16 %v3172, %v3170
        %v3231 = vpack.c.bf16 %v3175, %v3173
        %v3232 = vpack.c.bf16 %v3176, %v3174
        %v3233 = vpack.c.bf16 %v3179, %v3177
        %v3234 = vpack.c.bf16 %v3180, %v3178
        %v3235 = vpack.c.bf16 %v3183, %v3181
        %v3236 = vpack.c.bf16 %v3184, %v3182
        %v3237 = vpack.c.bf16 %v3187, %v3185
        %v3238 = vpack.c.bf16 %v3188, %v3186
        %v3239 = vpack.c.bf16 %v3191, %v3189
        %v3240 = vpack.c.bf16 %v3192, %v3190
        %v3241 = vpack.c.bf16 %v3195, %v3193
        %v3242 = vpack.c.bf16 %v3196, %v3194
        %v3243 = vpack.c.bf16 %v3199, %v3197
        %v3244 = vpack.c.bf16 %v3200, %v3198
        %v3245 = vpack.c.bf16 %v3203, %v3201
        %v3246 = vpack.c.bf16 %v3204, %v3202
        %v3247 = vpack.c.bf16 %v3207, %v3205
        %v3248 = vpack.c.bf16 %v3208, %v3206
        %v3249 = vpack.c.bf16 %v3211, %v3209
        %v3250 = vpack.c.bf16 %v3212, %v3210
        %v3251 = vpack.c.bf16 %v3215, %v3213
        %v3252 = vpack.c.bf16 %v3216, %v3214
        %v3253 = vpack.c.bf16 %v3219, %v3217
        %v3254 = vpack.c.bf16 %v3220, %v3218
        %v3255 = vpack.c.bf16 %v3223, %v3221
        %v3256 = vpack.c.bf16 %v3224, %v3222
        %s3257 = scalar_lea.vmem [#allocation6], 768
        %v3258 = vld [vmem:[%s3257] sm:$0xf]
        %v3259 = vld [vmem:[%s3257 + $0x4] sm:$0xf]
        %v3260 = vld [vmem:[%s3257 + $0x8] sm:$0xf]
        %v3261 = vld [vmem:[%s3257 + $0xc] sm:$0xf]
        %v3262 = vld [vmem:[%s3257 + $0x10] sm:$0xf]
        %v3263 = vld [vmem:[%s3257 + $0x14] sm:$0xf]
        %v3264 = vld [vmem:[%s3257 + $0x18] sm:$0xf]
        %v3265 = vld [vmem:[%s3257 + $0x1c] sm:$0xf]
        %v3266 = vld [vmem:[%s3257 + $0x20] sm:$0xf]
        %v3267 = vld [vmem:[%s3257 + $0x24] sm:$0xf]
        %v3268 = vld [vmem:[%s3257 + $0x28] sm:$0xf]
        %v3269 = vld [vmem:[%s3257 + $0x2c] sm:$0xf]
        %v3270 = vld [vmem:[%s3257 + $0x30] sm:$0xf]
        %v3271 = vld [vmem:[%s3257 + $0x34] sm:$0xf]
        %v3272 = vld [vmem:[%s3257 + $0x38] sm:$0xf]
        %v3273 = vld [vmem:[%s3257 + $0x3c] sm:$0xf]
        %v3274 = vld [vmem:[%s3257 + $0x40] sm:$0xf]
        %v3275 = vld [vmem:[%s3257 + $0x44] sm:$0xf]
        %v3276 = vld [vmem:[%s3257 + $0x48] sm:$0xf]
        %v3277 = vld [vmem:[%s3257 + $0x4c] sm:$0xf]
        %v3278 = vld [vmem:[%s3257 + $0x50] sm:$0xf]
        %v3279 = vld [vmem:[%s3257 + $0x54] sm:$0xf]
        %v3280 = vld [vmem:[%s3257 + $0x58] sm:$0xf]
        %v3281 = vld [vmem:[%s3257 + $0x5c] sm:$0xf]
        %v3282 = vld [vmem:[%s3257 + $0x60] sm:$0xf]
        %v3283 = vld [vmem:[%s3257 + $0x64] sm:$0xf]
        %v3284 = vld [vmem:[%s3257 + $0x68] sm:$0xf]
        %v3285 = vld [vmem:[%s3257 + $0x6c] sm:$0xf]
        %v3286 = vld [vmem:[%s3257 + $0x70] sm:$0xf]
        %v3287 = vld [vmem:[%s3257 + $0x74] sm:$0xf]
        %v3288 = vld [vmem:[%s3257 + $0x78] sm:$0xf]
        %v3289 = vld [vmem:[%s3257 + $0x7c] sm:$0xf]
        %s3290 = scalar_lea.vmem [#allocation2], 640
        %v3291 = vld [vmem:[%s3290] sm:$0xff]
        %v3292 = vld [vmem:[%s3290 + $0x8] sm:$0xff]
        %v3293 = vld [vmem:[%s3290 + $0x10] sm:$0xff]
        %v3294 = vld [vmem:[%s3290 + $0x18] sm:$0xff]
        %v3295 = vld [vmem:[%s3290 + $0x20] sm:$0xff]
        %v3296 = vld [vmem:[%s3290 + $0x28] sm:$0xff]
        %v3297 = vld [vmem:[%s3290 + $0x30] sm:$0xff]
        %v3298 = vld [vmem:[%s3290 + $0x38] sm:$0xff]
        %v3299 = vld [vmem:[%s3290 + $0x40] sm:$0xff]
        %v3300 = vld [vmem:[%s3290 + $0x48] sm:$0xff]
        %v3301 = vld [vmem:[%s3290 + $0x50] sm:$0xff]
        %v3302 = vld [vmem:[%s3290 + $0x58] sm:$0xff]
        %v3303 = vld [vmem:[%s3290 + $0x60] sm:$0xff]
        %v3304 = vld [vmem:[%s3290 + $0x68] sm:$0xff]
        %v3305 = vld [vmem:[%s3290 + $0x70] sm:$0xff]
        %v3306 = vld [vmem:[%s3290 + $0x78] sm:$0xff]
        %v3307 = vld [vmem:[%s3290 + $0x80] sm:$0xff]
        %v3308 = vld [vmem:[%s3290 + $0x88] sm:$0xff]
        %v3309 = vld [vmem:[%s3290 + $0x90] sm:$0xff]
        %v3310 = vld [vmem:[%s3290 + $0x98] sm:$0xff]
        %v3311 = vld [vmem:[%s3290 + $0xa0] sm:$0xff]
        %v3312 = vld [vmem:[%s3290 + $0xa8] sm:$0xff]
        %v3313 = vld [vmem:[%s3290 + $0xb0] sm:$0xff]
        %v3314 = vld [vmem:[%s3290 + $0xb8] sm:$0xff]
        %v3315 = vld [vmem:[%s3290 + $0xc0] sm:$0xff]
        %v3316 = vld [vmem:[%s3290 + $0xc8] sm:$0xff]
        %v3317 = vld [vmem:[%s3290 + $0xd0] sm:$0xff]
        %v3318 = vld [vmem:[%s3290 + $0xd8] sm:$0xff]
        %v3319 = vld [vmem:[%s3290 + $0xe0] sm:$0xff]
        %v3320 = vld [vmem:[%s3290 + $0xe8] sm:$0xff]
        %v3321 = vld [vmem:[%s3290 + $0xf0] sm:$0xff]
        %v3322 = vld [vmem:[%s3290 + $0xf8] sm:$0xff]
        %v3323 = vld [vmem:[%s3290 + $0x100] sm:$0xff]
        %v3324 = vld [vmem:[%s3290 + $0x108] sm:$0xff]
        %v3325 = vld [vmem:[%s3290 + $0x110] sm:$0xff]
        %v3326 = vld [vmem:[%s3290 + $0x118] sm:$0xff]
        %v3327 = vld [vmem:[%s3290 + $0x120] sm:$0xff]
        %v3328 = vld [vmem:[%s3290 + $0x128] sm:$0xff]
        %v3329 = vld [vmem:[%s3290 + $0x130] sm:$0xff]
        %v3330 = vld [vmem:[%s3290 + $0x138] sm:$0xff]
        %v3331 = vld [vmem:[%s3290 + $0x140] sm:$0xff]
        %v3332 = vld [vmem:[%s3290 + $0x148] sm:$0xff]
        %v3333 = vld [vmem:[%s3290 + $0x150] sm:$0xff]
        %v3334 = vld [vmem:[%s3290 + $0x158] sm:$0xff]
        %v3335 = vld [vmem:[%s3290 + $0x160] sm:$0xff]
        %v3336 = vld [vmem:[%s3290 + $0x168] sm:$0xff]
        %v3337 = vld [vmem:[%s3290 + $0x170] sm:$0xff]
        %v3338 = vld [vmem:[%s3290 + $0x178] sm:$0xff]
        %v3339 = vld [vmem:[%s3290 + $0x180] sm:$0xff]
        %v3340 = vld [vmem:[%s3290 + $0x188] sm:$0xff]
        %v3341 = vld [vmem:[%s3290 + $0x190] sm:$0xff]
        %v3342 = vld [vmem:[%s3290 + $0x198] sm:$0xff]
        %v3343 = vld [vmem:[%s3290 + $0x1a0] sm:$0xff]
        %v3344 = vld [vmem:[%s3290 + $0x1a8] sm:$0xff]
        %v3345 = vld [vmem:[%s3290 + $0x1b0] sm:$0xff]
        %v3346 = vld [vmem:[%s3290 + $0x1b8] sm:$0xff]
        %v3347 = vld [vmem:[%s3290 + $0x1c0] sm:$0xff]
        %v3348 = vld [vmem:[%s3290 + $0x1c8] sm:$0xff]
        %v3349 = vld [vmem:[%s3290 + $0x1d0] sm:$0xff]
        %v3350 = vld [vmem:[%s3290 + $0x1d8] sm:$0xff]
        %v3351 = vld [vmem:[%s3290 + $0x1e0] sm:$0xff]
        %v3352 = vld [vmem:[%s3290 + $0x1e8] sm:$0xff]
        %v3353 = vld [vmem:[%s3290 + $0x1f0] sm:$0xff]
        %v3354 = vld [vmem:[%s3290 + $0x1f8] sm:$0xff]
        %v3355 = vpack.c.bf16 %v3293, %v3291
        %v3356 = vpack.c.bf16 %v3294, %v3292
        %v3357 = vpack.c.bf16 %v3297, %v3295
        %v3358 = vpack.c.bf16 %v3298, %v3296
        %v3359 = vpack.c.bf16 %v3301, %v3299
        %v3360 = vpack.c.bf16 %v3302, %v3300
        %v3361 = vpack.c.bf16 %v3305, %v3303
        %v3362 = vpack.c.bf16 %v3306, %v3304
        %v3363 = vpack.c.bf16 %v3309, %v3307
        %v3364 = vpack.c.bf16 %v3310, %v3308
        %v3365 = vpack.c.bf16 %v3313, %v3311
        %v3366 = vpack.c.bf16 %v3314, %v3312
        %v3367 = vpack.c.bf16 %v3317, %v3315
        %v3368 = vpack.c.bf16 %v3318, %v3316
        %v3369 = vpack.c.bf16 %v3321, %v3319
        %v3370 = vpack.c.bf16 %v3322, %v3320
        %v3371 = vpack.c.bf16 %v3325, %v3323
        %v3372 = vpack.c.bf16 %v3326, %v3324
        %v3373 = vpack.c.bf16 %v3329, %v3327
        %v3374 = vpack.c.bf16 %v3330, %v3328
        %v3375 = vpack.c.bf16 %v3333, %v3331
        %v3376 = vpack.c.bf16 %v3334, %v3332
        %v3377 = vpack.c.bf16 %v3337, %v3335
        %v3378 = vpack.c.bf16 %v3338, %v3336
        %v3379 = vpack.c.bf16 %v3341, %v3339
        %v3380 = vpack.c.bf16 %v3342, %v3340
        %v3381 = vpack.c.bf16 %v3345, %v3343
        %v3382 = vpack.c.bf16 %v3346, %v3344
        %v3383 = vpack.c.bf16 %v3349, %v3347
        %v3384 = vpack.c.bf16 %v3350, %v3348
        %v3385 = vpack.c.bf16 %v3353, %v3351
        %v3386 = vpack.c.bf16 %v3354, %v3352
        %s3387 = scalar_lea.vmem [#allocation6], 896
        %v3388 = vld [vmem:[%s3387] sm:$0xf]
        %v3389 = vld [vmem:[%s3387 + $0x4] sm:$0xf]
        %v3390 = vld [vmem:[%s3387 + $0x8] sm:$0xf]
        %v3391 = vld [vmem:[%s3387 + $0xc] sm:$0xf]
        %v3392 = vld [vmem:[%s3387 + $0x10] sm:$0xf]
        %v3393 = vld [vmem:[%s3387 + $0x14] sm:$0xf]
        %v3394 = vld [vmem:[%s3387 + $0x18] sm:$0xf]
        %v3395 = vld [vmem:[%s3387 + $0x1c] sm:$0xf]
        %v3396 = vld [vmem:[%s3387 + $0x20] sm:$0xf]
        %v3397 = vld [vmem:[%s3387 + $0x24] sm:$0xf]
        %v3398 = vld [vmem:[%s3387 + $0x28] sm:$0xf]
        %v3399 = vld [vmem:[%s3387 + $0x2c] sm:$0xf]
        %v3400 = vld [vmem:[%s3387 + $0x30] sm:$0xf]
        %v3401 = vld [vmem:[%s3387 + $0x34] sm:$0xf]
        %v3402 = vld [vmem:[%s3387 + $0x38] sm:$0xf]
        %v3403 = vld [vmem:[%s3387 + $0x3c] sm:$0xf]
        %v3404 = vld [vmem:[%s3387 + $0x40] sm:$0xf]
        %v3405 = vld [vmem:[%s3387 + $0x44] sm:$0xf]
        %v3406 = vld [vmem:[%s3387 + $0x48] sm:$0xf]
        %v3407 = vld [vmem:[%s3387 + $0x4c] sm:$0xf]
        %v3408 = vld [vmem:[%s3387 + $0x50] sm:$0xf]
        %v3409 = vld [vmem:[%s3387 + $0x54] sm:$0xf]
        %v3410 = vld [vmem:[%s3387 + $0x58] sm:$0xf]
        %v3411 = vld [vmem:[%s3387 + $0x5c] sm:$0xf]
        %v3412 = vld [vmem:[%s3387 + $0x60] sm:$0xf]
        %v3413 = vld [vmem:[%s3387 + $0x64] sm:$0xf]
        %v3414 = vld [vmem:[%s3387 + $0x68] sm:$0xf]
        %v3415 = vld [vmem:[%s3387 + $0x6c] sm:$0xf]
        %v3416 = vld [vmem:[%s3387 + $0x70] sm:$0xf]
        %v3417 = vld [vmem:[%s3387 + $0x74] sm:$0xf]
        %v3418 = vld [vmem:[%s3387 + $0x78] sm:$0xf]
        %v3419 = vld [vmem:[%s3387 + $0x7c] sm:$0xf]
        %v3452 = vunpack.c.l.b16 %v3388
        %v3453 = vunpack.c.l.b16 %v3389
        %v3454 = vunpack.c.l.b16 %v3390
        %v3455 = vunpack.c.l.b16 %v3391
        %v3456 = vunpack.c.l.b16 %v3392
        %v3457 = vunpack.c.l.b16 %v3393
        %v3458 = vunpack.c.l.b16 %v3394
        %v3459 = vunpack.c.l.b16 %v3395
        %v3460 = vunpack.c.l.b16 %v3396
        %v3461 = vunpack.c.l.b16 %v3397
        %v3462 = vunpack.c.l.b16 %v3398
        %v3463 = vunpack.c.l.b16 %v3399
        %v3464 = vunpack.c.l.b16 %v3400
        %v3465 = vunpack.c.l.b16 %v3401
        %v3466 = vunpack.c.l.b16 %v3402
        %v3467 = vunpack.c.l.b16 %v3403
        %v3468 = vunpack.c.l.b16 %v3404
        %v3469 = vunpack.c.l.b16 %v3405
        %v3470 = vunpack.c.l.b16 %v3406
        %v3471 = vunpack.c.l.b16 %v3407
        %v3472 = vunpack.c.l.b16 %v3408
        %v3473 = vunpack.c.l.b16 %v3409
        %v3474 = vunpack.c.l.b16 %v3410
        %v3475 = vunpack.c.l.b16 %v3411
        %v3476 = vunpack.c.l.b16 %v3412
        %v3477 = vunpack.c.l.b16 %v3413
        %v3478 = vunpack.c.l.b16 %v3414
        %v3479 = vunpack.c.l.b16 %v3415
        %v3480 = vunpack.c.l.b16 %v3416
        %v3481 = vunpack.c.l.b16 %v3417
        %v3482 = vunpack.c.l.b16 %v3418
        %v3483 = vunpack.c.l.b16 %v3419
        %v3484 = vpack.c.b16 %v3453, %v3452
        %v3485 = vpack.c.b16 %v3455, %v3454
        %v3486 = vpack.c.b16 %v3457, %v3456
        %v3487 = vpack.c.b16 %v3459, %v3458
        %v3488 = vpack.c.b16 %v3461, %v3460
        %v3489 = vpack.c.b16 %v3463, %v3462
        %v3490 = vpack.c.b16 %v3465, %v3464
        %v3491 = vpack.c.b16 %v3467, %v3466
        %v3492 = vpack.c.b16 %v3469, %v3468
        %v3493 = vpack.c.b16 %v3471, %v3470
        %v3494 = vpack.c.b16 %v3473, %v3472
        %v3495 = vpack.c.b16 %v3475, %v3474
        %v3496 = vpack.c.b16 %v3477, %v3476
        %v3497 = vpack.c.b16 %v3479, %v3478
        %v3498 = vpack.c.b16 %v3481, %v3480
        %v3499 = vpack.c.b16 %v3483, %v3482
        %3516 = vmatprep.subr.bf16.mxu0 0
        %3517 = vmatpush1.bf16.msra.mxu0 %v3484
        %3518 = vmatprep.subr.bf16.mxu0 0
        %3519 = vmatpush1.bf16.msra.mxu0 %v3485
        %3520 = vmatprep.subr.bf16.mxu0 0
        %3521 = vmatpush1.bf16.msra.mxu0 %v3486
        %3522 = vmatprep.subr.bf16.mxu0 0
        %3523 = vmatpush1.bf16.msra.mxu0 %v3487
        %3524 = vmatprep.subr.bf16.mxu0 0
        %3525 = vmatpush1.bf16.msra.mxu0 %v3488
        %3526 = vmatprep.subr.bf16.mxu0 0
        %3527 = vmatpush1.bf16.msra.mxu0 %v3489
        %3528 = vmatprep.subr.bf16.mxu0 0
        %3529 = vmatpush1.bf16.msra.mxu0 %v3490
        %3530 = vmatprep.subr.bf16.mxu0 0
        %3531 = vmatpush1.bf16.msra.mxu0 %v3491
        %3532 = vmatprep.subr.bf16.mxu0 0
        %3533 = vmatpush1.bf16.msra.mxu0 %v3492
        %3534 = vmatprep.subr.bf16.mxu0 0
        %3535 = vmatpush1.bf16.msra.mxu0 %v3493
        %3536 = vmatprep.subr.bf16.mxu0 0
        %3537 = vmatpush1.bf16.msra.mxu0 %v3494
        %3538 = vmatprep.subr.bf16.mxu0 0
        %3539 = vmatpush1.bf16.msra.mxu0 %v3495
        %3540 = vmatprep.subr.bf16.mxu0 0
        %3541 = vmatpush1.bf16.msra.mxu0 %v3496
        %3542 = vmatprep.subr.bf16.mxu0 0
        %3543 = vmatpush1.bf16.msra.mxu0 %v3497
        %3544 = vmatprep.subr.bf16.mxu0 0
        %3545 = vmatpush1.bf16.msra.mxu0 %v3498
        %3546 = vmatprep.subr.bf16.mxu0 0
        %3547 = vmatpush1.bf16.msra.mxu0 %v3499
        %3548 = vmatprep.mubr.bf16.mxu0 %v3356
        %3549 = vmatmul.mubr.bf16.gmra.mrb[0].mxu0 %v3355
        %v3550 = vpop.f32.mrb[0].mxu0
        %v3551 = vadd.f32 0.0, %v3550
        %v3552 = vpop.f32.mrb[0].mxu0
        %v3553 = vpop.f32.mrb[0].mxu0
        %v3554 = vadd.f32 0.0, %v3553
        %v3555 = vpop.f32.mrb[0].mxu0
        %3556 = vmatprep.mubr.bf16.mxu0 %v3358
        %3557 = vmatmul.mubr.bf16.gmra.mrb[0].mxu0 %v3357
        %v3558 = vpop.f32.mrb[0].mxu0
        %v3559 = vadd.f32 0.0, %v3558
        %v3560 = vpop.f32.mrb[0].mxu0
        %v3561 = vpop.f32.mrb[0].mxu0
        %v3562 = vadd.f32 0.0, %v3561
        %v3563 = vpop.f32.mrb[0].mxu0
        %3564 = vmatprep.mubr.bf16.mxu0 %v3360
        %3565 = vmatmul.mubr.bf16.gmra.mrb[0].mxu0 %v3359
        %v3566 = vpop.f32.mrb[0].mxu0
        %v3567 = vadd.f32 0.0, %v3566
        %v3568 = vpop.f32.mrb[0].mxu0
        %v3569 = vpop.f32.mrb[0].mxu0
        %v3570 = vadd.f32 0.0, %v3569
        %v3571 = vpop.f32.mrb[0].mxu0
        %3572 = vmatprep.mubr.bf16.mxu0 %v3362
        %3573 = vmatmul.mubr.bf16.gmra.mrb[0].mxu0 %v3361
        %v3574 = vpop.f32.mrb[0].mxu0
        %v3575 = vadd.f32 0.0, %v3574
        %v3576 = vpop.f32.mrb[0].mxu0
        %v3577 = vpop.f32.mrb[0].mxu0
        %v3578 = vadd.f32 0.0, %v3577
        %v3579 = vpop.f32.mrb[0].mxu0
        %3580 = vmatprep.mubr.bf16.mxu0 %v3364
        %3581 = vmatmul.mubr.bf16.gmra.mrb[0].mxu0 %v3363
        %v3582 = vpop.f32.mrb[0].mxu0
        %v3583 = vadd.f32 0.0, %v3582
        %v3584 = vpop.f32.mrb[0].mxu0
        %v3585 = vpop.f32.mrb[0].mxu0
        %v3586 = vadd.f32 0.0, %v3585
        %v3587 = vpop.f32.mrb[0].mxu0
        %3588 = vmatprep.mubr.bf16.mxu0 %v3366
        %3589 = vmatmul.mubr.bf16.gmra.mrb[0].mxu0 %v3365
        %v3590 = vpop.f32.mrb[0].mxu0
        %v3591 = vadd.f32 0.0, %v3590
        %v3592 = vpop.f32.mrb[0].mxu0
        %v3593 = vpop.f32.mrb[0].mxu0
        %v3594 = vadd.f32 0.0, %v3593
        %v3595 = vpop.f32.mrb[0].mxu0
        %3596 = vmatprep.mubr.bf16.mxu0 %v3368
        %3597 = vmatmul.mubr.bf16.gmra.mrb[0].mxu0 %v3367
        %v3598 = vpop.f32.mrb[0].mxu0
        %v3599 = vadd.f32 0.0, %v3598
        %v3600 = vpop.f32.mrb[0].mxu0
        %v3601 = vpop.f32.mrb[0].mxu0
        %v3602 = vadd.f32 0.0, %v3601
        %v3603 = vpop.f32.mrb[0].mxu0
        %3604 = vmatprep.mubr.bf16.mxu0 %v3370
        %3605 = vmatmul.mubr.bf16.gmra.mrb[0].mxu0 %v3369
        %v3606 = vpop.f32.mrb[0].mxu0
        %v3607 = vadd.f32 0.0, %v3606
        %v3608 = vpop.f32.mrb[0].mxu0
        %v3609 = vpop.f32.mrb[0].mxu0
        %v3610 = vadd.f32 0.0, %v3609
        %v3611 = vpop.f32.mrb[0].mxu0
        %3612 = vmatprep.mubr.bf16.mxu0 %v3372
        %3613 = vmatmul.mubr.bf16.gmra.mrb[0].mxu0 %v3371
        %v3614 = vpop.f32.mrb[0].mxu0
        %v3615 = vadd.f32 0.0, %v3614
        %v3616 = vpop.f32.mrb[0].mxu0
        %v3617 = vpop.f32.mrb[0].mxu0
        %v3618 = vadd.f32 0.0, %v3617
        %v3619 = vpop.f32.mrb[0].mxu0
        %3620 = vmatprep.mubr.bf16.mxu0 %v3374
        %3621 = vmatmul.mubr.bf16.gmra.mrb[0].mxu0 %v3373
        %v3622 = vpop.f32.mrb[0].mxu0
        %v3623 = vadd.f32 0.0, %v3622
        %v3624 = vpop.f32.mrb[0].mxu0
        %v3625 = vpop.f32.mrb[0].mxu0
        %v3626 = vadd.f32 0.0, %v3625
        %v3627 = vpop.f32.mrb[0].mxu0
        %3628 = vmatprep.mubr.bf16.mxu0 %v3376
        %3629 = vmatmul.mubr.bf16.gmra.mrb[0].mxu0 %v3375
        %v3630 = vpop.f32.mrb[0].mxu0
        %v3631 = vadd.f32 0.0, %v3630
        %v3632 = vpop.f32.mrb[0].mxu0
        %v3633 = vpop.f32.mrb[0].mxu0
        %v3634 = vadd.f32 0.0, %v3633
        %v3635 = vpop.f32.mrb[0].mxu0
        %3636 = vmatprep.mubr.bf16.mxu0 %v3378
        %3637 = vmatmul.mubr.bf16.gmra.mrb[0].mxu0 %v3377
        %v3638 = vpop.f32.mrb[0].mxu0
        %v3639 = vadd.f32 0.0, %v3638
        %v3640 = vpop.f32.mrb[0].mxu0
        %v3641 = vpop.f32.mrb[0].mxu0
        %v3642 = vadd.f32 0.0, %v3641
        %v3643 = vpop.f32.mrb[0].mxu0
        %3644 = vmatprep.mubr.bf16.mxu0 %v3380
        %3645 = vmatmul.mubr.bf16.gmra.mrb[0].mxu0 %v3379
        %v3646 = vpop.f32.mrb[0].mxu0
        %v3647 = vadd.f32 0.0, %v3646
        %v3648 = vpop.f32.mrb[0].mxu0
        %v3649 = vpop.f32.mrb[0].mxu0
        %v3650 = vadd.f32 0.0, %v3649
        %v3651 = vpop.f32.mrb[0].mxu0
        %3652 = vmatprep.mubr.bf16.mxu0 %v3382
        %3653 = vmatmul.mubr.bf16.gmra.mrb[0].mxu0 %v3381
        %v3654 = vpop.f32.mrb[0].mxu0
        %v3655 = vadd.f32 0.0, %v3654
        %v3656 = vpop.f32.mrb[0].mxu0
        %v3657 = vpop.f32.mrb[0].mxu0
        %v3658 = vadd.f32 0.0, %v3657
        %v3659 = vpop.f32.mrb[0].mxu0
        %3660 = vmatprep.mubr.bf16.mxu0 %v3384
        %3661 = vmatmul.mubr.bf16.gmra.mrb[0].mxu0 %v3383
        %v3662 = vpop.f32.mrb[0].mxu0
        %v3663 = vadd.f32 0.0, %v3662
        %v3664 = vpop.f32.mrb[0].mxu0
        %v3665 = vpop.f32.mrb[0].mxu0
        %v3666 = vadd.f32 0.0, %v3665
        %v3667 = vpop.f32.mrb[0].mxu0
        %3668 = vmatprep.mubr.bf16.mxu0 %v3386
        %3669 = vmatmul.mubr.bf16.gmra.mrb[0].mxu0 %v3385
        %v3670 = vpop.f32.mrb[0].mxu0
        %v3671 = vadd.f32 0.0, %v3670
        %v3672 = vpop.f32.mrb[0].mxu0
        %v3673 = vpop.f32.mrb[0].mxu0
        %v3674 = vadd.f32 0.0, %v3673
        %v3675 = vpop.f32.mrb[0].mxu0
        %3676 = vdwg.mxu0
        %v3709 = vunpack.c.l.b16 %v3258
        %v3710 = vunpack.c.l.b16 %v3259
        %v3711 = vunpack.c.l.b16 %v3260
        %v3712 = vunpack.c.l.b16 %v3261
        %v3713 = vunpack.c.l.b16 %v3262
        %v3714 = vunpack.c.l.b16 %v3263
        %v3715 = vunpack.c.l.b16 %v3264
        %v3716 = vunpack.c.l.b16 %v3265
        %v3717 = vunpack.c.l.b16 %v3266
        %v3718 = vunpack.c.l.b16 %v3267
        %v3719 = vunpack.c.l.b16 %v3268
        %v3720 = vunpack.c.l.b16 %v3269
        %v3721 = vunpack.c.l.b16 %v3270
        %v3722 = vunpack.c.l.b16 %v3271
        %v3723 = vunpack.c.l.b16 %v3272
        %v3724 = vunpack.c.l.b16 %v3273
        %v3725 = vunpack.c.l.b16 %v3274
        %v3726 = vunpack.c.l.b16 %v3275
        %v3727 = vunpack.c.l.b16 %v3276
        %v3728 = vunpack.c.l.b16 %v3277
        %v3729 = vunpack.c.l.b16 %v3278
        %v3730 = vunpack.c.l.b16 %v3279
        %v3731 = vunpack.c.l.b16 %v3280
        %v3732 = vunpack.c.l.b16 %v3281
        %v3733 = vunpack.c.l.b16 %v3282
        %v3734 = vunpack.c.l.b16 %v3283
        %v3735 = vunpack.c.l.b16 %v3284
        %v3736 = vunpack.c.l.b16 %v3285
        %v3737 = vunpack.c.l.b16 %v3286
        %v3738 = vunpack.c.l.b16 %v3287
        %v3739 = vunpack.c.l.b16 %v3288
        %v3740 = vunpack.c.l.b16 %v3289
        %v3741 = vpack.c.b16 %v3710, %v3709
        %v3742 = vpack.c.b16 %v3712, %v3711
        %v3743 = vpack.c.b16 %v3714, %v3713
        %v3744 = vpack.c.b16 %v3716, %v3715
        %v3745 = vpack.c.b16 %v3718, %v3717
        %v3746 = vpack.c.b16 %v3720, %v3719
        %v3747 = vpack.c.b16 %v3722, %v3721
        %v3748 = vpack.c.b16 %v3724, %v3723
        %v3749 = vpack.c.b16 %v3726, %v3725
        %v3750 = vpack.c.b16 %v3728, %v3727
        %v3751 = vpack.c.b16 %v3730, %v3729
        %v3752 = vpack.c.b16 %v3732, %v3731
        %v3753 = vpack.c.b16 %v3734, %v3733
        %v3754 = vpack.c.b16 %v3736, %v3735
        %v3755 = vpack.c.b16 %v3738, %v3737
        %v3756 = vpack.c.b16 %v3740, %v3739
        %3773 = vmatprep.subr.bf16.mxu0 0
        %3774 = vmatpush1.bf16.msra.mxu0 %v3741
        %3775 = vmatprep.subr.bf16.mxu0 0
        %3776 = vmatpush1.bf16.msra.mxu0 %v3742
        %3777 = vmatprep.subr.bf16.mxu0 0
        %3778 = vmatpush1.bf16.msra.mxu0 %v3743
        %3779 = vmatprep.subr.bf16.mxu0 0
        %3780 = vmatpush1.bf16.msra.mxu0 %v3744
        %3781 = vmatprep.subr.bf16.mxu0 0
        %3782 = vmatpush1.bf16.msra.mxu0 %v3745
        %3783 = vmatprep.subr.bf16.mxu0 0
        %3784 = vmatpush1.bf16.msra.mxu0 %v3746
        %3785 = vmatprep.subr.bf16.mxu0 0
        %3786 = vmatpush1.bf16.msra.mxu0 %v3747
        %3787 = vmatprep.subr.bf16.mxu0 0
        %3788 = vmatpush1.bf16.msra.mxu0 %v3748
        %3789 = vmatprep.subr.bf16.mxu0 0
        %3790 = vmatpush1.bf16.msra.mxu0 %v3749
        %3791 = vmatprep.subr.bf16.mxu0 0
        %3792 = vmatpush1.bf16.msra.mxu0 %v3750
        %3793 = vmatprep.subr.bf16.mxu0 0
        %3794 = vmatpush1.bf16.msra.mxu0 %v3751
        %3795 = vmatprep.subr.bf16.mxu0 0
        %3796 = vmatpush1.bf16.msra.mxu0 %v3752
        %3797 = vmatprep.subr.bf16.mxu0 0
        %3798 = vmatpush1.bf16.msra.mxu0 %v3753
        %3799 = vmatprep.subr.bf16.mxu0 0
        %3800 = vmatpush1.bf16.msra.mxu0 %v3754
        %3801 = vmatprep.subr.bf16.mxu0 0
        %3802 = vmatpush1.bf16.msra.mxu0 %v3755
        %3803 = vmatprep.subr.bf16.mxu0 0
        %3804 = vmatpush1.bf16.msra.mxu0 %v3756
        %3805 = vmatprep.mubr.bf16.mxu0 %v3226
        %3806 = vmatmul.mubr.bf16.gmra.mrb[0].mxu0 %v3225
        %v3807 = vpop.f32.mrb[0].mxu0
        %v3808 = vadd.f32 %v3551, %v3807
        %v3809 = vpop.f32.mrb[0].mxu0
        %v3810 = vpop.f32.mrb[0].mxu0
        %v3811 = vadd.f32 %v3554, %v3810
        %v3812 = vpop.f32.mrb[0].mxu0
        %3813 = vmatprep.mubr.bf16.mxu0 %v3228
        %3814 = vmatmul.mubr.bf16.gmra.mrb[0].mxu0 %v3227
        %v3815 = vpop.f32.mrb[0].mxu0
        %v3816 = vadd.f32 %v3559, %v3815
        %v3817 = vpop.f32.mrb[0].mxu0
        %v3818 = vpop.f32.mrb[0].mxu0
        %v3819 = vadd.f32 %v3562, %v3818
        %v3820 = vpop.f32.mrb[0].mxu0
        %3821 = vmatprep.mubr.bf16.mxu0 %v3230
        %3822 = vmatmul.mubr.bf16.gmra.mrb[0].mxu0 %v3229
        %v3823 = vpop.f32.mrb[0].mxu0
        %v3824 = vadd.f32 %v3567, %v3823
        %v3825 = vpop.f32.mrb[0].mxu0
        %v3826 = vpop.f32.mrb[0].mxu0
        %v3827 = vadd.f32 %v3570, %v3826
        %v3828 = vpop.f32.mrb[0].mxu0
        %3829 = vmatprep.mubr.bf16.mxu0 %v3232
        %3830 = vmatmul.mubr.bf16.gmra.mrb[0].mxu0 %v3231
        %v3831 = vpop.f32.mrb[0].mxu0
        %v3832 = vadd.f32 %v3575, %v3831
        %v3833 = vpop.f32.mrb[0].mxu0
        %v3834 = vpop.f32.mrb[0].mxu0
        %v3835 = vadd.f32 %v3578, %v3834
        %v3836 = vpop.f32.mrb[0].mxu0
        %3837 = vmatprep.mubr.bf16.mxu0 %v3234
        %3838 = vmatmul.mubr.bf16.gmra.mrb[0].mxu0 %v3233
        %v3839 = vpop.f32.mrb[0].mxu0
        %v3840 = vadd.f32 %v3583, %v3839
        %v3841 = vpop.f32.mrb[0].mxu0
        %v3842 = vpop.f32.mrb[0].mxu0
        %v3843 = vadd.f32 %v3586, %v3842
        %v3844 = vpop.f32.mrb[0].mxu0
        %3845 = vmatprep.mubr.bf16.mxu0 %v3236
        %3846 = vmatmul.mubr.bf16.gmra.mrb[0].mxu0 %v3235
        %v3847 = vpop.f32.mrb[0].mxu0
        %v3848 = vadd.f32 %v3591, %v3847
        %v3849 = vpop.f32.mrb[0].mxu0
        %v3850 = vpop.f32.mrb[0].mxu0
        %v3851 = vadd.f32 %v3594, %v3850
        %v3852 = vpop.f32.mrb[0].mxu0
        %3853 = vmatprep.mubr.bf16.mxu0 %v3238
        %3854 = vmatmul.mubr.bf16.gmra.mrb[0].mxu0 %v3237
        %v3855 = vpop.f32.mrb[0].mxu0
        %v3856 = vadd.f32 %v3599, %v3855
        %v3857 = vpop.f32.mrb[0].mxu0
        %v3858 = vpop.f32.mrb[0].mxu0
        %v3859 = vadd.f32 %v3602, %v3858
        %v3860 = vpop.f32.mrb[0].mxu0
        %3861 = vmatprep.mubr.bf16.mxu0 %v3240
        %3862 = vmatmul.mubr.bf16.gmra.mrb[0].mxu0 %v3239
        %v3863 = vpop.f32.mrb[0].mxu0
        %v3864 = vadd.f32 %v3607, %v3863
        %v3865 = vpop.f32.mrb[0].mxu0
        %v3866 = vpop.f32.mrb[0].mxu0
        %v3867 = vadd.f32 %v3610, %v3866
        %v3868 = vpop.f32.mrb[0].mxu0
        %3869 = vmatprep.mubr.bf16.mxu0 %v3242
        %3870 = vmatmul.mubr.bf16.gmra.mrb[0].mxu0 %v3241
        %v3871 = vpop.f32.mrb[0].mxu0
        %v3872 = vadd.f32 %v3615, %v3871
        %v3873 = vpop.f32.mrb[0].mxu0
        %v3874 = vpop.f32.mrb[0].mxu0
        %v3875 = vadd.f32 %v3618, %v3874
        %v3876 = vpop.f32.mrb[0].mxu0
        %3877 = vmatprep.mubr.bf16.mxu0 %v3244
        %3878 = vmatmul.mubr.bf16.gmra.mrb[0].mxu0 %v3243
        %v3879 = vpop.f32.mrb[0].mxu0
        %v3880 = vadd.f32 %v3623, %v3879
        %v3881 = vpop.f32.mrb[0].mxu0
        %v3882 = vpop.f32.mrb[0].mxu0
        %v3883 = vadd.f32 %v3626, %v3882
        %v3884 = vpop.f32.mrb[0].mxu0
        %3885 = vmatprep.mubr.bf16.mxu0 %v3246
        %3886 = vmatmul.mubr.bf16.gmra.mrb[0].mxu0 %v3245
        %v3887 = vpop.f32.mrb[0].mxu0
        %v3888 = vadd.f32 %v3631, %v3887
        %v3889 = vpop.f32.mrb[0].mxu0
        %v3890 = vpop.f32.mrb[0].mxu0
        %v3891 = vadd.f32 %v3634, %v3890
        %v3892 = vpop.f32.mrb[0].mxu0
        %3893 = vmatprep.mubr.bf16.mxu0 %v3248
        %3894 = vmatmul.mubr.bf16.gmra.mrb[0].mxu0 %v3247
        %v3895 = vpop.f32.mrb[0].mxu0
        %v3896 = vadd.f32 %v3639, %v3895
        %v3897 = vpop.f32.mrb[0].mxu0
        %v3898 = vpop.f32.mrb[0].mxu0
        %v3899 = vadd.f32 %v3642, %v3898
        %v3900 = vpop.f32.mrb[0].mxu0
        %3901 = vmatprep.mubr.bf16.mxu0 %v3250
        %3902 = vmatmul.mubr.bf16.gmra.mrb[0].mxu0 %v3249
        %v3903 = vpop.f32.mrb[0].mxu0
        %v3904 = vadd.f32 %v3647, %v3903
        %v3905 = vpop.f32.mrb[0].mxu0
        %v3906 = vpop.f32.mrb[0].mxu0
        %v3907 = vadd.f32 %v3650, %v3906
        %v3908 = vpop.f32.mrb[0].mxu0
        %3909 = vmatprep.mubr.bf16.mxu0 %v3252
        %3910 = vmatmul.mubr.bf16.gmra.mrb[0].mxu0 %v3251
        %v3911 = vpop.f32.mrb[0].mxu0
        %v3912 = vadd.f32 %v3655, %v3911
        %v3913 = vpop.f32.mrb[0].mxu0
        %v3914 = vpop.f32.mrb[0].mxu0
        %v3915 = vadd.f32 %v3658, %v3914
        %v3916 = vpop.f32.mrb[0].mxu0
        %3917 = vmatprep.mubr.bf16.mxu0 %v3254
        %3918 = vmatmul.mubr.bf16.gmra.mrb[0].mxu0 %v3253
        %v3919 = vpop.f32.mrb[0].mxu0
        %v3920 = vadd.f32 %v3663, %v3919
        %v3921 = vpop.f32.mrb[0].mxu0
        %v3922 = vpop.f32.mrb[0].mxu0
        %v3923 = vadd.f32 %v3666, %v3922
        %v3924 = vpop.f32.mrb[0].mxu0
        %3925 = vmatprep.mubr.bf16.mxu0 %v3256
        %3926 = vmatmul.mubr.bf16.gmra.mrb[0].mxu0 %v3255
        %v3927 = vpop.f32.mrb[0].mxu0
        %v3928 = vadd.f32 %v3671, %v3927
        %v3929 = vpop.f32.mrb[0].mxu0
        %v3930 = vpop.f32.mrb[0].mxu0
        %v3931 = vadd.f32 %v3674, %v3930
        %v3932 = vpop.f32.mrb[0].mxu0
        %3933 = vdwg.mxu0
        %v3934 = vadd.f32 %v3808, %v1420
        %v3935 = vadd.f32 %v3811, %v1420
        %v3936 = vadd.f32 %v3816, %v1420
        %v3937 = vadd.f32 %v3819, %v1420
        %v3938 = vadd.f32 %v3824, %v1420
        %v3939 = vadd.f32 %v3827, %v1420
        %v3940 = vadd.f32 %v3832, %v1420
        %v3941 = vadd.f32 %v3835, %v1420
        %v3942 = vadd.f32 %v3840, %v1420
        %v3943 = vadd.f32 %v3843, %v1420
        %v3944 = vadd.f32 %v3848, %v1420
        %v3945 = vadd.f32 %v3851, %v1420
        %v3946 = vadd.f32 %v3856, %v1420
        %v3947 = vadd.f32 %v3859, %v1420
        %v3948 = vadd.f32 %v3864, %v1420
        %v3949 = vadd.f32 %v3867, %v1420
        %v3950 = vadd.f32 %v3872, %v1420
        %v3951 = vadd.f32 %v3875, %v1420
        %v3952 = vadd.f32 %v3880, %v1420
        %v3953 = vadd.f32 %v3883, %v1420
        %v3954 = vadd.f32 %v3888, %v1420
        %v3955 = vadd.f32 %v3891, %v1420
        %v3956 = vadd.f32 %v3896, %v1420
        %v3957 = vadd.f32 %v3899, %v1420
        %v3958 = vadd.f32 %v3904, %v1420
        %v3959 = vadd.f32 %v3907, %v1420
        %v3960 = vadd.f32 %v3912, %v1420
        %v3961 = vadd.f32 %v3915, %v1420
        %v3962 = vadd.f32 %v3920, %v1420
        %v3963 = vadd.f32 %v3923, %v1420
        %v3964 = vadd.f32 %v3928, %v1420
        %v3965 = vadd.f32 %v3931, %v1420
        %s3966 = scalar_lea.vmem %s203, 768 [#allocation8]
        %3967 = vst [vmem:[%s3966] sm:$0xff] %v3934
        %3968 = vst [vmem:[%s3966 + $0x8] sm:$0xff] %v3935
        %3969 = vst [vmem:[%s3966 + $0x10] sm:$0xff] %v3936
        %3970 = vst [vmem:[%s3966 + $0x18] sm:$0xff] %v3937
        %3971 = vst [vmem:[%s3966 + $0x20] sm:$0xff] %v3938
        %3972 = vst [vmem:[%s3966 + $0x28] sm:$0xff] %v3939
        %3973 = vst [vmem:[%s3966 + $0x30] sm:$0xff] %v3940
        %3974 = vst [vmem:[%s3966 + $0x38] sm:$0xff] %v3941
        %3975 = vst [vmem:[%s3966 + $0x40] sm:$0xff] %v3942
        %3976 = vst [vmem:[%s3966 + $0x48] sm:$0xff] %v3943
        %3977 = vst [vmem:[%s3966 + $0x50] sm:$0xff] %v3944
        %3978 = vst [vmem:[%s3966 + $0x58] sm:$0xff] %v3945
        %3979 = vst [vmem:[%s3966 + $0x60] sm:$0xff] %v3946
        %3980 = vst [vmem:[%s3966 + $0x68] sm:$0xff] %v3947
        %3981 = vst [vmem:[%s3966 + $0x70] sm:$0xff] %v3948
        %3982 = vst [vmem:[%s3966 + $0x78] sm:$0xff] %v3949
        %3983 = vst [vmem:[%s3966 + $0x80] sm:$0xff] %v3950
        %3984 = vst [vmem:[%s3966 + $0x88] sm:$0xff] %v3951
        %3985 = vst [vmem:[%s3966 + $0x90] sm:$0xff] %v3952
        %3986 = vst [vmem:[%s3966 + $0x98] sm:$0xff] %v3953
        %3987 = vst [vmem:[%s3966 + $0xa0] sm:$0xff] %v3954
        %3988 = vst [vmem:[%s3966 + $0xa8] sm:$0xff] %v3955
        %3989 = vst [vmem:[%s3966 + $0xb0] sm:$0xff] %v3956
        %3990 = vst [vmem:[%s3966 + $0xb8] sm:$0xff] %v3957
        %3991 = vst [vmem:[%s3966 + $0xc0] sm:$0xff] %v3958
        %3992 = vst [vmem:[%s3966 + $0xc8] sm:$0xff] %v3959
        %3993 = vst [vmem:[%s3966 + $0xd0] sm:$0xff] %v3960
        %3994 = vst [vmem:[%s3966 + $0xd8] sm:$0xff] %v3961
        %3995 = vst [vmem:[%s3966 + $0xe0] sm:$0xff] %v3962
        %3996 = vst [vmem:[%s3966 + $0xe8] sm:$0xff] %v3963
        %3997 = vst [vmem:[%s3966 + $0xf0] sm:$0xff] %v3964
        %3998 = vst [vmem:[%s3966 + $0xf8] sm:$0xff] %v3965
        %s3999 = sand.u32 %s97, 1
        %s4000 = scalar_lea.sflag [#allocation5], %s3999
        %s4001 = sand.u32 %s97, 1
        %s4002 = smul.addr %s4001, 1024
        %s4003 = scalar_lea.vmem [#allocation8], %s4002
        // Predicated region
        $region41: #{tpu_custom_call.1} parent=31 // pred_check
          %p4004 = pneg %p107
        $region42: #{tpu_custom_call.1} parent=31 // pred_check_branch
          %4006 = sbr.rel (%p4004) target = $region44
        $region43: #{tpu_custom_call.1} parent=31 // pred_region
          %s4008 = ssub.s32 16384, 16384
          %4009 = vsyncadd %s4000, %s4008
          %s4010 = smul.addr %s21, 128
          %s4011 = smul.addr %s4010, 128
          %s4012 = scalar_lea.hbm %s3, %s4011
          %s4013 = sshll.u32 %s4003, 4
          %s4014 = int_to_ptr.vmem [resolvable:$true] %s4013
          %4019 = dma.vmem_to_hbm [thread:$0]  %s4014, 16384, %s4012, %s4000, 128, 128, 8
        $region44: #{tpu_custom_call.1} parent=31 // pred_fallthru
          _
      $region32: #{tpu_custom_call.1} parent=5 // pred_fallthru
        _
      %p4020 = scmp.le.s32.totalorder 2, %s16
      // Predicated region
      $region45: #{tpu_custom_call.1} parent=5 // pred_check
        %p4021 = pneg %p4020
      $region46: #{tpu_custom_call.1} parent=5 // pred_check_branch
        %4023 = sbr.rel (%p4021) target = $region48
      $region47: #{tpu_custom_call.1} parent=5 // pred_region
        %s4024 = ssub.s32 %s16, 2
        // Predicated region
        $region49: #{tpu_custom_call.1} parent=47 // pred_check
          %p4025 = pneg %p113
        $region50: #{tpu_custom_call.1} parent=47 // pred_check_branch
          %4027 = sbr.rel (%p4025) target = $region52
        $region51: #{tpu_custom_call.1} parent=47 // pred_region
          %s4028 = sand.u32 %s98, 1
          %s4029 = scalar_lea.sflag [#allocation5], %s4028
          %s4030 = sand.u32 %s98, 1
          %s4031 = smul.addr %s4030, 1024
          %s4032 = scalar_lea.vmem [#allocation8], %s4031
          %4033 = dma.done %s4029, 16384
        $region52: #{tpu_custom_call.1} parent=47 // pred_fallthru
          _
      $region48: #{tpu_custom_call.1} parent=5 // pred_fallthru
        _
    $region6: #{tpu_custom_call.1} parent=1 // loop_footer
      %s20 = sadd.s32 1, %s16
    $region7: #{tpu_custom_call.1} parent=1 // loop_footer_branch
      %15 = sbr.rel target = $region3
    $region8: #{tpu_custom_call.1} parent=1 // loop_exit
      _
    %4034 = vsyncpa [#allocation4], 1
    %s4035 = scalar_lea.sflag [#allocation4], 1
    %4036 = vsyncpa %s4035, 1
    %4037 = vsyncpa [#allocation7], 1
    %4038 = vsyncpa [#allocation5], 1
    %s4039 = scalar_lea.sflag [#allocation5], 1
    %4040 = vsyncpa %s4039, 1

</llo_original>
